<compile_context>
chip_gen: v5e
topology: v5e:2x2
jax: 0.10.0
libtpu: 0.0.40
codegen_flags: <defaults>
</compile_context>

<pallas_src>
import jax
import jax.numpy as jnp
from jax.experimental import pallas as pl
from jax.experimental.pallas import tpu as pltpu

N_OUT = 128
USER_INPUT = 16
USER_INTER_INPUT = 6136
USER_INTER_PADDED = 6144          # 48 * 128, lane-aligned
DEFAULT_TB = 512                  # batch tile; fits comfortably on v5e/v6e/v7x


def _round_up(x, m):
    return (x + m - 1) // m * m


# --------------------------------------------------------------------------
# Kernel
# --------------------------------------------------------------------------
def usernet_kernel(feat_ref, inter_ref,
                   w1f_ref, w1i_ref, w2f_ref, woutf_ref, wouti_ref,
                   out_ref):
    # skip_feat = ReLU(feat @ W1f)                      [TB, 128] (f32)
    skip_feat = jnp.maximum(
        jnp.dot(feat_ref[...], w1f_ref[...], preferred_element_type=jnp.float32),
        0.0)

    # inter_out = ReLU(inter @ W1i)   bf16 x bf16 -> f32 accumulate (MXU path)
    inter_out = jnp.maximum(
        jnp.dot(inter_ref[...], w1i_ref[...], preferred_element_type=jnp.float32),
        0.0)

    # feat_out = ReLU(skip_feat @ W2f) + skip_feat
    feat_out = jnp.maximum(
        jnp.dot(skip_feat, w2f_ref[...], preferred_element_type=jnp.float32),
        0.0) + skip_feat

    # output = cat(feat_out, inter_out) @ Wout.T
    #        = feat_out @ Wout_feat + inter_out @ Wout_inter   (no bias)
    out = (jnp.dot(feat_out, woutf_ref[...], preferred_element_type=jnp.float32)
           + jnp.dot(inter_out, wouti_ref[...], preferred_element_type=jnp.float32))
    out_ref[...] = out.astype(out_ref.dtype)


# --------------------------------------------------------------------------
# Wrapper
# --------------------------------------------------------------------------
def _vmem_limit_bytes(tb):
    """Double-buffered footprint of all blocks + ~50% slack, floored/capped
    so we never request more than is sane on v7x's 64 MiB VMEM."""
    inter_tiles = 2 * tb * USER_INTER_PADDED * 2            # bf16 activations
    feat_tiles = 2 * tb * USER_INPUT * 4
    out_tiles = 2 * tb * N_OUT * 4
    weights = 2 * (USER_INTER_PADDED * N_OUT * 2            # w1i (bf16)
                   + USER_INPUT * N_OUT * 4                 # w1f
                   + 3 * N_OUT * N_OUT * 4)                 # w2f, wout halves
    budget = int((inter_tiles + feat_tiles + out_tiles + weights) * 1.5) + (4 << 20)
    return min(max(budget, 32 << 20), 56 << 20)


def usernet_forward(feat_input, inter_input, prepared_params, *, tb=DEFAULT_TB):
    """prepared_params: output of prepare_params() (w1i pre-cast/padded)."""
    B = feat_input.shape[0]

    # Pick a batch tile: never larger than the (8-aligned) batch itself.
    tb = min(tb, _round_up(B, 8))
    b_pad = _round_up(B, tb)
    grid = (b_pad // tb,)

    # Activation prep (padding + bf16 cast of the big stream) done outside the
    # kernel; weight prep was done once in prepare_params().
    feat_p = jnp.pad(feat_input, ((0, b_pad - B), (0, 0))).astype(jnp.float32)
    inter_p = jnp.pad(inter_input.astype(jnp.bfloat16),
                      ((0, b_pad - B), (0, USER_INTER_PADDED - USER_INTER_INPUT)))

    w1f = prepared_params["w1f"]            # [16, 128]   f32
    w1i = prepared_params["w1i_bf16_pad"]   # [6144, 128] bf16
    w2f = prepared_params["w2f"]            # [128, 128]  f32
    woutf = prepared_params["wout_feat"]    # [128, 128]  f32
    wouti = prepared_params["wout_inter"]   # [128, 128]  f32

    flops = 2 * b_pad * N_OUT * (USER_INPUT + USER_INTER_PADDED + N_OUT + 2 * N_OUT)
    bytes_accessed = (b_pad * USER_INPUT * 4
                      + b_pad * USER_INTER_PADDED * 2
                      + USER_INTER_PADDED * N_OUT * 2
                      + USER_INPUT * N_OUT * 4
                      + 3 * N_OUT * N_OUT * 4
                      + b_pad * N_OUT * 4)

    out = pl.pallas_call(
        usernet_kernel,
        out_shape=jax.ShapeDtypeStruct((b_pad, N_OUT), jnp.float32),
        grid=grid,
        in_specs=[
            pl.BlockSpec((tb, USER_INPUT), lambda i: (i, 0)),            # feat tile
            pl.BlockSpec((tb, USER_INTER_PADDED), lambda i: (i, 0)),     # inter tile
            pl.BlockSpec((USER_INPUT, N_OUT), lambda i: (0, 0)),         # w1f  (resident)
            pl.BlockSpec((USER_INTER_PADDED, N_OUT), lambda i: (0, 0)),  # w1i  (resident)
            pl.BlockSpec((N_OUT, N_OUT), lambda i: (0, 0)),              # w2f  (resident)
            pl.BlockSpec((N_OUT, N_OUT), lambda i: (0, 0)),              # wout_feat
            pl.BlockSpec((N_OUT, N_OUT), lambda i: (0, 0)),              # wout_inter
        ],
        out_specs=pl.BlockSpec((tb, N_OUT), lambda i: (i, 0)),
        compiler_params=pltpu.CompilerParams(
            dimension_semantics=("parallel",),                # v7x: 2 TCs share batch
            vmem_limit_bytes=_vmem_limit_bytes(tb)),
        cost_estimate=pl.CostEstimate(flops=flops, transcendentals=0,
                                      bytes_accessed=bytes_accessed),
    )(feat_p, inter_p, w1f, w1i, w2f, woutf, wouti)

    return out[:B]


# --------------------------------------------------------------------------
# Params
# --------------------------------------------------------------------------
def init_params(key):
    """Deterministic init mimicking nn.Linear's U(-1/sqrt(fan_in), 1/sqrt(fan_in)).
    Weights are stored transposed: [in_features, out_features]."""
    k1, k2, k3, k4 = jax.random.split(key, 4)

    def linear_w(k, fan_in, fan_out):
        bound = 1.0 / jnp.sqrt(fan_in)
        return jax.random.uniform(k, (fan_in, fan_out), jnp.float32, -bound, bound)

    w1f = linear_w(k1, USER_INPUT, N_OUT)            # [16, 128]
    w1i = linear_w(k2, USER_INTER_INPUT, N_OUT)      # [6136, 128]
    w2f = linear_w(k3, N_OUT, N_OUT)                 # [128, 128]
    wout = linear_w(k4, 2 * N_OUT, N_OUT)            # [256, 128]
    return {
        "w1f": w1f,
        "w1i": w1i,
        "w2f": w2f,
        "wout_feat": wout[:N_OUT, :],
        "wout_inter": wout[N_OUT:, :],
    }


def prepare_params(params):
    """One-time kernel prep: bf16-cast + zero-pad the big inter weight."""
    w1i_bf16 = params["w1i"].astype(jnp.bfloat16)
    w1i_pad = jnp.pad(w1i_bf16,
                      ((0, USER_INTER_PADDED - USER_INTER_INPUT), (0, 0)))
    return {
        "w1f": params["w1f"],
        "w1i_bf16_pad": w1i_pad,
        "w2f": params["w2f"],
        "wout_feat": params["wout_feat"],
        "wout_inter": params["wout_inter"],
    }


# --------------------------------------------------------------------------
# Pure-JAX reference (uses the same bf16-cast inter operands as the kernel,
# so only the accumulation order can differ).
# --------------------------------------------------------------------------
def usernet_ref(feat, inter, params):
    skip_feat = jnp.maximum(feat @ params["w1f"], 0.0)
    inter_out = jnp.maximum(
        jnp.dot(inter.astype(jnp.bfloat16), params["w1i"].astype(jnp.bfloat16),
                preferred_element_type=jnp.float32), 0.0)
    feat_out = jnp.maximum(skip_feat @ params["w2f"], 0.0) + skip_feat
    return feat_out @ params["wout_feat"] + inter_out @ params["wout_inter"]


if __name__ == "__main__":
    key = jax.random.PRNGKey(0)
    kp, kf, ki = jax.random.split(key, 3)

    B = 8  # small, sublane-aligned demo batch
    raw_params = init_params(kp)
    prepared = prepare_params(raw_params)
    feat_input = jax.random.normal(kf, (B, USER_INPUT), jnp.float32)
    inter_input = jax.random.normal(ki, (B, USER_INTER_INPUT), jnp.float32)

    out = usernet_forward(feat_input, inter_input, prepared)
    out = jax.block_until_ready(out)

    ref = usernet_ref(feat_input, inter_input, raw_params)
    assert out.shape == (B, N_OUT)
    assert jnp.allclose(out, ref, atol=5e-3, rtol=5e-3), "mismatch vs reference"

    print("KERNEL_OK")
</pallas_src>

<mosaic_0001>
module attributes {stable_mosaic.version = 11 : i64} {
  func.func @usernet_kernel(%arg0: i32, %arg1: memref<8x16xf32, #tpu.memory_space<vmem>>, %arg2: memref<8x6144xbf16, #tpu.memory_space<vmem>>, %arg3: memref<16x128xf32, #tpu.memory_space<vmem>>, %arg4: memref<6144x128xbf16, #tpu.memory_space<vmem>>, %arg5: memref<128x128xf32, #tpu.memory_space<vmem>>, %arg6: memref<128x128xf32, #tpu.memory_space<vmem>>, %arg7: memref<128x128xf32, #tpu.memory_space<vmem>>, %arg8: memref<8x128xf32, #tpu.memory_space<vmem>>) attributes {dimension_semantics = [#tpu.dimension_semantics<parallel>], iteration_bounds = array<i64: 1>, scalar_prefetch = 0 : i64, scratch_operands = 0 : i64, tpu.core_type = #tpu.core_type<tc>, window_params = [{transform_indices = @transform_0, window_bounds = array<i64: 8, 16>}, {transform_indices = @transform_1, window_bounds = array<i64: 8, 6144>}, {pipeline_mode = #tpu.pipeline_mode<synchronous>, transform_indices = @transform_2, window_bounds = array<i64: 16, 128>}, {pipeline_mode = #tpu.pipeline_mode<synchronous>, transform_indices = @transform_3, window_bounds = array<i64: 6144, 128>}, {pipeline_mode = #tpu.pipeline_mode<synchronous>, transform_indices = @transform_4, window_bounds = array<i64: 128, 128>}, {pipeline_mode = #tpu.pipeline_mode<synchronous>, transform_indices = @transform_5, window_bounds = array<i64: 128, 128>}, {pipeline_mode = #tpu.pipeline_mode<synchronous>, transform_indices = @transform_6, window_bounds = array<i64: 128, 128>}, {transform_indices = @transform_7, window_bounds = array<i64: 8, 128>}]} {
    %c0 = arith.constant 0 : index
    %c0_0 = arith.constant 0 : index
    %0 = vector.load %arg1[%c0, %c0_0] : memref<8x16xf32, #tpu.memory_space<vmem>>, vector<8x16xf32>
    %c0_1 = arith.constant 0 : index
    %c0_2 = arith.constant 0 : index
    %1 = vector.load %arg3[%c0_1, %c0_2] : memref<16x128xf32, #tpu.memory_space<vmem>>, vector<16x128xf32>
    %cst = arith.constant dense<0.000000e+00> : vector<8x128xf32>
    %2 = tpu.matmul %0, %1, %cst {dimension_numbers = #tpu.dot_dimension_numbers<[1], [0], [0], [1], [0, 0, 1, 1], [], []>} : vector<8x16xf32>, vector<16x128xf32>, vector<8x128xf32> -> vector<8x128xf32>
    %cst_3 = arith.constant 0.000000e+00 : f32
    %3 = vector.broadcast %cst_3 : f32 to vector<8x128xf32>
    %4 = arith.maximumf %2, %3 : vector<8x128xf32>
    %c0_4 = arith.constant 0 : index
    %c0_5 = arith.constant 0 : index
    %5 = vector.load %arg2[%c0_4, %c0_5] : memref<8x6144xbf16, #tpu.memory_space<vmem>>, vector<8x6144xbf16>
    %c0_6 = arith.constant 0 : index
    %c0_7 = arith.constant 0 : index
    %6 = vector.load %arg4[%c0_6, %c0_7] : memref<6144x128xbf16, #tpu.memory_space<vmem>>, vector<6144x128xbf16>
    %cst_8 = arith.constant dense<0.000000e+00> : vector<8x128xf32>
    %7 = tpu.matmul %5, %6, %cst_8 {dimension_numbers = #tpu.dot_dimension_numbers<[1], [0], [0], [1], [0, 0, 1, 1], [], []>} : vector<8x6144xbf16>, vector<6144x128xbf16>, vector<8x128xf32> -> vector<8x128xf32>
    %cst_9 = arith.constant 0.000000e+00 : f32
    %8 = vector.broadcast %cst_9 : f32 to vector<8x128xf32>
    %9 = arith.maximumf %7, %8 : vector<8x128xf32>
    %c0_10 = arith.constant 0 : index
    %c0_11 = arith.constant 0 : index
    %10 = vector.load %arg5[%c0_10, %c0_11] : memref<128x128xf32, #tpu.memory_space<vmem>>, vector<128x128xf32>
    %cst_12 = arith.constant dense<0.000000e+00> : vector<8x128xf32>
    %11 = tpu.matmul %4, %10, %cst_12 {dimension_numbers = #tpu.dot_dimension_numbers<[1], [0], [0], [1], [0, 0, 1, 1], [], []>} : vector<8x128xf32>, vector<128x128xf32>, vector<8x128xf32> -> vector<8x128xf32>
    %cst_13 = arith.constant 0.000000e+00 : f32
    %12 = vector.broadcast %cst_13 : f32 to vector<8x128xf32>
    %13 = arith.maximumf %11, %12 : vector<8x128xf32>
    %14 = arith.addf %13, %4 : vector<8x128xf32>
    %c0_14 = arith.constant 0 : index
    %c0_15 = arith.constant 0 : index
    %15 = vector.load %arg6[%c0_14, %c0_15] : memref<128x128xf32, #tpu.memory_space<vmem>>, vector<128x128xf32>
    %cst_16 = arith.constant dense<0.000000e+00> : vector<8x128xf32>
    %16 = tpu.matmul %14, %15, %cst_16 {dimension_numbers = #tpu.dot_dimension_numbers<[1], [0], [0], [1], [0, 0, 1, 1], [], []>} : vector<8x128xf32>, vector<128x128xf32>, vector<8x128xf32> -> vector<8x128xf32>
    %c0_17 = arith.constant 0 : index
    %c0_18 = arith.constant 0 : index
    %17 = vector.load %arg7[%c0_17, %c0_18] : memref<128x128xf32, #tpu.memory_space<vmem>>, vector<128x128xf32>
    %cst_19 = arith.constant dense<0.000000e+00> : vector<8x128xf32>
    %18 = tpu.matmul %9, %17, %cst_19 {dimension_numbers = #tpu.dot_dimension_numbers<[1], [0], [0], [1], [0, 0, 1, 1], [], []>} : vector<8x128xf32>, vector<128x128xf32>, vector<8x128xf32> -> vector<8x128xf32>
    %19 = arith.addf %16, %18 : vector<8x128xf32>
    %c0_20 = arith.constant 0 : index
    %c0_21 = arith.constant 0 : index
    %20 = vector.load %arg8[%c0_20, %c0_21] : memref<8x128xf32, #tpu.memory_space<vmem>>, vector<8x128xf32>
    tpu.vector_store %arg8[%c0_20, %c0_21], %19 {strides = array<i32>} : memref<8x128xf32, #tpu.memory_space<vmem>>, vector<8x128xf32>,
    return
  }
  func.func @transform_0(%arg0: i32) -> (i32, i32) {
    %c0_i32 = arith.constant 0 : i32
    %c0_i32_0 = arith.constant 0 : i32
    return %arg0, %c0_i32 : i32, i32
  }
  func.func @transform_1(%arg0: i32) -> (i32, i32) {
    %c0_i32 = arith.constant 0 : i32
    %c0_i32_0 = arith.constant 0 : i32
    return %arg0, %c0_i32 : i32, i32
  }
  func.func @transform_2(%arg0: i32) -> (i32, i32) {
    %c0_i32 = arith.constant 0 : i32
    %c0_i32_0 = arith.constant 0 : i32
    %c0_i32_1 = arith.constant 0 : i32
    return %c0_i32, %c0_i32_0 : i32, i32
  }
  func.func @transform_3(%arg0: i32) -> (i32, i32) {
    %c0_i32 = arith.constant 0 : i32
    %c0_i32_0 = arith.constant 0 : i32
    %c0_i32_1 = arith.constant 0 : i32
    return %c0_i32, %c0_i32_0 : i32, i32
  }
  func.func @transform_4(%arg0: i32) -> (i32, i32) {
    %c0_i32 = arith.constant 0 : i32
    %c0_i32_0 = arith.constant 0 : i32
    %c0_i32_1 = arith.constant 0 : i32
    return %c0_i32, %c0_i32_0 : i32, i32
  }
  func.func @transform_5(%arg0: i32) -> (i32, i32) {
    %c0_i32 = arith.constant 0 : i32
    %c0_i32_0 = arith.constant 0 : i32
    %c0_i32_1 = arith.constant 0 : i32
    return %c0_i32, %c0_i32_0 : i32, i32
  }
  func.func @transform_6(%arg0: i32) -> (i32, i32) {
    %c0_i32 = arith.constant 0 : i32
    %c0_i32_0 = arith.constant 0 : i32
    %c0_i32_1 = arith.constant 0 : i32
    return %c0_i32, %c0_i32_0 : i32, i32
  }
  func.func @transform_7(%arg0: i32) -> (i32, i32) {
    %c0_i32 = arith.constant 0 : i32
    %c0_i32_0 = arith.constant 0 : i32
    return %arg0, %c0_i32 : i32, i32
  }
}

</mosaic_0001>

<llo_original>
// kernel: tpu_custom_call.1
$region0: #{tpu_custom_call.1}
  #allocation0 [shape = 'u32[]', space=smem, size = 0x4, offset = 0x4, fixed_abs, tag = 'smem constant byte address 0x4 - core index']
  #allocation1 [shape = 'u32[72,128]{1,0:T(1,128)}', space=vmem, size = 0x9000, scoped, tag = 'internal scratch']
  %s0 = inlined_call_operand.hbm [shape: f32[8,16], index: 0, kind: input, shape index: {}]
  %s1 = inlined_call_operand.hbm [shape: bf16[8,6144], index: 1, kind: input, shape index: {}]
  %s2 = inlined_call_operand.hbm [shape: f32[16,128], index: 2, kind: input, shape index: {}]
  %s3 = inlined_call_operand.hbm [shape: bf16[6144,128], index: 3, kind: input, shape index: {}]
  %s4 = inlined_call_operand.hbm [shape: f32[128,128], index: 4, kind: input, shape index: {}]
  %s5 = inlined_call_operand.hbm [shape: f32[128,128], index: 5, kind: input, shape index: {}]
  %s6 = inlined_call_operand.hbm [shape: f32[128,128], index: 6, kind: input, shape index: {}]
  %s7 = inlined_call_operand.hbm [shape: f32[8,128], index: 7, kind: output, shape index: {}]
  %s8 = sld [smem:[#allocation0]]
  $region66: #{tpu_custom_call.1} parent=0
    _
  %s10 = ssub.s32 1, %s8
  %s11 = scalar_select 0, %s10, %s8
  $region1: #{tpu_custom_call.1} parent=0
    #allocation2 [shape = 'u8[4096]{0}', space=vmem, size = 0x1000, scoped, tag = 'input window, operand 0, single buffered']
    #allocation3 [shape = 's32[1]{0}', space=sflag, size = 0x4, scoped, tag = 'scoped memory for tpu_custom_call.1']
    #allocation4 [shape = 's32[1]{0}', space=sflag, size = 0x4, scoped, tag = 'scoped memory for tpu_custom_call.1']
    #allocation5 [shape = 'u8[98304]{0}', space=vmem, size = 0x18000, scoped, tag = 'input window, operand 1, single buffered']
    #allocation6 [shape = 's32[1]{0}', space=sflag, size = 0x4, scoped, tag = 'scoped memory for tpu_custom_call.1']
    #allocation7 [shape = 'u8[8192]{0}', space=vmem, size = 0x2000, scoped, tag = 'input window, operand 2, single buffered']
    #allocation8 [shape = 'u8[1572864]{0}', space=vmem, size = 0x180000, scoped, tag = 'input window, operand 3, single buffered']
    #allocation9 [shape = 's32[1]{0}', space=sflag, size = 0x4, scoped, tag = 'scoped memory for tpu_custom_call.1']
    #allocation10 [shape = 'u8[65536]{0}', space=vmem, size = 0x10000, scoped, tag = 'input window, operand 4, single buffered']
    #allocation11 [shape = 'u8[65536]{0}', space=vmem, size = 0x10000, scoped, tag = 'input window, operand 5, single buffered']
    #allocation12 [shape = 's32[1]{0}', space=sflag, size = 0x4, scoped, tag = 'scoped memory for tpu_custom_call.1']
    #allocation13 [shape = 'u8[65536]{0}', space=vmem, size = 0x10000, scoped, tag = 'input window, operand 6, single buffered']
    #allocation14 [shape = 'u8[4096]{0}', space=vmem, size = 0x1000, scoped, tag = 'output window, operand 0, single buffered']
    %12 = vsyncpa [#allocation3], 0
    %13 = vsyncpa [#allocation6], 0
    %14 = vsyncpa [#allocation9], 0
    %15 = vsyncpa [#allocation12], 0
    %16 = vsyncpa [#allocation4], 0
    // Predicated region
    $region2: #{tpu_custom_call.1} parent=1 // pred_check
      _
    $region3: #{tpu_custom_call.1} parent=1 // pred_check_branch
      %18 = sbr.rel (0) target = $region5
    $region4: #{tpu_custom_call.1} parent=1 // pred_region
      %20 = vsyncadd [#allocation3], 0
      %s22 = sshll.u32 %s0, 4
      %s23 = int_to_ptr.hbm [resolvable:$true] %s22
      %s24 = sshll.u32 [#allocation2], 4
      %s25 = int_to_ptr.vmem [resolvable:$true] %s24
      %27 = dma.hbm_to_vmem [thread:$0]  %s23, 128, %s25, [#allocation3]
    $region5: #{tpu_custom_call.1} parent=1 // pred_fallthru
      _
    // Predicated region
    $region6: #{tpu_custom_call.1} parent=1 // pred_check
      _
    $region7: #{tpu_custom_call.1} parent=1 // pred_check_branch
      %29 = sbr.rel (0) target = $region9
    $region8: #{tpu_custom_call.1} parent=1 // pred_region
      %31 = vsyncadd [#allocation6], 0
      %s33 = sshll.u32 %s1, 4
      %s34 = int_to_ptr.hbm [resolvable:$true] %s33
      %s35 = sshll.u32 [#allocation5], 4
      %s36 = int_to_ptr.vmem [resolvable:$true] %s35
      %38 = dma.hbm_to_vmem [thread:$0]  %s34, 3072, %s36, [#allocation6]
    $region9: #{tpu_custom_call.1} parent=1 // pred_fallthru
      _
    // Predicated region
    $region10: #{tpu_custom_call.1} parent=1 // pred_check
      _
    $region11: #{tpu_custom_call.1} parent=1 // pred_check_branch
      %40 = sbr.rel (0) target = $region13
    $region12: #{tpu_custom_call.1} parent=1 // pred_region
      %42 = vsyncadd [#allocation6], 0
      %s43 = sshll.u32 %s2, 4
      %s44 = int_to_ptr.hbm [resolvable:$true] %s43
      %s45 = sshll.u32 [#allocation7], 4
      %s46 = int_to_ptr.vmem [resolvable:$true] %s45
      %51 = dma.hbm_to_vmem [thread:$0]  %s44, 256, %s46, [#allocation6], 128, 128, 8
    $region13: #{tpu_custom_call.1} parent=1 // pred_fallthru
      _
    // Predicated region
    $region14: #{tpu_custom_call.1} parent=1 // pred_check
      _
    $region15: #{tpu_custom_call.1} parent=1 // pred_check_branch
      %53 = sbr.rel (0) target = $region17
    $region16: #{tpu_custom_call.1} parent=1 // pred_region
      %55 = vsyncadd [#allocation9], 0
      %s56 = sshll.u32 %s3, 4
      %s57 = int_to_ptr.hbm [resolvable:$true] %s56
      %s58 = sshll.u32 [#allocation8], 4
      %s59 = int_to_ptr.vmem [resolvable:$true] %s58
      %64 = dma.hbm_to_vmem [thread:$0]  %s57, 49152, %s59, [#allocation9], 64, 64, 4
    $region17: #{tpu_custom_call.1} parent=1 // pred_fallthru
      _
    // Predicated region
    $region18: #{tpu_custom_call.1} parent=1 // pred_check
      _
    $region19: #{tpu_custom_call.1} parent=1 // pred_check_branch
      %66 = sbr.rel (0) target = $region21
    $region20: #{tpu_custom_call.1} parent=1 // pred_region
      %68 = vsyncadd [#allocation9], 0
      %s69 = sshll.u32 %s4, 4
      %s70 = int_to_ptr.hbm [resolvable:$true] %s69
      %s71 = sshll.u32 [#allocation10], 4
      %s72 = int_to_ptr.vmem [resolvable:$true] %s71
      %77 = dma.hbm_to_vmem [thread:$0]  %s70, 2048, %s72, [#allocation9], 128, 128, 8
    $region21: #{tpu_custom_call.1} parent=1 // pred_fallthru
      _
    // Predicated region
    $region22: #{tpu_custom_call.1} parent=1 // pred_check
      _
    $region23: #{tpu_custom_call.1} parent=1 // pred_check_branch
      %79 = sbr.rel (0) target = $region25
    $region24: #{tpu_custom_call.1} parent=1 // pred_region
      %81 = vsyncadd [#allocation12], 0
      %s82 = sshll.u32 %s5, 4
      %s83 = int_to_ptr.hbm [resolvable:$true] %s82
      %s84 = sshll.u32 [#allocation11], 4
      %s85 = int_to_ptr.vmem [resolvable:$true] %s84
      %90 = dma.hbm_to_vmem [thread:$0]  %s83, 2048, %s85, [#allocation12], 128, 128, 8
    $region25: #{tpu_custom_call.1} parent=1 // pred_fallthru
      _
    // Predicated region
    $region26: #{tpu_custom_call.1} parent=1 // pred_check
      _
    $region27: #{tpu_custom_call.1} parent=1 // pred_check_branch
      %92 = sbr.rel (0) target = $region29
    $region28: #{tpu_custom_call.1} parent=1 // pred_region
      %94 = vsyncadd [#allocation12], 0
      %s95 = sshll.u32 %s6, 4
      %s96 = int_to_ptr.hbm [resolvable:$true] %s95
      %s97 = sshll.u32 [#allocation13], 4
      %s98 = int_to_ptr.vmem [resolvable:$true] %s97
      %103 = dma.hbm_to_vmem [thread:$0]  %s96, 2048, %s98, [#allocation12], 128, 128, 8
    $region29: #{tpu_custom_call.1} parent=1 // pred_fallthru
      _
    // Predicated region
    $region30: #{tpu_custom_call.1} parent=1 // pred_check
      _
    $region31: #{tpu_custom_call.1} parent=1 // pred_check_branch
      %105 = sbr.rel (0) target = $region33
    $region32: #{tpu_custom_call.1} parent=1 // pred_region
      %107 = dma.done [#allocation3], 128
    $region33: #{tpu_custom_call.1} parent=1 // pred_fallthru
      _
    // Predicated region
    $region34: #{tpu_custom_call.1} parent=1 // pred_check
      _
    $region35: #{tpu_custom_call.1} parent=1 // pred_check_branch
      %109 = sbr.rel (0) target = $region37
    $region36: #{tpu_custom_call.1} parent=1 // pred_region
      %111 = dma.done [#allocation6], 3072
    $region37: #{tpu_custom_call.1} parent=1 // pred_fallthru
      _
    // Predicated region
    $region38: #{tpu_custom_call.1} parent=1 // pred_check
      _
    $region39: #{tpu_custom_call.1} parent=1 // pred_check_branch
      %113 = sbr.rel (0) target = $region41
    $region40: #{tpu_custom_call.1} parent=1 // pred_region
      %115 = dma.done [#allocation6], 256
    $region41: #{tpu_custom_call.1} parent=1 // pred_fallthru
      _
    // Predicated region
    $region42: #{tpu_custom_call.1} parent=1 // pred_check
      _
    $region43: #{tpu_custom_call.1} parent=1 // pred_check_branch
      %117 = sbr.rel (0) target = $region45
    $region44: #{tpu_custom_call.1} parent=1 // pred_region
      %119 = dma.done [#allocation9], 49152
    $region45: #{tpu_custom_call.1} parent=1 // pred_fallthru
      _
    // Predicated region
    $region46: #{tpu_custom_call.1} parent=1 // pred_check
      _
    $region47: #{tpu_custom_call.1} parent=1 // pred_check_branch
      %121 = sbr.rel (0) target = $region49
    $region48: #{tpu_custom_call.1} parent=1 // pred_region
      %123 = dma.done [#allocation9], 2048
    $region49: #{tpu_custom_call.1} parent=1 // pred_fallthru
      _
    // Predicated region
    $region50: #{tpu_custom_call.1} parent=1 // pred_check
      _
    $region51: #{tpu_custom_call.1} parent=1 // pred_check_branch
      %125 = sbr.rel (0) target = $region53
    $region52: #{tpu_custom_call.1} parent=1 // pred_region
      %127 = dma.done [#allocation12], 2048
    $region53: #{tpu_custom_call.1} parent=1 // pred_fallthru
      _
    // Predicated region
    $region54: #{tpu_custom_call.1} parent=1 // pred_check
      _
    $region55: #{tpu_custom_call.1} parent=1 // pred_check_branch
      %129 = sbr.rel (0) target = $region57
    $region56: #{tpu_custom_call.1} parent=1 // pred_region
      %131 = dma.done [#allocation12], 2048
    $region57: #{tpu_custom_call.1} parent=1 // pred_fallthru
      _
    %v132 = vld [vmem:[#allocation2] sm:$0xff]
    %v133 = vld [vmem:[#allocation7] sm:$0xff]
    %v134 = vld [vmem:[#allocation7 + $0x8] sm:$0xff]
    %vm135 = vcmask 130048
    %v137 = vsel %vm135, %v132, 0
    %139 = vmatpush.msra.mxu0 0.0
    %140 = vmatpush.msra.mxu0 0.0
    %141 = vmatpush.msra.mxu0 0.0
    %142 = vmatpush.msra.mxu0 0.0
    %143 = vmatpush.msra.mxu0 0.0
    %144 = vmatpush.msra.mxu0 0.0
    %145 = vmatpush.msra.mxu0 0.0
    %146 = vmatpush.msra.mxu0 0.0
    %147 = vmatpush.msra.mxu0 0.0
    %148 = vmatpush.msra.mxu0 0.0
    %149 = vmatpush.msra.mxu0 0.0
    %150 = vmatpush.msra.mxu0 0.0
    %151 = vmatpush.msra.mxu0 0.0
    %152 = vmatpush.msra.mxu0 0.0
    %153 = vmatpush.msra.mxu0 %v134
    %154 = vmatpush.msra.mxu0 %v133
    %155 = vmatmul.f32.gmra.mxu0 %v137
    %v156 = vpop.f32.mrf.mxu0
    %v157 = vadd.f32 0.0, %v156
    %158 = vdwg.mxu0
    %v159 = vmax.f32 %v157, 0.0
    %v160 = vld [vmem:[#allocation5] sm:$0xff]
    %v161 = vld [vmem:[#allocation5 + $0x8] sm:$0xff]
    %v162 = vld [vmem:[#allocation5 + $0x10] sm:$0xff]
    %v163 = vld [vmem:[#allocation5 + $0x18] sm:$0xff]
    %v164 = vld [vmem:[#allocation5 + $0x20] sm:$0xff]
    %v165 = vld [vmem:[#allocation5 + $0x28] sm:$0xff]
    %v166 = vld [vmem:[#allocation5 + $0x30] sm:$0xff]
    %v167 = vld [vmem:[#allocation5 + $0x38] sm:$0xff]
    %v168 = vld [vmem:[#allocation5 + $0x40] sm:$0xff]
    %v169 = vld [vmem:[#allocation5 + $0x48] sm:$0xff]
    %v170 = vld [vmem:[#allocation5 + $0x50] sm:$0xff]
    %v171 = vld [vmem:[#allocation5 + $0x58] sm:$0xff]
    %v172 = vld [vmem:[#allocation5 + $0x60] sm:$0xff]
    %v173 = vld [vmem:[#allocation5 + $0x68] sm:$0xff]
    %v174 = vld [vmem:[#allocation5 + $0x70] sm:$0xff]
    %v175 = vld [vmem:[#allocation5 + $0x78] sm:$0xff]
    %v176 = vld [vmem:[#allocation5 + $0x80] sm:$0xff]
    %v177 = vld [vmem:[#allocation5 + $0x88] sm:$0xff]
    %v178 = vld [vmem:[#allocation5 + $0x90] sm:$0xff]
    %v179 = vld [vmem:[#allocation5 + $0x98] sm:$0xff]
    %v180 = vld [vmem:[#allocation5 + $0xa0] sm:$0xff]
    %v181 = vld [vmem:[#allocation5 + $0xa8] sm:$0xff]
    %v182 = vld [vmem:[#allocation5 + $0xb0] sm:$0xff]
    %v183 = vld [vmem:[#allocation5 + $0xb8] sm:$0xff]
    %v184 = vld [vmem:[#allocation8] sm:$0xf]
    %v185 = vld [vmem:[#allocation8 + $0x4] sm:$0xf]
    %v186 = vld [vmem:[#allocation8 + $0x8] sm:$0xf]
    %v187 = vld [vmem:[#allocation8 + $0xc] sm:$0xf]
    %v188 = vld [vmem:[#allocation8 + $0x10] sm:$0xf]
    %v189 = vld [vmem:[#allocation8 + $0x14] sm:$0xf]
    %v190 = vld [vmem:[#allocation8 + $0x18] sm:$0xf]
    %v191 = vld [vmem:[#allocation8 + $0x1c] sm:$0xf]
    %v192 = vld [vmem:[#allocation8 + $0x20] sm:$0xf]
    %v193 = vld [vmem:[#allocation8 + $0x24] sm:$0xf]
    %v194 = vld [vmem:[#allocation8 + $0x28] sm:$0xf]
    %v195 = vld [vmem:[#allocation8 + $0x2c] sm:$0xf]
    %v196 = vld [vmem:[#allocation8 + $0x30] sm:$0xf]
    %v197 = vld [vmem:[#allocation8 + $0x34] sm:$0xf]
    %v198 = vld [vmem:[#allocation8 + $0x38] sm:$0xf]
    %v199 = vld [vmem:[#allocation8 + $0x3c] sm:$0xf]
    %v200 = vld [vmem:[#allocation8 + $0x40] sm:$0xf]
    %v201 = vld [vmem:[#allocation8 + $0x44] sm:$0xf]
    %v202 = vld [vmem:[#allocation8 + $0x48] sm:$0xf]
    %v203 = vld [vmem:[#allocation8 + $0x4c] sm:$0xf]
    %v204 = vld [vmem:[#allocation8 + $0x50] sm:$0xf]
    %v205 = vld [vmem:[#allocation8 + $0x54] sm:$0xf]
    %v206 = vld [vmem:[#allocation8 + $0x58] sm:$0xf]
    %v207 = vld [vmem:[#allocation8 + $0x5c] sm:$0xf]
    %v208 = vld [vmem:[#allocation8 + $0x60] sm:$0xf]
    %v209 = vld [vmem:[#allocation8 + $0x64] sm:$0xf]
    %v210 = vld [vmem:[#allocation8 + $0x68] sm:$0xf]
    %v211 = vld [vmem:[#allocation8 + $0x6c] sm:$0xf]
    %v212 = vld [vmem:[#allocation8 + $0x70] sm:$0xf]
    %v213 = vld [vmem:[#allocation8 + $0x74] sm:$0xf]
    %v214 = vld [vmem:[#allocation8 + $0x78] sm:$0xf]
    %v215 = vld [vmem:[#allocation8 + $0x7c] sm:$0xf]
    %v216 = vld [vmem:[#allocation8 + $0x80] sm:$0xf]
    %v217 = vld [vmem:[#allocation8 + $0x84] sm:$0xf]
    %v218 = vld [vmem:[#allocation8 + $0x88] sm:$0xf]
    %v219 = vld [vmem:[#allocation8 + $0x8c] sm:$0xf]
    %v220 = vld [vmem:[#allocation8 + $0x90] sm:$0xf]
    %v221 = vld [vmem:[#allocation8 + $0x94] sm:$0xf]
    %v222 = vld [vmem:[#allocation8 + $0x98] sm:$0xf]
    %v223 = vld [vmem:[#allocation8 + $0x9c] sm:$0xf]
    %v224 = vld [vmem:[#allocation8 + $0xa0] sm:$0xf]
    %v225 = vld [vmem:[#allocation8 + $0xa4] sm:$0xf]
    %v226 = vld [vmem:[#allocation8 + $0xa8] sm:$0xf]
    %v227 = vld [vmem:[#allocation8 + $0xac] sm:$0xf]
    %v228 = vld [vmem:[#allocation8 + $0xb0] sm:$0xf]
    %v229 = vld [vmem:[#allocation8 + $0xb4] sm:$0xf]
    %v230 = vld [vmem:[#allocation8 + $0xb8] sm:$0xf]
    %v231 = vld [vmem:[#allocation8 + $0xbc] sm:$0xf]
    %v232 = vld [vmem:[#allocation8 + $0xc0] sm:$0xf]
    %v233 = vld [vmem:[#allocation8 + $0xc4] sm:$0xf]
    %v234 = vld [vmem:[#allocation8 + $0xc8] sm:$0xf]
    %v235 = vld [vmem:[#allocation8 + $0xcc] sm:$0xf]
    %v236 = vld [vmem:[#allocation8 + $0xd0] sm:$0xf]
    %v237 = vld [vmem:[#allocation8 + $0xd4] sm:$0xf]
    %v238 = vld [vmem:[#allocation8 + $0xd8] sm:$0xf]
    %v239 = vld [vmem:[#allocation8 + $0xdc] sm:$0xf]
    %v240 = vld [vmem:[#allocation8 + $0xe0] sm:$0xf]
    %v241 = vld [vmem:[#allocation8 + $0xe4] sm:$0xf]
    %v242 = vld [vmem:[#allocation8 + $0xe8] sm:$0xf]
    %v243 = vld [vmem:[#allocation8 + $0xec] sm:$0xf]
    %v244 = vld [vmem:[#allocation8 + $0xf0] sm:$0xf]
    %v245 = vld [vmem:[#allocation8 + $0xf4] sm:$0xf]
    %v246 = vld [vmem:[#allocation8 + $0xf8] sm:$0xf]
    %v247 = vld [vmem:[#allocation8 + $0xfc] sm:$0xf]
    %v248 = vld [vmem:[#allocation8 + $0x100] sm:$0xf]
    %v249 = vld [vmem:[#allocation8 + $0x104] sm:$0xf]
    %v250 = vld [vmem:[#allocation8 + $0x108] sm:$0xf]
    %v251 = vld [vmem:[#allocation8 + $0x10c] sm:$0xf]
    %v252 = vld [vmem:[#allocation8 + $0x110] sm:$0xf]
    %v253 = vld [vmem:[#allocation8 + $0x114] sm:$0xf]
    %v254 = vld [vmem:[#allocation8 + $0x118] sm:$0xf]
    %v255 = vld [vmem:[#allocation8 + $0x11c] sm:$0xf]
    %v256 = vld [vmem:[#allocation8 + $0x120] sm:$0xf]
    %v257 = vld [vmem:[#allocation8 + $0x124] sm:$0xf]
    %v258 = vld [vmem:[#allocation8 + $0x128] sm:$0xf]
    %v259 = vld [vmem:[#allocation8 + $0x12c] sm:$0xf]
    %v260 = vld [vmem:[#allocation8 + $0x130] sm:$0xf]
    %v261 = vld [vmem:[#allocation8 + $0x134] sm:$0xf]
    %v262 = vld [vmem:[#allocation8 + $0x138] sm:$0xf]
    %v263 = vld [vmem:[#allocation8 + $0x13c] sm:$0xf]
    %v264 = vld [vmem:[#allocation8 + $0x140] sm:$0xf]
    %v265 = vld [vmem:[#allocation8 + $0x144] sm:$0xf]
    %v266 = vld [vmem:[#allocation8 + $0x148] sm:$0xf]
    %v267 = vld [vmem:[#allocation8 + $0x14c] sm:$0xf]
    %v268 = vld [vmem:[#allocation8 + $0x150] sm:$0xf]
    %v269 = vld [vmem:[#allocation8 + $0x154] sm:$0xf]
    %v270 = vld [vmem:[#allocation8 + $0x158] sm:$0xf]
    %v271 = vld [vmem:[#allocation8 + $0x15c] sm:$0xf]
    %v272 = vld [vmem:[#allocation8 + $0x160] sm:$0xf]
    %v273 = vld [vmem:[#allocation8 + $0x164] sm:$0xf]
    %v274 = vld [vmem:[#allocation8 + $0x168] sm:$0xf]
    %v275 = vld [vmem:[#allocation8 + $0x16c] sm:$0xf]
    %v276 = vld [vmem:[#allocation8 + $0x170] sm:$0xf]
    %v277 = vld [vmem:[#allocation8 + $0x174] sm:$0xf]
    %v278 = vld [vmem:[#allocation8 + $0x178] sm:$0xf]
    %v279 = vld [vmem:[#allocation8 + $0x17c] sm:$0xf]
    %v280 = vld [vmem:[#allocation8 + $0x180] sm:$0xf]
    %v281 = vld [vmem:[#allocation8 + $0x184] sm:$0xf]
    %v282 = vld [vmem:[#allocation8 + $0x188] sm:$0xf]
    %v283 = vld [vmem:[#allocation8 + $0x18c] sm:$0xf]
    %v284 = vld [vmem:[#allocation8 + $0x190] sm:$0xf]
    %v285 = vld [vmem:[#allocation8 + $0x194] sm:$0xf]
    %v286 = vld [vmem:[#allocation8 + $0x198] sm:$0xf]
    %v287 = vld [vmem:[#allocation8 + $0x19c] sm:$0xf]
    %v288 = vld [vmem:[#allocation8 + $0x1a0] sm:$0xf]
    %v289 = vld [vmem:[#allocation8 + $0x1a4] sm:$0xf]
    %v290 = vld [vmem:[#allocation8 + $0x1a8] sm:$0xf]
    %v291 = vld [vmem:[#allocation8 + $0x1ac] sm:$0xf]
    %v292 = vld [vmem:[#allocation8 + $0x1b0] sm:$0xf]
    %v293 = vld [vmem:[#allocation8 + $0x1b4] sm:$0xf]
    %v294 = vld [vmem:[#allocation8 + $0x1b8] sm:$0xf]
    %v295 = vld [vmem:[#allocation8 + $0x1bc] sm:$0xf]
    %v296 = vld [vmem:[#allocation8 + $0x1c0] sm:$0xf]
    %v297 = vld [vmem:[#allocation8 + $0x1c4] sm:$0xf]
    %v298 = vld [vmem:[#allocation8 + $0x1c8] sm:$0xf]
    %v299 = vld [vmem:[#allocation8 + $0x1cc] sm:$0xf]
    %v300 = vld [vmem:[#allocation8 + $0x1d0] sm:$0xf]
    %v301 = vld [vmem:[#allocation8 + $0x1d4] sm:$0xf]
    %v302 = vld [vmem:[#allocation8 + $0x1d8] sm:$0xf]
    %v303 = vld [vmem:[#allocation8 + $0x1dc] sm:$0xf]
    %v304 = vld [vmem:[#allocation8 + $0x1e0] sm:$0xf]
    %v305 = vld [vmem:[#allocation8 + $0x1e4] sm:$0xf]
    %v306 = vld [vmem:[#allocation8 + $0x1e8] sm:$0xf]
    %v307 = vld [vmem:[#allocation8 + $0x1ec] sm:$0xf]
    %v308 = vld [vmem:[#allocation8 + $0x1f0] sm:$0xf]
    %v309 = vld [vmem:[#allocation8 + $0x1f4] sm:$0xf]
    %v310 = vld [vmem:[#allocation8 + $0x1f8] sm:$0xf]
    %v311 = vld [vmem:[#allocation8 + $0x1fc] sm:$0xf]
    %v312 = vld [vmem:[#allocation8 + $0x200] sm:$0xf]
    %v313 = vld [vmem:[#allocation8 + $0x204] sm:$0xf]
    %v314 = vld [vmem:[#allocation8 + $0x208] sm:$0xf]
    %v315 = vld [vmem:[#allocation8 + $0x20c] sm:$0xf]
    %v316 = vld [vmem:[#allocation8 + $0x210] sm:$0xf]
    %v317 = vld [vmem:[#allocation8 + $0x214] sm:$0xf]
    %v318 = vld [vmem:[#allocation8 + $0x218] sm:$0xf]
    %v319 = vld [vmem:[#allocation8 + $0x21c] sm:$0xf]
    %v320 = vld [vmem:[#allocation8 + $0x220] sm:$0xf]
    %v321 = vld [vmem:[#allocation8 + $0x224] sm:$0xf]
    %v322 = vld [vmem:[#allocation8 + $0x228] sm:$0xf]
    %v323 = vld [vmem:[#allocation8 + $0x22c] sm:$0xf]
    %v324 = vld [vmem:[#allocation8 + $0x230] sm:$0xf]
    %v325 = vld [vmem:[#allocation8 + $0x234] sm:$0xf]
    %v326 = vld [vmem:[#allocation8 + $0x238] sm:$0xf]
    %v327 = vld [vmem:[#allocation8 + $0x23c] sm:$0xf]
    %v328 = vld [vmem:[#allocation8 + $0x240] sm:$0xf]
    %v329 = vld [vmem:[#allocation8 + $0x244] sm:$0xf]
    %v330 = vld [vmem:[#allocation8 + $0x248] sm:$0xf]
    %v331 = vld [vmem:[#allocation8 + $0x24c] sm:$0xf]
    %v332 = vld [vmem:[#allocation8 + $0x250] sm:$0xf]
    %v333 = vld [vmem:[#allocation8 + $0x254] sm:$0xf]
    %v334 = vld [vmem:[#allocation8 + $0x258] sm:$0xf]
    %v335 = vld [vmem:[#allocation8 + $0x25c] sm:$0xf]
    %v336 = vld [vmem:[#allocation8 + $0x260] sm:$0xf]
    %v337 = vld [vmem:[#allocation8 + $0x264] sm:$0xf]
    %v338 = vld [vmem:[#allocation8 + $0x268] sm:$0xf]
    %v339 = vld [vmem:[#allocation8 + $0x26c] sm:$0xf]
    %v340 = vld [vmem:[#allocation8 + $0x270] sm:$0xf]
    %v341 = vld [vmem:[#allocation8 + $0x274] sm:$0xf]
    %v342 = vld [vmem:[#allocation8 + $0x278] sm:$0xf]
    %v343 = vld [vmem:[#allocation8 + $0x27c] sm:$0xf]
    %v344 = vld [vmem:[#allocation8 + $0x280] sm:$0xf]
    %v345 = vld [vmem:[#allocation8 + $0x284] sm:$0xf]
    %v346 = vld [vmem:[#allocation8 + $0x288] sm:$0xf]
    %v347 = vld [vmem:[#allocation8 + $0x28c] sm:$0xf]
    %v348 = vld [vmem:[#allocation8 + $0x290] sm:$0xf]
    %v349 = vld [vmem:[#allocation8 + $0x294] sm:$0xf]
    %v350 = vld [vmem:[#allocation8 + $0x298] sm:$0xf]
    %v351 = vld [vmem:[#allocation8 + $0x29c] sm:$0xf]
    %v352 = vld [vmem:[#allocation8 + $0x2a0] sm:$0xf]
    %v353 = vld [vmem:[#allocation8 + $0x2a4] sm:$0xf]
    %v354 = vld [vmem:[#allocation8 + $0x2a8] sm:$0xf]
    %v355 = vld [vmem:[#allocation8 + $0x2ac] sm:$0xf]
    %v356 = vld [vmem:[#allocation8 + $0x2b0] sm:$0xf]
    %v357 = vld [vmem:[#allocation8 + $0x2b4] sm:$0xf]
    %v358 = vld [vmem:[#allocation8 + $0x2b8] sm:$0xf]
    %v359 = vld [vmem:[#allocation8 + $0x2bc] sm:$0xf]
    %v360 = vld [vmem:[#allocation8 + $0x2c0] sm:$0xf]
    %v361 = vld [vmem:[#allocation8 + $0x2c4] sm:$0xf]
    %v362 = vld [vmem:[#allocation8 + $0x2c8] sm:$0xf]
    %v363 = vld [vmem:[#allocation8 + $0x2cc] sm:$0xf]
    %v364 = vld [vmem:[#allocation8 + $0x2d0] sm:$0xf]
    %v365 = vld [vmem:[#allocation8 + $0x2d4] sm:$0xf]
    %v366 = vld [vmem:[#allocation8 + $0x2d8] sm:$0xf]
    %v367 = vld [vmem:[#allocation8 + $0x2dc] sm:$0xf]
    %v368 = vld [vmem:[#allocation8 + $0x2e0] sm:$0xf]
    %v369 = vld [vmem:[#allocation8 + $0x2e4] sm:$0xf]
    %v370 = vld [vmem:[#allocation8 + $0x2e8] sm:$0xf]
    %v371 = vld [vmem:[#allocation8 + $0x2ec] sm:$0xf]
    %v372 = vld [vmem:[#allocation8 + $0x2f0] sm:$0xf]
    %v373 = vld [vmem:[#allocation8 + $0x2f4] sm:$0xf]
    %v374 = vld [vmem:[#allocation8 + $0x2f8] sm:$0xf]
    %v375 = vld [vmem:[#allocation8 + $0x2fc] sm:$0xf]
    %v376 = vld [vmem:[#allocation8 + $0x300] sm:$0xf]
    %v377 = vld [vmem:[#allocation8 + $0x304] sm:$0xf]
    %v378 = vld [vmem:[#allocation8 + $0x308] sm:$0xf]
    %v379 = vld [vmem:[#allocation8 + $0x30c] sm:$0xf]
    %v380 = vld [vmem:[#allocation8 + $0x310] sm:$0xf]
    %v381 = vld [vmem:[#allocation8 + $0x314] sm:$0xf]
    %v382 = vld [vmem:[#allocation8 + $0x318] sm:$0xf]
    %v383 = vld [vmem:[#allocation8 + $0x31c] sm:$0xf]
    %v384 = vld [vmem:[#allocation8 + $0x320] sm:$0xf]
    %v385 = vld [vmem:[#allocation8 + $0x324] sm:$0xf]
    %v386 = vld [vmem:[#allocation8 + $0x328] sm:$0xf]
    %v387 = vld [vmem:[#allocation8 + $0x32c] sm:$0xf]
    %v388 = vld [vmem:[#allocation8 + $0x330] sm:$0xf]
    %v389 = vld [vmem:[#allocation8 + $0x334] sm:$0xf]
    %v390 = vld [vmem:[#allocation8 + $0x338] sm:$0xf]
    %v391 = vld [vmem:[#allocation8 + $0x33c] sm:$0xf]
    %v392 = vld [vmem:[#allocation8 + $0x340] sm:$0xf]
    %v393 = vld [vmem:[#allocation8 + $0x344] sm:$0xf]
    %v394 = vld [vmem:[#allocation8 + $0x348] sm:$0xf]
    %v395 = vld [vmem:[#allocation8 + $0x34c] sm:$0xf]
    %v396 = vld [vmem:[#allocation8 + $0x350] sm:$0xf]
    %v397 = vld [vmem:[#allocation8 + $0x354] sm:$0xf]
    %v398 = vld [vmem:[#allocation8 + $0x358] sm:$0xf]
    %v399 = vld [vmem:[#allocation8 + $0x35c] sm:$0xf]
    %v400 = vld [vmem:[#allocation8 + $0x360] sm:$0xf]
    %v401 = vld [vmem:[#allocation8 + $0x364] sm:$0xf]
    %v402 = vld [vmem:[#allocation8 + $0x368] sm:$0xf]
    %v403 = vld [vmem:[#allocation8 + $0x36c] sm:$0xf]
    %v404 = vld [vmem:[#allocation8 + $0x370] sm:$0xf]
    %v405 = vld [vmem:[#allocation8 + $0x374] sm:$0xf]
    %v406 = vld [vmem:[#allocation8 + $0x378] sm:$0xf]
    %v407 = vld [vmem:[#allocation8 + $0x37c] sm:$0xf]
    %v408 = vld [vmem:[#allocation8 + $0x380] sm:$0xf]
    %v409 = vld [vmem:[#allocation8 + $0x384] sm:$0xf]
    %v410 = vld [vmem:[#allocation8 + $0x388] sm:$0xf]
    %v411 = vld [vmem:[#allocation8 + $0x38c] sm:$0xf]
    %v412 = vld [vmem:[#allocation8 + $0x390] sm:$0xf]
    %v413 = vld [vmem:[#allocation8 + $0x394] sm:$0xf]
    %v414 = vld [vmem:[#allocation8 + $0x398] sm:$0xf]
    %v415 = vld [vmem:[#allocation8 + $0x39c] sm:$0xf]
    %v416 = vld [vmem:[#allocation8 + $0x3a0] sm:$0xf]
    %v417 = vld [vmem:[#allocation8 + $0x3a4] sm:$0xf]
    %v418 = vld [vmem:[#allocation8 + $0x3a8] sm:$0xf]
    %v419 = vld [vmem:[#allocation8 + $0x3ac] sm:$0xf]
    %v420 = vld [vmem:[#allocation8 + $0x3b0] sm:$0xf]
    %v421 = vld [vmem:[#allocation8 + $0x3b4] sm:$0xf]
    %v422 = vld [vmem:[#allocation8 + $0x3b8] sm:$0xf]
    %v423 = vld [vmem:[#allocation8 + $0x3bc] sm:$0xf]
    %v424 = vld [vmem:[#allocation8 + $0x3c0] sm:$0xf]
    %v425 = vld [vmem:[#allocation8 + $0x3c4] sm:$0xf]
    %v426 = vld [vmem:[#allocation8 + $0x3c8] sm:$0xf]
    %v427 = vld [vmem:[#allocation8 + $0x3cc] sm:$0xf]
    %v428 = vld [vmem:[#allocation8 + $0x3d0] sm:$0xf]
    %v429 = vld [vmem:[#allocation8 + $0x3d4] sm:$0xf]
    %v430 = vld [vmem:[#allocation8 + $0x3d8] sm:$0xf]
    %v431 = vld [vmem:[#allocation8 + $0x3dc] sm:$0xf]
    %v432 = vld [vmem:[#allocation8 + $0x3e0] sm:$0xf]
    %v433 = vld [vmem:[#allocation8 + $0x3e4] sm:$0xf]
    %v434 = vld [vmem:[#allocation8 + $0x3e8] sm:$0xf]
    %v435 = vld [vmem:[#allocation8 + $0x3ec] sm:$0xf]
    %v436 = vld [vmem:[#allocation8 + $0x3f0] sm:$0xf]
    %v437 = vld [vmem:[#allocation8 + $0x3f4] sm:$0xf]
    %v438 = vld [vmem:[#allocation8 + $0x3f8] sm:$0xf]
    %v439 = vld [vmem:[#allocation8 + $0x3fc] sm:$0xf]
    %v440 = vld [vmem:[#allocation8 + $0x400] sm:$0xf]
    %v441 = vld [vmem:[#allocation8 + $0x404] sm:$0xf]
    %v442 = vld [vmem:[#allocation8 + $0x408] sm:$0xf]
    %v443 = vld [vmem:[#allocation8 + $0x40c] sm:$0xf]
    %v444 = vld [vmem:[#allocation8 + $0x410] sm:$0xf]
    %v445 = vld [vmem:[#allocation8 + $0x414] sm:$0xf]
    %v446 = vld [vmem:[#allocation8 + $0x418] sm:$0xf]
    %v447 = vld [vmem:[#allocation8 + $0x41c] sm:$0xf]
    %v448 = vld [vmem:[#allocation8 + $0x420] sm:$0xf]
    %v449 = vld [vmem:[#allocation8 + $0x424] sm:$0xf]
    %v450 = vld [vmem:[#allocation8 + $0x428] sm:$0xf]
    %v451 = vld [vmem:[#allocation8 + $0x42c] sm:$0xf]
    %v452 = vld [vmem:[#allocation8 + $0x430] sm:$0xf]
    %v453 = vld [vmem:[#allocation8 + $0x434] sm:$0xf]
    %v454 = vld [vmem:[#allocation8 + $0x438] sm:$0xf]
    %v455 = vld [vmem:[#allocation8 + $0x43c] sm:$0xf]
    %v456 = vld [vmem:[#allocation8 + $0x440] sm:$0xf]
    %v457 = vld [vmem:[#allocation8 + $0x444] sm:$0xf]
    %v458 = vld [vmem:[#allocation8 + $0x448] sm:$0xf]
    %v459 = vld [vmem:[#allocation8 + $0x44c] sm:$0xf]
    %v460 = vld [vmem:[#allocation8 + $0x450] sm:$0xf]
    %v461 = vld [vmem:[#allocation8 + $0x454] sm:$0xf]
    %v462 = vld [vmem:[#allocation8 + $0x458] sm:$0xf]
    %v463 = vld [vmem:[#allocation8 + $0x45c] sm:$0xf]
    %v464 = vld [vmem:[#allocation8 + $0x460] sm:$0xf]
    %v465 = vld [vmem:[#allocation8 + $0x464] sm:$0xf]
    %v466 = vld [vmem:[#allocation8 + $0x468] sm:$0xf]
    %v467 = vld [vmem:[#allocation8 + $0x46c] sm:$0xf]
    %v468 = vld [vmem:[#allocation8 + $0x470] sm:$0xf]
    %v469 = vld [vmem:[#allocation8 + $0x474] sm:$0xf]
    %v470 = vld [vmem:[#allocation8 + $0x478] sm:$0xf]
    %v471 = vld [vmem:[#allocation8 + $0x47c] sm:$0xf]
    %v472 = vld [vmem:[#allocation8 + $0x480] sm:$0xf]
    %v473 = vld [vmem:[#allocation8 + $0x484] sm:$0xf]
    %v474 = vld [vmem:[#allocation8 + $0x488] sm:$0xf]
    %v475 = vld [vmem:[#allocation8 + $0x48c] sm:$0xf]
    %v476 = vld [vmem:[#allocation8 + $0x490] sm:$0xf]
    %v477 = vld [vmem:[#allocation8 + $0x494] sm:$0xf]
    %v478 = vld [vmem:[#allocation8 + $0x498] sm:$0xf]
    %v479 = vld [vmem:[#allocation8 + $0x49c] sm:$0xf]
    %v480 = vld [vmem:[#allocation8 + $0x4a0] sm:$0xf]
    %v481 = vld [vmem:[#allocation8 + $0x4a4] sm:$0xf]
    %v482 = vld [vmem:[#allocation8 + $0x4a8] sm:$0xf]
    %v483 = vld [vmem:[#allocation8 + $0x4ac] sm:$0xf]
    %v484 = vld [vmem:[#allocation8 + $0x4b0] sm:$0xf]
    %v485 = vld [vmem:[#allocation8 + $0x4b4] sm:$0xf]
    %v486 = vld [vmem:[#allocation8 + $0x4b8] sm:$0xf]
    %v487 = vld [vmem:[#allocation8 + $0x4bc] sm:$0xf]
    %v488 = vld [vmem:[#allocation8 + $0x4c0] sm:$0xf]
    %v489 = vld [vmem:[#allocation8 + $0x4c4] sm:$0xf]
    %v490 = vld [vmem:[#allocation8 + $0x4c8] sm:$0xf]
    %v491 = vld [vmem:[#allocation8 + $0x4cc] sm:$0xf]
    %v492 = vld [vmem:[#allocation8 + $0x4d0] sm:$0xf]
    %v493 = vld [vmem:[#allocation8 + $0x4d4] sm:$0xf]
    %v494 = vld [vmem:[#allocation8 + $0x4d8] sm:$0xf]
    %v495 = vld [vmem:[#allocation8 + $0x4dc] sm:$0xf]
    %v496 = vld [vmem:[#allocation8 + $0x4e0] sm:$0xf]
    %v497 = vld [vmem:[#allocation8 + $0x4e4] sm:$0xf]
    %v498 = vld [vmem:[#allocation8 + $0x4e8] sm:$0xf]
    %v499 = vld [vmem:[#allocation8 + $0x4ec] sm:$0xf]
    %v500 = vld [vmem:[#allocation8 + $0x4f0] sm:$0xf]
    %v501 = vld [vmem:[#allocation8 + $0x4f4] sm:$0xf]
    %v502 = vld [vmem:[#allocation8 + $0x4f8] sm:$0xf]
    %v503 = vld [vmem:[#allocation8 + $0x4fc] sm:$0xf]
    %v504 = vld [vmem:[#allocation8 + $0x500] sm:$0xf]
    %v505 = vld [vmem:[#allocation8 + $0x504] sm:$0xf]
    %v506 = vld [vmem:[#allocation8 + $0x508] sm:$0xf]
    %v507 = vld [vmem:[#allocation8 + $0x50c] sm:$0xf]
    %v508 = vld [vmem:[#allocation8 + $0x510] sm:$0xf]
    %v509 = vld [vmem:[#allocation8 + $0x514] sm:$0xf]
    %v510 = vld [vmem:[#allocation8 + $0x518] sm:$0xf]
    %v511 = vld [vmem:[#allocation8 + $0x51c] sm:$0xf]
    %v512 = vld [vmem:[#allocation8 + $0x520] sm:$0xf]
    %v513 = vld [vmem:[#allocation8 + $0x524] sm:$0xf]
    %v514 = vld [vmem:[#allocation8 + $0x528] sm:$0xf]
    %v515 = vld [vmem:[#allocation8 + $0x52c] sm:$0xf]
    %v516 = vld [vmem:[#allocation8 + $0x530] sm:$0xf]
    %v517 = vld [vmem:[#allocation8 + $0x534] sm:$0xf]
    %v518 = vld [vmem:[#allocation8 + $0x538] sm:$0xf]
    %v519 = vld [vmem:[#allocation8 + $0x53c] sm:$0xf]
    %v520 = vld [vmem:[#allocation8 + $0x540] sm:$0xf]
    %v521 = vld [vmem:[#allocation8 + $0x544] sm:$0xf]
    %v522 = vld [vmem:[#allocation8 + $0x548] sm:$0xf]
    %v523 = vld [vmem:[#allocation8 + $0x54c] sm:$0xf]
    %v524 = vld [vmem:[#allocation8 + $0x550] sm:$0xf]
    %v525 = vld [vmem:[#allocation8 + $0x554] sm:$0xf]
    %v526 = vld [vmem:[#allocation8 + $0x558] sm:$0xf]
    %v527 = vld [vmem:[#allocation8 + $0x55c] sm:$0xf]
    %v528 = vld [vmem:[#allocation8 + $0x560] sm:$0xf]
    %v529 = vld [vmem:[#allocation8 + $0x564] sm:$0xf]
    %v530 = vld [vmem:[#allocation8 + $0x568] sm:$0xf]
    %v531 = vld [vmem:[#allocation8 + $0x56c] sm:$0xf]
    %v532 = vld [vmem:[#allocation8 + $0x570] sm:$0xf]
    %v533 = vld [vmem:[#allocation8 + $0x574] sm:$0xf]
    %v534 = vld [vmem:[#allocation8 + $0x578] sm:$0xf]
    %v535 = vld [vmem:[#allocation8 + $0x57c] sm:$0xf]
    %v536 = vld [vmem:[#allocation8 + $0x580] sm:$0xf]
    %v537 = vld [vmem:[#allocation8 + $0x584] sm:$0xf]
    %v538 = vld [vmem:[#allocation8 + $0x588] sm:$0xf]
    %v539 = vld [vmem:[#allocation8 + $0x58c] sm:$0xf]
    %v540 = vld [vmem:[#allocation8 + $0x590] sm:$0xf]
    %v541 = vld [vmem:[#allocation8 + $0x594] sm:$0xf]
    %v542 = vld [vmem:[#allocation8 + $0x598] sm:$0xf]
    %v543 = vld [vmem:[#allocation8 + $0x59c] sm:$0xf]
    %v544 = vld [vmem:[#allocation8 + $0x5a0] sm:$0xf]
    %v545 = vld [vmem:[#allocation8 + $0x5a4] sm:$0xf]
    %v546 = vld [vmem:[#allocation8 + $0x5a8] sm:$0xf]
    %v547 = vld [vmem:[#allocation8 + $0x5ac] sm:$0xf]
    %v548 = vld [vmem:[#allocation8 + $0x5b0] sm:$0xf]
    %v549 = vld [vmem:[#allocation8 + $0x5b4] sm:$0xf]
    %v550 = vld [vmem:[#allocation8 + $0x5b8] sm:$0xf]
    %v551 = vld [vmem:[#allocation8 + $0x5bc] sm:$0xf]
    %v552 = vld [vmem:[#allocation8 + $0x5c0] sm:$0xf]
    %v553 = vld [vmem:[#allocation8 + $0x5c4] sm:$0xf]
    %v554 = vld [vmem:[#allocation8 + $0x5c8] sm:$0xf]
    %v555 = vld [vmem:[#allocation8 + $0x5cc] sm:$0xf]
    %v556 = vld [vmem:[#allocation8 + $0x5d0] sm:$0xf]
    %v557 = vld [vmem:[#allocation8 + $0x5d4] sm:$0xf]
    %v558 = vld [vmem:[#allocation8 + $0x5d8] sm:$0xf]
    %v559 = vld [vmem:[#allocation8 + $0x5dc] sm:$0xf]
    %v560 = vld [vmem:[#allocation8 + $0x5e0] sm:$0xf]
    %v561 = vld [vmem:[#allocation8 + $0x5e4] sm:$0xf]
    %v562 = vld [vmem:[#allocation8 + $0x5e8] sm:$0xf]
    %v563 = vld [vmem:[#allocation8 + $0x5ec] sm:$0xf]
    %v564 = vld [vmem:[#allocation8 + $0x5f0] sm:$0xf]
    %v565 = vld [vmem:[#allocation8 + $0x5f4] sm:$0xf]
    %v566 = vld [vmem:[#allocation8 + $0x5f8] sm:$0xf]
    %v567 = vld [vmem:[#allocation8 + $0x5fc] sm:$0xf]
    %v568 = vld [vmem:[#allocation8 + $0x600] sm:$0xf]
    %v569 = vld [vmem:[#allocation8 + $0x604] sm:$0xf]
    %v570 = vld [vmem:[#allocation8 + $0x608] sm:$0xf]
    %v571 = vld [vmem:[#allocation8 + $0x60c] sm:$0xf]
    %v572 = vld [vmem:[#allocation8 + $0x610] sm:$0xf]
    %v573 = vld [vmem:[#allocation8 + $0x614] sm:$0xf]
    %v574 = vld [vmem:[#allocation8 + $0x618] sm:$0xf]
    %v575 = vld [vmem:[#allocation8 + $0x61c] sm:$0xf]
    %v576 = vld [vmem:[#allocation8 + $0x620] sm:$0xf]
    %v577 = vld [vmem:[#allocation8 + $0x624] sm:$0xf]
    %v578 = vld [vmem:[#allocation8 + $0x628] sm:$0xf]
    %v579 = vld [vmem:[#allocation8 + $0x62c] sm:$0xf]
    %v580 = vld [vmem:[#allocation8 + $0x630] sm:$0xf]
    %v581 = vld [vmem:[#allocation8 + $0x634] sm:$0xf]
    %v582 = vld [vmem:[#allocation8 + $0x638] sm:$0xf]
    %v583 = vld [vmem:[#allocation8 + $0x63c] sm:$0xf]
    %v584 = vld [vmem:[#allocation8 + $0x640] sm:$0xf]
    %v585 = vld [vmem:[#allocation8 + $0x644] sm:$0xf]
    %v586 = vld [vmem:[#allocation8 + $0x648] sm:$0xf]
    %v587 = vld [vmem:[#allocation8 + $0x64c] sm:$0xf]
    %v588 = vld [vmem:[#allocation8 + $0x650] sm:$0xf]
    %v589 = vld [vmem:[#allocation8 + $0x654] sm:$0xf]
    %v590 = vld [vmem:[#allocation8 + $0x658] sm:$0xf]
    %v591 = vld [vmem:[#allocation8 + $0x65c] sm:$0xf]
    %v592 = vld [vmem:[#allocation8 + $0x660] sm:$0xf]
    %v593 = vld [vmem:[#allocation8 + $0x664] sm:$0xf]
    %v594 = vld [vmem:[#allocation8 + $0x668] sm:$0xf]
    %v595 = vld [vmem:[#allocation8 + $0x66c] sm:$0xf]
    %v596 = vld [vmem:[#allocation8 + $0x670] sm:$0xf]
    %v597 = vld [vmem:[#allocation8 + $0x674] sm:$0xf]
    %v598 = vld [vmem:[#allocation8 + $0x678] sm:$0xf]
    %v599 = vld [vmem:[#allocation8 + $0x67c] sm:$0xf]
    %v600 = vld [vmem:[#allocation8 + $0x680] sm:$0xf]
    %v601 = vld [vmem:[#allocation8 + $0x684] sm:$0xf]
    %v602 = vld [vmem:[#allocation8 + $0x688] sm:$0xf]
    %v603 = vld [vmem:[#allocation8 + $0x68c] sm:$0xf]
    %v604 = vld [vmem:[#allocation8 + $0x690] sm:$0xf]
    %v605 = vld [vmem:[#allocation8 + $0x694] sm:$0xf]
    %v606 = vld [vmem:[#allocation8 + $0x698] sm:$0xf]
    %v607 = vld [vmem:[#allocation8 + $0x69c] sm:$0xf]
    %v608 = vld [vmem:[#allocation8 + $0x6a0] sm:$0xf]
    %v609 = vld [vmem:[#allocation8 + $0x6a4] sm:$0xf]
    %v610 = vld [vmem:[#allocation8 + $0x6a8] sm:$0xf]
    %v611 = vld [vmem:[#allocation8 + $0x6ac] sm:$0xf]
    %v612 = vld [vmem:[#allocation8 + $0x6b0] sm:$0xf]
    %v613 = vld [vmem:[#allocation8 + $0x6b4] sm:$0xf]
    %v614 = vld [vmem:[#allocation8 + $0x6b8] sm:$0xf]
    %v615 = vld [vmem:[#allocation8 + $0x6bc] sm:$0xf]
    %v616 = vld [vmem:[#allocation8 + $0x6c0] sm:$0xf]
    %v617 = vld [vmem:[#allocation8 + $0x6c4] sm:$0xf]
    %v618 = vld [vmem:[#allocation8 + $0x6c8] sm:$0xf]
    %v619 = vld [vmem:[#allocation8 + $0x6cc] sm:$0xf]
    %v620 = vld [vmem:[#allocation8 + $0x6d0] sm:$0xf]
    %v621 = vld [vmem:[#allocation8 + $0x6d4] sm:$0xf]
    %v622 = vld [vmem:[#allocation8 + $0x6d8] sm:$0xf]
    %v623 = vld [vmem:[#allocation8 + $0x6dc] sm:$0xf]
    %v624 = vld [vmem:[#allocation8 + $0x6e0] sm:$0xf]
    %v625 = vld [vmem:[#allocation8 + $0x6e4] sm:$0xf]
    %v626 = vld [vmem:[#allocation8 + $0x6e8] sm:$0xf]
    %v627 = vld [vmem:[#allocation8 + $0x6ec] sm:$0xf]
    %v628 = vld [vmem:[#allocation8 + $0x6f0] sm:$0xf]
    %v629 = vld [vmem:[#allocation8 + $0x6f4] sm:$0xf]
    %v630 = vld [vmem:[#allocation8 + $0x6f8] sm:$0xf]
    %v631 = vld [vmem:[#allocation8 + $0x6fc] sm:$0xf]
    %v632 = vld [vmem:[#allocation8 + $0x700] sm:$0xf]
    %v633 = vld [vmem:[#allocation8 + $0x704] sm:$0xf]
    %v634 = vld [vmem:[#allocation8 + $0x708] sm:$0xf]
    %v635 = vld [vmem:[#allocation8 + $0x70c] sm:$0xf]
    %v636 = vld [vmem:[#allocation8 + $0x710] sm:$0xf]
    %v637 = vld [vmem:[#allocation8 + $0x714] sm:$0xf]
    %v638 = vld [vmem:[#allocation8 + $0x718] sm:$0xf]
    %v639 = vld [vmem:[#allocation8 + $0x71c] sm:$0xf]
    %v640 = vld [vmem:[#allocation8 + $0x720] sm:$0xf]
    %v641 = vld [vmem:[#allocation8 + $0x724] sm:$0xf]
    %v642 = vld [vmem:[#allocation8 + $0x728] sm:$0xf]
    %v643 = vld [vmem:[#allocation8 + $0x72c] sm:$0xf]
    %v644 = vld [vmem:[#allocation8 + $0x730] sm:$0xf]
    %v645 = vld [vmem:[#allocation8 + $0x734] sm:$0xf]
    %v646 = vld [vmem:[#allocation8 + $0x738] sm:$0xf]
    %v647 = vld [vmem:[#allocation8 + $0x73c] sm:$0xf]
    %v648 = vld [vmem:[#allocation8 + $0x740] sm:$0xf]
    %v649 = vld [vmem:[#allocation8 + $0x744] sm:$0xf]
    %v650 = vld [vmem:[#allocation8 + $0x748] sm:$0xf]
    %v651 = vld [vmem:[#allocation8 + $0x74c] sm:$0xf]
    %v652 = vld [vmem:[#allocation8 + $0x750] sm:$0xf]
    %v653 = vld [vmem:[#allocation8 + $0x754] sm:$0xf]
    %v654 = vld [vmem:[#allocation8 + $0x758] sm:$0xf]
    %v655 = vld [vmem:[#allocation8 + $0x75c] sm:$0xf]
    %v656 = vld [vmem:[#allocation8 + $0x760] sm:$0xf]
    %v657 = vld [vmem:[#allocation8 + $0x764] sm:$0xf]
    %v658 = vld [vmem:[#allocation8 + $0x768] sm:$0xf]
    %v659 = vld [vmem:[#allocation8 + $0x76c] sm:$0xf]
    %v660 = vld [vmem:[#allocation8 + $0x770] sm:$0xf]
    %v661 = vld [vmem:[#allocation8 + $0x774] sm:$0xf]
    %v662 = vld [vmem:[#allocation8 + $0x778] sm:$0xf]
    %v663 = vld [vmem:[#allocation8 + $0x77c] sm:$0xf]
    %v664 = vld [vmem:[#allocation8 + $0x780] sm:$0xf]
    %v665 = vld [vmem:[#allocation8 + $0x784] sm:$0xf]
    %v666 = vld [vmem:[#allocation8 + $0x788] sm:$0xf]
    %v667 = vld [vmem:[#allocation8 + $0x78c] sm:$0xf]
    %v668 = vld [vmem:[#allocation8 + $0x790] sm:$0xf]
    %v669 = vld [vmem:[#allocation8 + $0x794] sm:$0xf]
    %v670 = vld [vmem:[#allocation8 + $0x798] sm:$0xf]
    %v671 = vld [vmem:[#allocation8 + $0x79c] sm:$0xf]
    %v672 = vld [vmem:[#allocation8 + $0x7a0] sm:$0xf]
    %v673 = vld [vmem:[#allocation8 + $0x7a4] sm:$0xf]
    %v674 = vld [vmem:[#allocation8 + $0x7a8] sm:$0xf]
    %v675 = vld [vmem:[#allocation8 + $0x7ac] sm:$0xf]
    %v676 = vld [vmem:[#allocation8 + $0x7b0] sm:$0xf]
    %v677 = vld [vmem:[#allocation8 + $0x7b4] sm:$0xf]
    %v678 = vld [vmem:[#allocation8 + $0x7b8] sm:$0xf]
    %v679 = vld [vmem:[#allocation8 + $0x7bc] sm:$0xf]
    %v680 = vld [vmem:[#allocation8 + $0x7c0] sm:$0xf]
    %v681 = vld [vmem:[#allocation8 + $0x7c4] sm:$0xf]
    %v682 = vld [vmem:[#allocation8 + $0x7c8] sm:$0xf]
    %v683 = vld [vmem:[#allocation8 + $0x7cc] sm:$0xf]
    %v684 = vld [vmem:[#allocation8 + $0x7d0] sm:$0xf]
    %v685 = vld [vmem:[#allocation8 + $0x7d4] sm:$0xf]
    %v686 = vld [vmem:[#allocation8 + $0x7d8] sm:$0xf]
    %v687 = vld [vmem:[#allocation8 + $0x7dc] sm:$0xf]
    %v688 = vld [vmem:[#allocation8 + $0x7e0] sm:$0xf]
    %v689 = vld [vmem:[#allocation8 + $0x7e4] sm:$0xf]
    %v690 = vld [vmem:[#allocation8 + $0x7e8] sm:$0xf]
    %v691 = vld [vmem:[#allocation8 + $0x7ec] sm:$0xf]
    %v692 = vld [vmem:[#allocation8 + $0x7f0] sm:$0xf]
    %v693 = vld [vmem:[#allocation8 + $0x7f4] sm:$0xf]
    %v694 = vld [vmem:[#allocation8 + $0x7f8] sm:$0xf]
    %v695 = vld [vmem:[#allocation8 + $0x7fc] sm:$0xf]
    %v696 = vld [vmem:[#allocation8 + $0x800] sm:$0xf]
    %v697 = vld [vmem:[#allocation8 + $0x804] sm:$0xf]
    %v698 = vld [vmem:[#allocation8 + $0x808] sm:$0xf]
    %v699 = vld [vmem:[#allocation8 + $0x80c] sm:$0xf]
    %v700 = vld [vmem:[#allocation8 + $0x810] sm:$0xf]
    %v701 = vld [vmem:[#allocation8 + $0x814] sm:$0xf]
    %v702 = vld [vmem:[#allocation8 + $0x818] sm:$0xf]
    %v703 = vld [vmem:[#allocation8 + $0x81c] sm:$0xf]
    %v704 = vld [vmem:[#allocation8 + $0x820] sm:$0xf]
    %v705 = vld [vmem:[#allocation8 + $0x824] sm:$0xf]
    %v706 = vld [vmem:[#allocation8 + $0x828] sm:$0xf]
    %v707 = vld [vmem:[#allocation8 + $0x82c] sm:$0xf]
    %v708 = vld [vmem:[#allocation8 + $0x830] sm:$0xf]
    %v709 = vld [vmem:[#allocation8 + $0x834] sm:$0xf]
    %v710 = vld [vmem:[#allocation8 + $0x838] sm:$0xf]
    %v711 = vld [vmem:[#allocation8 + $0x83c] sm:$0xf]
    %v712 = vld [vmem:[#allocation8 + $0x840] sm:$0xf]
    %v713 = vld [vmem:[#allocation8 + $0x844] sm:$0xf]
    %v714 = vld [vmem:[#allocation8 + $0x848] sm:$0xf]
    %v715 = vld [vmem:[#allocation8 + $0x84c] sm:$0xf]
    %v716 = vld [vmem:[#allocation8 + $0x850] sm:$0xf]
    %v717 = vld [vmem:[#allocation8 + $0x854] sm:$0xf]
    %v718 = vld [vmem:[#allocation8 + $0x858] sm:$0xf]
    %v719 = vld [vmem:[#allocation8 + $0x85c] sm:$0xf]
    %v720 = vld [vmem:[#allocation8 + $0x860] sm:$0xf]
    %v721 = vld [vmem:[#allocation8 + $0x864] sm:$0xf]
    %v722 = vld [vmem:[#allocation8 + $0x868] sm:$0xf]
    %v723 = vld [vmem:[#allocation8 + $0x86c] sm:$0xf]
    %v724 = vld [vmem:[#allocation8 + $0x870] sm:$0xf]
    %v725 = vld [vmem:[#allocation8 + $0x874] sm:$0xf]
    %v726 = vld [vmem:[#allocation8 + $0x878] sm:$0xf]
    %v727 = vld [vmem:[#allocation8 + $0x87c] sm:$0xf]
    %v728 = vld [vmem:[#allocation8 + $0x880] sm:$0xf]
    %v729 = vld [vmem:[#allocation8 + $0x884] sm:$0xf]
    %v730 = vld [vmem:[#allocation8 + $0x888] sm:$0xf]
    %v731 = vld [vmem:[#allocation8 + $0x88c] sm:$0xf]
    %v732 = vld [vmem:[#allocation8 + $0x890] sm:$0xf]
    %v733 = vld [vmem:[#allocation8 + $0x894] sm:$0xf]
    %v734 = vld [vmem:[#allocation8 + $0x898] sm:$0xf]
    %v735 = vld [vmem:[#allocation8 + $0x89c] sm:$0xf]
    %v736 = vld [vmem:[#allocation8 + $0x8a0] sm:$0xf]
    %v737 = vld [vmem:[#allocation8 + $0x8a4] sm:$0xf]
    %v738 = vld [vmem:[#allocation8 + $0x8a8] sm:$0xf]
    %v739 = vld [vmem:[#allocation8 + $0x8ac] sm:$0xf]
    %v740 = vld [vmem:[#allocation8 + $0x8b0] sm:$0xf]
    %v741 = vld [vmem:[#allocation8 + $0x8b4] sm:$0xf]
    %v742 = vld [vmem:[#allocation8 + $0x8b8] sm:$0xf]
    %v743 = vld [vmem:[#allocation8 + $0x8bc] sm:$0xf]
    %v744 = vld [vmem:[#allocation8 + $0x8c0] sm:$0xf]
    %v745 = vld [vmem:[#allocation8 + $0x8c4] sm:$0xf]
    %v746 = vld [vmem:[#allocation8 + $0x8c8] sm:$0xf]
    %v747 = vld [vmem:[#allocation8 + $0x8cc] sm:$0xf]
    %v748 = vld [vmem:[#allocation8 + $0x8d0] sm:$0xf]
    %v749 = vld [vmem:[#allocation8 + $0x8d4] sm:$0xf]
    %v750 = vld [vmem:[#allocation8 + $0x8d8] sm:$0xf]
    %v751 = vld [vmem:[#allocation8 + $0x8dc] sm:$0xf]
    %v752 = vld [vmem:[#allocation8 + $0x8e0] sm:$0xf]
    %v753 = vld [vmem:[#allocation8 + $0x8e4] sm:$0xf]
    %v754 = vld [vmem:[#allocation8 + $0x8e8] sm:$0xf]
    %v755 = vld [vmem:[#allocation8 + $0x8ec] sm:$0xf]
    %v756 = vld [vmem:[#allocation8 + $0x8f0] sm:$0xf]
    %v757 = vld [vmem:[#allocation8 + $0x8f4] sm:$0xf]
    %v758 = vld [vmem:[#allocation8 + $0x8f8] sm:$0xf]
    %v759 = vld [vmem:[#allocation8 + $0x8fc] sm:$0xf]
    %v760 = vld [vmem:[#allocation8 + $0x900] sm:$0xf]
    %v761 = vld [vmem:[#allocation8 + $0x904] sm:$0xf]
    %v762 = vld [vmem:[#allocation8 + $0x908] sm:$0xf]
    %v763 = vld [vmem:[#allocation8 + $0x90c] sm:$0xf]
    %v764 = vld [vmem:[#allocation8 + $0x910] sm:$0xf]
    %v765 = vld [vmem:[#allocation8 + $0x914] sm:$0xf]
    %v766 = vld [vmem:[#allocation8 + $0x918] sm:$0xf]
    %v767 = vld [vmem:[#allocation8 + $0x91c] sm:$0xf]
    %v768 = vld [vmem:[#allocation8 + $0x920] sm:$0xf]
    %v769 = vld [vmem:[#allocation8 + $0x924] sm:$0xf]
    %v770 = vld [vmem:[#allocation8 + $0x928] sm:$0xf]
    %v771 = vld [vmem:[#allocation8 + $0x92c] sm:$0xf]
    %v772 = vld [vmem:[#allocation8 + $0x930] sm:$0xf]
    %v773 = vld [vmem:[#allocation8 + $0x934] sm:$0xf]
    %v774 = vld [vmem:[#allocation8 + $0x938] sm:$0xf]
    %v775 = vld [vmem:[#allocation8 + $0x93c] sm:$0xf]
    %v776 = vld [vmem:[#allocation8 + $0x940] sm:$0xf]
    %v777 = vld [vmem:[#allocation8 + $0x944] sm:$0xf]
    %v778 = vld [vmem:[#allocation8 + $0x948] sm:$0xf]
    %v779 = vld [vmem:[#allocation8 + $0x94c] sm:$0xf]
    %v780 = vld [vmem:[#allocation8 + $0x950] sm:$0xf]
    %v781 = vld [vmem:[#allocation8 + $0x954] sm:$0xf]
    %v782 = vld [vmem:[#allocation8 + $0x958] sm:$0xf]
    %v783 = vld [vmem:[#allocation8 + $0x95c] sm:$0xf]
    %v784 = vld [vmem:[#allocation8 + $0x960] sm:$0xf]
    %v785 = vld [vmem:[#allocation8 + $0x964] sm:$0xf]
    %v786 = vld [vmem:[#allocation8 + $0x968] sm:$0xf]
    %v787 = vld [vmem:[#allocation8 + $0x96c] sm:$0xf]
    %v788 = vld [vmem:[#allocation8 + $0x970] sm:$0xf]
    %v789 = vld [vmem:[#allocation8 + $0x974] sm:$0xf]
    %v790 = vld [vmem:[#allocation8 + $0x978] sm:$0xf]
    %v791 = vld [vmem:[#allocation8 + $0x97c] sm:$0xf]
    %v792 = vld [vmem:[#allocation8 + $0x980] sm:$0xf]
    %v793 = vld [vmem:[#allocation8 + $0x984] sm:$0xf]
    %v794 = vld [vmem:[#allocation8 + $0x988] sm:$0xf]
    %v795 = vld [vmem:[#allocation8 + $0x98c] sm:$0xf]
    %v796 = vld [vmem:[#allocation8 + $0x990] sm:$0xf]
    %v797 = vld [vmem:[#allocation8 + $0x994] sm:$0xf]
    %v798 = vld [vmem:[#allocation8 + $0x998] sm:$0xf]
    %v799 = vld [vmem:[#allocation8 + $0x99c] sm:$0xf]
    %v800 = vld [vmem:[#allocation8 + $0x9a0] sm:$0xf]
    %v801 = vld [vmem:[#allocation8 + $0x9a4] sm:$0xf]
    %v802 = vld [vmem:[#allocation8 + $0x9a8] sm:$0xf]
    %v803 = vld [vmem:[#allocation8 + $0x9ac] sm:$0xf]
    %v804 = vld [vmem:[#allocation8 + $0x9b0] sm:$0xf]
    %v805 = vld [vmem:[#allocation8 + $0x9b4] sm:$0xf]
    %v806 = vld [vmem:[#allocation8 + $0x9b8] sm:$0xf]
    %v807 = vld [vmem:[#allocation8 + $0x9bc] sm:$0xf]
    %v808 = vld [vmem:[#allocation8 + $0x9c0] sm:$0xf]
    %v809 = vld [vmem:[#allocation8 + $0x9c4] sm:$0xf]
    %v810 = vld [vmem:[#allocation8 + $0x9c8] sm:$0xf]
    %v811 = vld [vmem:[#allocation8 + $0x9cc] sm:$0xf]
    %v812 = vld [vmem:[#allocation8 + $0x9d0] sm:$0xf]
    %v813 = vld [vmem:[#allocation8 + $0x9d4] sm:$0xf]
    %v814 = vld [vmem:[#allocation8 + $0x9d8] sm:$0xf]
    %v815 = vld [vmem:[#allocation8 + $0x9dc] sm:$0xf]
    %v816 = vld [vmem:[#allocation8 + $0x9e0] sm:$0xf]
    %v817 = vld [vmem:[#allocation8 + $0x9e4] sm:$0xf]
    %v818 = vld [vmem:[#allocation8 + $0x9e8] sm:$0xf]
    %v819 = vld [vmem:[#allocation8 + $0x9ec] sm:$0xf]
    %v820 = vld [vmem:[#allocation8 + $0x9f0] sm:$0xf]
    %v821 = vld [vmem:[#allocation8 + $0x9f4] sm:$0xf]
    %v822 = vld [vmem:[#allocation8 + $0x9f8] sm:$0xf]
    %v823 = vld [vmem:[#allocation8 + $0x9fc] sm:$0xf]
    %v824 = vld [vmem:[#allocation8 + $0xa00] sm:$0xf]
    %v825 = vld [vmem:[#allocation8 + $0xa04] sm:$0xf]
    %v826 = vld [vmem:[#allocation8 + $0xa08] sm:$0xf]
    %v827 = vld [vmem:[#allocation8 + $0xa0c] sm:$0xf]
    %v828 = vld [vmem:[#allocation8 + $0xa10] sm:$0xf]
    %v829 = vld [vmem:[#allocation8 + $0xa14] sm:$0xf]
    %v830 = vld [vmem:[#allocation8 + $0xa18] sm:$0xf]
    %v831 = vld [vmem:[#allocation8 + $0xa1c] sm:$0xf]
    %v832 = vld [vmem:[#allocation8 + $0xa20] sm:$0xf]
    %v833 = vld [vmem:[#allocation8 + $0xa24] sm:$0xf]
    %v834 = vld [vmem:[#allocation8 + $0xa28] sm:$0xf]
    %v835 = vld [vmem:[#allocation8 + $0xa2c] sm:$0xf]
    %v836 = vld [vmem:[#allocation8 + $0xa30] sm:$0xf]
    %v837 = vld [vmem:[#allocation8 + $0xa34] sm:$0xf]
    %v838 = vld [vmem:[#allocation8 + $0xa38] sm:$0xf]
    %v839 = vld [vmem:[#allocation8 + $0xa3c] sm:$0xf]
    %v840 = vld [vmem:[#allocation8 + $0xa40] sm:$0xf]
    %v841 = vld [vmem:[#allocation8 + $0xa44] sm:$0xf]
    %v842 = vld [vmem:[#allocation8 + $0xa48] sm:$0xf]
    %v843 = vld [vmem:[#allocation8 + $0xa4c] sm:$0xf]
    %v844 = vld [vmem:[#allocation8 + $0xa50] sm:$0xf]
    %v845 = vld [vmem:[#allocation8 + $0xa54] sm:$0xf]
    %v846 = vld [vmem:[#allocation8 + $0xa58] sm:$0xf]
    %v847 = vld [vmem:[#allocation8 + $0xa5c] sm:$0xf]
    %v848 = vld [vmem:[#allocation8 + $0xa60] sm:$0xf]
    %v849 = vld [vmem:[#allocation8 + $0xa64] sm:$0xf]
    %v850 = vld [vmem:[#allocation8 + $0xa68] sm:$0xf]
    %v851 = vld [vmem:[#allocation8 + $0xa6c] sm:$0xf]
    %v852 = vld [vmem:[#allocation8 + $0xa70] sm:$0xf]
    %v853 = vld [vmem:[#allocation8 + $0xa74] sm:$0xf]
    %v854 = vld [vmem:[#allocation8 + $0xa78] sm:$0xf]
    %v855 = vld [vmem:[#allocation8 + $0xa7c] sm:$0xf]
    %v856 = vld [vmem:[#allocation8 + $0xa80] sm:$0xf]
    %v857 = vld [vmem:[#allocation8 + $0xa84] sm:$0xf]
    %v858 = vld [vmem:[#allocation8 + $0xa88] sm:$0xf]
    %v859 = vld [vmem:[#allocation8 + $0xa8c] sm:$0xf]
    %v860 = vld [vmem:[#allocation8 + $0xa90] sm:$0xf]
    %v861 = vld [vmem:[#allocation8 + $0xa94] sm:$0xf]
    %v862 = vld [vmem:[#allocation8 + $0xa98] sm:$0xf]
    %v863 = vld [vmem:[#allocation8 + $0xa9c] sm:$0xf]
    %v864 = vld [vmem:[#allocation8 + $0xaa0] sm:$0xf]
    %v865 = vld [vmem:[#allocation8 + $0xaa4] sm:$0xf]
    %v866 = vld [vmem:[#allocation8 + $0xaa8] sm:$0xf]
    %v867 = vld [vmem:[#allocation8 + $0xaac] sm:$0xf]
    %v868 = vld [vmem:[#allocation8 + $0xab0] sm:$0xf]
    %v869 = vld [vmem:[#allocation8 + $0xab4] sm:$0xf]
    %v870 = vld [vmem:[#allocation8 + $0xab8] sm:$0xf]
    %v871 = vld [vmem:[#allocation8 + $0xabc] sm:$0xf]
    %v872 = vld [vmem:[#allocation8 + $0xac0] sm:$0xf]
    %v873 = vld [vmem:[#allocation8 + $0xac4] sm:$0xf]
    %v874 = vld [vmem:[#allocation8 + $0xac8] sm:$0xf]
    %v875 = vld [vmem:[#allocation8 + $0xacc] sm:$0xf]
    %v876 = vld [vmem:[#allocation8 + $0xad0] sm:$0xf]
    %v877 = vld [vmem:[#allocation8 + $0xad4] sm:$0xf]
    %v878 = vld [vmem:[#allocation8 + $0xad8] sm:$0xf]
    %v879 = vld [vmem:[#allocation8 + $0xadc] sm:$0xf]
    %v880 = vld [vmem:[#allocation8 + $0xae0] sm:$0xf]
    %v881 = vld [vmem:[#allocation8 + $0xae4] sm:$0xf]
    %v882 = vld [vmem:[#allocation8 + $0xae8] sm:$0xf]
    %v883 = vld [vmem:[#allocation8 + $0xaec] sm:$0xf]
    %v884 = vld [vmem:[#allocation8 + $0xaf0] sm:$0xf]
    %v885 = vld [vmem:[#allocation8 + $0xaf4] sm:$0xf]
    %v886 = vld [vmem:[#allocation8 + $0xaf8] sm:$0xf]
    %v887 = vld [vmem:[#allocation8 + $0xafc] sm:$0xf]
    %v888 = vld [vmem:[#allocation8 + $0xb00] sm:$0xf]
    %v889 = vld [vmem:[#allocation8 + $0xb04] sm:$0xf]
    %v890 = vld [vmem:[#allocation8 + $0xb08] sm:$0xf]
    %v891 = vld [vmem:[#allocation8 + $0xb0c] sm:$0xf]
    %v892 = vld [vmem:[#allocation8 + $0xb10] sm:$0xf]
    %v893 = vld [vmem:[#allocation8 + $0xb14] sm:$0xf]
    %v894 = vld [vmem:[#allocation8 + $0xb18] sm:$0xf]
    %v895 = vld [vmem:[#allocation8 + $0xb1c] sm:$0xf]
    %v896 = vld [vmem:[#allocation8 + $0xb20] sm:$0xf]
    %v897 = vld [vmem:[#allocation8 + $0xb24] sm:$0xf]
    %v898 = vld [vmem:[#allocation8 + $0xb28] sm:$0xf]
    %v899 = vld [vmem:[#allocation8 + $0xb2c] sm:$0xf]
    %v900 = vld [vmem:[#allocation8 + $0xb30] sm:$0xf]
    %v901 = vld [vmem:[#allocation8 + $0xb34] sm:$0xf]
    %v902 = vld [vmem:[#allocation8 + $0xb38] sm:$0xf]
    %v903 = vld [vmem:[#allocation8 + $0xb3c] sm:$0xf]
    %v904 = vld [vmem:[#allocation8 + $0xb40] sm:$0xf]
    %v905 = vld [vmem:[#allocation8 + $0xb44] sm:$0xf]
    %v906 = vld [vmem:[#allocation8 + $0xb48] sm:$0xf]
    %v907 = vld [vmem:[#allocation8 + $0xb4c] sm:$0xf]
    %v908 = vld [vmem:[#allocation8 + $0xb50] sm:$0xf]
    %v909 = vld [vmem:[#allocation8 + $0xb54] sm:$0xf]
    %v910 = vld [vmem:[#allocation8 + $0xb58] sm:$0xf]
    %v911 = vld [vmem:[#allocation8 + $0xb5c] sm:$0xf]
    %v912 = vld [vmem:[#allocation8 + $0xb60] sm:$0xf]
    %v913 = vld [vmem:[#allocation8 + $0xb64] sm:$0xf]
    %v914 = vld [vmem:[#allocation8 + $0xb68] sm:$0xf]
    %v915 = vld [vmem:[#allocation8 + $0xb6c] sm:$0xf]
    %v916 = vld [vmem:[#allocation8 + $0xb70] sm:$0xf]
    %v917 = vld [vmem:[#allocation8 + $0xb74] sm:$0xf]
    %v918 = vld [vmem:[#allocation8 + $0xb78] sm:$0xf]
    %v919 = vld [vmem:[#allocation8 + $0xb7c] sm:$0xf]
    %v920 = vld [vmem:[#allocation8 + $0xb80] sm:$0xf]
    %v921 = vld [vmem:[#allocation8 + $0xb84] sm:$0xf]
    %v922 = vld [vmem:[#allocation8 + $0xb88] sm:$0xf]
    %v923 = vld [vmem:[#allocation8 + $0xb8c] sm:$0xf]
    %v924 = vld [vmem:[#allocation8 + $0xb90] sm:$0xf]
    %v925 = vld [vmem:[#allocation8 + $0xb94] sm:$0xf]
    %v926 = vld [vmem:[#allocation8 + $0xb98] sm:$0xf]
    %v927 = vld [vmem:[#allocation8 + $0xb9c] sm:$0xf]
    %v928 = vld [vmem:[#allocation8 + $0xba0] sm:$0xf]
    %v929 = vld [vmem:[#allocation8 + $0xba4] sm:$0xf]
    %v930 = vld [vmem:[#allocation8 + $0xba8] sm:$0xf]
    %v931 = vld [vmem:[#allocation8 + $0xbac] sm:$0xf]
    %v932 = vld [vmem:[#allocation8 + $0xbb0] sm:$0xf]
    %v933 = vld [vmem:[#allocation8 + $0xbb4] sm:$0xf]
    %v934 = vld [vmem:[#allocation8 + $0xbb8] sm:$0xf]
    %v935 = vld [vmem:[#allocation8 + $0xbbc] sm:$0xf]
    %v936 = vld [vmem:[#allocation8 + $0xbc0] sm:$0xf]
    %v937 = vld [vmem:[#allocation8 + $0xbc4] sm:$0xf]
    %v938 = vld [vmem:[#allocation8 + $0xbc8] sm:$0xf]
    %v939 = vld [vmem:[#allocation8 + $0xbcc] sm:$0xf]
    %v940 = vld [vmem:[#allocation8 + $0xbd0] sm:$0xf]
    %v941 = vld [vmem:[#allocation8 + $0xbd4] sm:$0xf]
    %v942 = vld [vmem:[#allocation8 + $0xbd8] sm:$0xf]
    %v943 = vld [vmem:[#allocation8 + $0xbdc] sm:$0xf]
    %v944 = vld [vmem:[#allocation8 + $0xbe0] sm:$0xf]
    %v945 = vld [vmem:[#allocation8 + $0xbe4] sm:$0xf]
    %v946 = vld [vmem:[#allocation8 + $0xbe8] sm:$0xf]
    %v947 = vld [vmem:[#allocation8 + $0xbec] sm:$0xf]
    %v948 = vld [vmem:[#allocation8 + $0xbf0] sm:$0xf]
    %v949 = vld [vmem:[#allocation8 + $0xbf4] sm:$0xf]
    %v950 = vld [vmem:[#allocation8 + $0xbf8] sm:$0xf]
    %v951 = vld [vmem:[#allocation8 + $0xbfc] sm:$0xf]
    %v976 = vunpack.c.l.b16 %v160
    %v977 = vunpack.c.h.b16 %v160
    %v978 = vunpack.c.l.b16 %v161
    %v979 = vunpack.c.h.b16 %v161
    %v980 = vunpack.c.l.b16 %v162
    %v981 = vunpack.c.h.b16 %v162
    %v982 = vunpack.c.l.b16 %v163
    %v983 = vunpack.c.h.b16 %v163
    %v984 = vunpack.c.l.b16 %v164
    %v985 = vunpack.c.h.b16 %v164
    %v986 = vunpack.c.l.b16 %v165
    %v987 = vunpack.c.h.b16 %v165
    %v988 = vunpack.c.l.b16 %v166
    %v989 = vunpack.c.h.b16 %v166
    %v990 = vunpack.c.l.b16 %v167
    %v991 = vunpack.c.h.b16 %v167
    %v992 = vunpack.c.l.b16 %v168
    %v993 = vunpack.c.h.b16 %v168
    %v994 = vunpack.c.l.b16 %v169
    %v995 = vunpack.c.h.b16 %v169
    %v996 = vunpack.c.l.b16 %v170
    %v997 = vunpack.c.h.b16 %v170
    %v998 = vunpack.c.l.b16 %v171
    %v999 = vunpack.c.h.b16 %v171
    %v1000 = vunpack.c.l.b16 %v172
    %v1001 = vunpack.c.h.b16 %v172
    %v1002 = vunpack.c.l.b16 %v173
    %v1003 = vunpack.c.h.b16 %v173
    %v1004 = vunpack.c.l.b16 %v174
    %v1005 = vunpack.c.h.b16 %v174
    %v1006 = vunpack.c.l.b16 %v175
    %v1007 = vunpack.c.h.b16 %v175
    %v1008 = vunpack.c.l.b16 %v176
    %v1009 = vunpack.c.h.b16 %v176
    %v1010 = vunpack.c.l.b16 %v177
    %v1011 = vunpack.c.h.b16 %v177
    %v1012 = vunpack.c.l.b16 %v178
    %v1013 = vunpack.c.h.b16 %v178
    %v1014 = vunpack.c.l.b16 %v179
    %v1015 = vunpack.c.h.b16 %v179
    %v1016 = vunpack.c.l.b16 %v180
    %v1017 = vunpack.c.h.b16 %v180
    %v1018 = vunpack.c.l.b16 %v181
    %v1019 = vunpack.c.h.b16 %v181
    %v1020 = vunpack.c.l.b16 %v182
    %v1021 = vunpack.c.h.b16 %v182
    %v1022 = vunpack.c.l.b16 %v183
    %v1023 = vunpack.c.h.b16 %v183
    %v1024 = vpack.c.b16 %v976, %v976
    %v1025 = vpack.c.b16 %v977, %v977
    %v1026 = vpack.c.b16 %v978, %v978
    %v1027 = vpack.c.b16 %v979, %v979
    %v1028 = vpack.c.b16 %v980, %v980
    %v1029 = vpack.c.b16 %v981, %v981
    %v1030 = vpack.c.b16 %v982, %v982
    %v1031 = vpack.c.b16 %v983, %v983
    %v1032 = vpack.c.b16 %v984, %v984
    %v1033 = vpack.c.b16 %v985, %v985
    %v1034 = vpack.c.b16 %v986, %v986
    %v1035 = vpack.c.b16 %v987, %v987
    %v1036 = vpack.c.b16 %v988, %v988
    %v1037 = vpack.c.b16 %v989, %v989
    %v1038 = vpack.c.b16 %v990, %v990
    %v1039 = vpack.c.b16 %v991, %v991
    %v1040 = vpack.c.b16 %v992, %v992
    %v1041 = vpack.c.b16 %v993, %v993
    %v1042 = vpack.c.b16 %v994, %v994
    %v1043 = vpack.c.b16 %v995, %v995
    %v1044 = vpack.c.b16 %v996, %v996
    %v1045 = vpack.c.b16 %v997, %v997
    %v1046 = vpack.c.b16 %v998, %v998
    %v1047 = vpack.c.b16 %v999, %v999
    %v1048 = vpack.c.b16 %v1000, %v1000
    %v1049 = vpack.c.b16 %v1001, %v1001
    %v1050 = vpack.c.b16 %v1002, %v1002
    %v1051 = vpack.c.b16 %v1003, %v1003
    %v1052 = vpack.c.b16 %v1004, %v1004
    %v1053 = vpack.c.b16 %v1005, %v1005
    %v1054 = vpack.c.b16 %v1006, %v1006
    %v1055 = vpack.c.b16 %v1007, %v1007
    %v1056 = vpack.c.b16 %v1008, %v1008
    %v1057 = vpack.c.b16 %v1009, %v1009
    %v1058 = vpack.c.b16 %v1010, %v1010
    %v1059 = vpack.c.b16 %v1011, %v1011
    %v1060 = vpack.c.b16 %v1012, %v1012
    %v1061 = vpack.c.b16 %v1013, %v1013
    %v1062 = vpack.c.b16 %v1014, %v1014
    %v1063 = vpack.c.b16 %v1015, %v1015
    %v1064 = vpack.c.b16 %v1016, %v1016
    %v1065 = vpack.c.b16 %v1017, %v1017
    %v1066 = vpack.c.b16 %v1018, %v1018
    %v1067 = vpack.c.b16 %v1019, %v1019
    %v1068 = vpack.c.b16 %v1020, %v1020
    %v1069 = vpack.c.b16 %v1021, %v1021
    %v1070 = vpack.c.b16 %v1022, %v1022
    %v1071 = vpack.c.b16 %v1023, %v1023
    %v1888 = vunpack.c.l.b16 %v184
    %v1889 = vunpack.c.l.b16 %v185
    %v1890 = vunpack.c.l.b16 %v186
    %v1891 = vunpack.c.l.b16 %v187
    %v1892 = vunpack.c.l.b16 %v188
    %v1893 = vunpack.c.l.b16 %v189
    %v1894 = vunpack.c.l.b16 %v190
    %v1895 = vunpack.c.l.b16 %v191
    %v1896 = vunpack.c.l.b16 %v192
    %v1897 = vunpack.c.l.b16 %v193
    %v1898 = vunpack.c.l.b16 %v194
    %v1899 = vunpack.c.l.b16 %v195
    %v1900 = vunpack.c.l.b16 %v196
    %v1901 = vunpack.c.l.b16 %v197
    %v1902 = vunpack.c.l.b16 %v198
    %v1903 = vunpack.c.l.b16 %v199
    %v1904 = vunpack.c.l.b16 %v200
    %v1905 = vunpack.c.l.b16 %v201
    %v1906 = vunpack.c.l.b16 %v202
    %v1907 = vunpack.c.l.b16 %v203
    %v1908 = vunpack.c.l.b16 %v204
    %v1909 = vunpack.c.l.b16 %v205
    %v1910 = vunpack.c.l.b16 %v206
    %v1911 = vunpack.c.l.b16 %v207
    %v1912 = vunpack.c.l.b16 %v208
    %v1913 = vunpack.c.l.b16 %v209
    %v1914 = vunpack.c.l.b16 %v210
    %v1915 = vunpack.c.l.b16 %v211
    %v1916 = vunpack.c.l.b16 %v212
    %v1917 = vunpack.c.l.b16 %v213
    %v1918 = vunpack.c.l.b16 %v214
    %v1919 = vunpack.c.l.b16 %v215
    %v1920 = vunpack.c.l.b16 %v216
    %v1921 = vunpack.c.l.b16 %v217
    %v1922 = vunpack.c.l.b16 %v218
    %v1923 = vunpack.c.l.b16 %v219
    %v1924 = vunpack.c.l.b16 %v220
    %v1925 = vunpack.c.l.b16 %v221
    %v1926 = vunpack.c.l.b16 %v222
    %v1927 = vunpack.c.l.b16 %v223
    %v1928 = vunpack.c.l.b16 %v224
    %v1929 = vunpack.c.l.b16 %v225
    %v1930 = vunpack.c.l.b16 %v226
    %v1931 = vunpack.c.l.b16 %v227
    %v1932 = vunpack.c.l.b16 %v228
    %v1933 = vunpack.c.l.b16 %v229
    %v1934 = vunpack.c.l.b16 %v230
    %v1935 = vunpack.c.l.b16 %v231
    %v1936 = vunpack.c.l.b16 %v232
    %v1937 = vunpack.c.l.b16 %v233
    %v1938 = vunpack.c.l.b16 %v234
    %v1939 = vunpack.c.l.b16 %v235
    %v1940 = vunpack.c.l.b16 %v236
    %v1941 = vunpack.c.l.b16 %v237
    %v1942 = vunpack.c.l.b16 %v238
    %v1943 = vunpack.c.l.b16 %v239
    %v1944 = vunpack.c.l.b16 %v240
    %v1945 = vunpack.c.l.b16 %v241
    %v1946 = vunpack.c.l.b16 %v242
    %v1947 = vunpack.c.l.b16 %v243
    %v1948 = vunpack.c.l.b16 %v244
    %v1949 = vunpack.c.l.b16 %v245
    %v1950 = vunpack.c.l.b16 %v246
    %v1951 = vunpack.c.l.b16 %v247
    %v1952 = vunpack.c.l.b16 %v248
    %v1953 = vunpack.c.l.b16 %v249
    %v1954 = vunpack.c.l.b16 %v250
    %v1955 = vunpack.c.l.b16 %v251
    %v1956 = vunpack.c.l.b16 %v252
    %v1957 = vunpack.c.l.b16 %v253
    %v1958 = vunpack.c.l.b16 %v254
    %v1959 = vunpack.c.l.b16 %v255
    %v1960 = vunpack.c.l.b16 %v256
    %v1961 = vunpack.c.l.b16 %v257
    %v1962 = vunpack.c.l.b16 %v258
    %v1963 = vunpack.c.l.b16 %v259
    %v1964 = vunpack.c.l.b16 %v260
    %v1965 = vunpack.c.l.b16 %v261
    %v1966 = vunpack.c.l.b16 %v262
    %v1967 = vunpack.c.l.b16 %v263
    %v1968 = vunpack.c.l.b16 %v264
    %v1969 = vunpack.c.l.b16 %v265
    %v1970 = vunpack.c.l.b16 %v266
    %v1971 = vunpack.c.l.b16 %v267
    %v1972 = vunpack.c.l.b16 %v268
    %v1973 = vunpack.c.l.b16 %v269
    %v1974 = vunpack.c.l.b16 %v270
    %v1975 = vunpack.c.l.b16 %v271
    %v1976 = vunpack.c.l.b16 %v272
    %v1977 = vunpack.c.l.b16 %v273
    %v1978 = vunpack.c.l.b16 %v274
    %v1979 = vunpack.c.l.b16 %v275
    %v1980 = vunpack.c.l.b16 %v276
    %v1981 = vunpack.c.l.b16 %v277
    %v1982 = vunpack.c.l.b16 %v278
    %v1983 = vunpack.c.l.b16 %v279
    %v1984 = vunpack.c.l.b16 %v280
    %v1985 = vunpack.c.l.b16 %v281
    %v1986 = vunpack.c.l.b16 %v282
    %v1987 = vunpack.c.l.b16 %v283
    %v1988 = vunpack.c.l.b16 %v284
    %v1989 = vunpack.c.l.b16 %v285
    %v1990 = vunpack.c.l.b16 %v286
    %v1991 = vunpack.c.l.b16 %v287
    %v1992 = vunpack.c.l.b16 %v288
    %v1993 = vunpack.c.l.b16 %v289
    %v1994 = vunpack.c.l.b16 %v290
    %v1995 = vunpack.c.l.b16 %v291
    %v1996 = vunpack.c.l.b16 %v292
    %v1997 = vunpack.c.l.b16 %v293
    %v1998 = vunpack.c.l.b16 %v294
    %v1999 = vunpack.c.l.b16 %v295
    %v2000 = vunpack.c.l.b16 %v296
    %v2001 = vunpack.c.l.b16 %v297
    %v2002 = vunpack.c.l.b16 %v298
    %v2003 = vunpack.c.l.b16 %v299
    %v2004 = vunpack.c.l.b16 %v300
    %v2005 = vunpack.c.l.b16 %v301
    %v2006 = vunpack.c.l.b16 %v302
    %v2007 = vunpack.c.l.b16 %v303
    %v2008 = vunpack.c.l.b16 %v304
    %v2009 = vunpack.c.l.b16 %v305
    %v2010 = vunpack.c.l.b16 %v306
    %v2011 = vunpack.c.l.b16 %v307
    %v2012 = vunpack.c.l.b16 %v308
    %v2013 = vunpack.c.l.b16 %v309
    %v2014 = vunpack.c.l.b16 %v310
    %v2015 = vunpack.c.l.b16 %v311
    %v2016 = vunpack.c.l.b16 %v312
    %v2017 = vunpack.c.l.b16 %v313
    %v2018 = vunpack.c.l.b16 %v314
    %v2019 = vunpack.c.l.b16 %v315
    %v2020 = vunpack.c.l.b16 %v316
    %v2021 = vunpack.c.l.b16 %v317
    %v2022 = vunpack.c.l.b16 %v318
    %v2023 = vunpack.c.l.b16 %v319
    %v2024 = vunpack.c.l.b16 %v320
    %v2025 = vunpack.c.l.b16 %v321
    %v2026 = vunpack.c.l.b16 %v322
    %v2027 = vunpack.c.l.b16 %v323
    %v2028 = vunpack.c.l.b16 %v324
    %v2029 = vunpack.c.l.b16 %v325
    %v2030 = vunpack.c.l.b16 %v326
    %v2031 = vunpack.c.l.b16 %v327
    %v2032 = vunpack.c.l.b16 %v328
    %v2033 = vunpack.c.l.b16 %v329
    %v2034 = vunpack.c.l.b16 %v330
    %v2035 = vunpack.c.l.b16 %v331
    %v2036 = vunpack.c.l.b16 %v332
    %v2037 = vunpack.c.l.b16 %v333
    %v2038 = vunpack.c.l.b16 %v334
    %v2039 = vunpack.c.l.b16 %v335
    %v2040 = vunpack.c.l.b16 %v336
    %v2041 = vunpack.c.l.b16 %v337
    %v2042 = vunpack.c.l.b16 %v338
    %v2043 = vunpack.c.l.b16 %v339
    %v2044 = vunpack.c.l.b16 %v340
    %v2045 = vunpack.c.l.b16 %v341
    %v2046 = vunpack.c.l.b16 %v342
    %v2047 = vunpack.c.l.b16 %v343
    %v2048 = vunpack.c.l.b16 %v344
    %v2049 = vunpack.c.l.b16 %v345
    %v2050 = vunpack.c.l.b16 %v346
    %v2051 = vunpack.c.l.b16 %v347
    %v2052 = vunpack.c.l.b16 %v348
    %v2053 = vunpack.c.l.b16 %v349
    %v2054 = vunpack.c.l.b16 %v350
    %v2055 = vunpack.c.l.b16 %v351
    %v2056 = vunpack.c.l.b16 %v352
    %v2057 = vunpack.c.l.b16 %v353
    %v2058 = vunpack.c.l.b16 %v354
    %v2059 = vunpack.c.l.b16 %v355
    %v2060 = vunpack.c.l.b16 %v356
    %v2061 = vunpack.c.l.b16 %v357
    %v2062 = vunpack.c.l.b16 %v358
    %v2063 = vunpack.c.l.b16 %v359
    %v2064 = vunpack.c.l.b16 %v360
    %v2065 = vunpack.c.l.b16 %v361
    %v2066 = vunpack.c.l.b16 %v362
    %v2067 = vunpack.c.l.b16 %v363
    %v2068 = vunpack.c.l.b16 %v364
    %v2069 = vunpack.c.l.b16 %v365
    %v2070 = vunpack.c.l.b16 %v366
    %v2071 = vunpack.c.l.b16 %v367
    %v2072 = vunpack.c.l.b16 %v368
    %v2073 = vunpack.c.l.b16 %v369
    %v2074 = vunpack.c.l.b16 %v370
    %v2075 = vunpack.c.l.b16 %v371
    %v2076 = vunpack.c.l.b16 %v372
    %v2077 = vunpack.c.l.b16 %v373
    %v2078 = vunpack.c.l.b16 %v374
    %v2079 = vunpack.c.l.b16 %v375
    %v2080 = vunpack.c.l.b16 %v376
    %v2081 = vunpack.c.l.b16 %v377
    %v2082 = vunpack.c.l.b16 %v378
    %v2083 = vunpack.c.l.b16 %v379
    %v2084 = vunpack.c.l.b16 %v380
    %v2085 = vunpack.c.l.b16 %v381
    %v2086 = vunpack.c.l.b16 %v382
    %v2087 = vunpack.c.l.b16 %v383
    %v2088 = vunpack.c.l.b16 %v384
    %v2089 = vunpack.c.l.b16 %v385
    %v2090 = vunpack.c.l.b16 %v386
    %v2091 = vunpack.c.l.b16 %v387
    %v2092 = vunpack.c.l.b16 %v388
    %v2093 = vunpack.c.l.b16 %v389
    %v2094 = vunpack.c.l.b16 %v390
    %v2095 = vunpack.c.l.b16 %v391
    %v2096 = vunpack.c.l.b16 %v392
    %v2097 = vunpack.c.l.b16 %v393
    %v2098 = vunpack.c.l.b16 %v394
    %v2099 = vunpack.c.l.b16 %v395
    %v2100 = vunpack.c.l.b16 %v396
    %v2101 = vunpack.c.l.b16 %v397
    %v2102 = vunpack.c.l.b16 %v398
    %v2103 = vunpack.c.l.b16 %v399
    %v2104 = vunpack.c.l.b16 %v400
    %v2105 = vunpack.c.l.b16 %v401
    %v2106 = vunpack.c.l.b16 %v402
    %v2107 = vunpack.c.l.b16 %v403
    %v2108 = vunpack.c.l.b16 %v404
    %v2109 = vunpack.c.l.b16 %v405
    %v2110 = vunpack.c.l.b16 %v406
    %v2111 = vunpack.c.l.b16 %v407
    %v2112 = vunpack.c.l.b16 %v408
    %v2113 = vunpack.c.l.b16 %v409
    %v2114 = vunpack.c.l.b16 %v410
    %v2115 = vunpack.c.l.b16 %v411
    %v2116 = vunpack.c.l.b16 %v412
    %v2117 = vunpack.c.l.b16 %v413
    %v2118 = vunpack.c.l.b16 %v414
    %v2119 = vunpack.c.l.b16 %v415
    %v2120 = vunpack.c.l.b16 %v416
    %v2121 = vunpack.c.l.b16 %v417
    %v2122 = vunpack.c.l.b16 %v418
    %v2123 = vunpack.c.l.b16 %v419
    %v2124 = vunpack.c.l.b16 %v420
    %v2125 = vunpack.c.l.b16 %v421
    %v2126 = vunpack.c.l.b16 %v422
    %v2127 = vunpack.c.l.b16 %v423
    %v2128 = vunpack.c.l.b16 %v424
    %v2129 = vunpack.c.l.b16 %v425
    %v2130 = vunpack.c.l.b16 %v426
    %v2131 = vunpack.c.l.b16 %v427
    %v2132 = vunpack.c.l.b16 %v428
    %v2133 = vunpack.c.l.b16 %v429
    %v2134 = vunpack.c.l.b16 %v430
    %v2135 = vunpack.c.l.b16 %v431
    %v2136 = vunpack.c.l.b16 %v432
    %v2137 = vunpack.c.l.b16 %v433
    %v2138 = vunpack.c.l.b16 %v434
    %v2139 = vunpack.c.l.b16 %v435
    %v2140 = vunpack.c.l.b16 %v436
    %v2141 = vunpack.c.l.b16 %v437
    %v2142 = vunpack.c.l.b16 %v438
    %v2143 = vunpack.c.l.b16 %v439
    %v2144 = vunpack.c.l.b16 %v440
    %v2145 = vunpack.c.l.b16 %v441
    %v2146 = vunpack.c.l.b16 %v442
    %v2147 = vunpack.c.l.b16 %v443
    %v2148 = vunpack.c.l.b16 %v444
    %v2149 = vunpack.c.l.b16 %v445
    %v2150 = vunpack.c.l.b16 %v446
    %v2151 = vunpack.c.l.b16 %v447
    %v2152 = vunpack.c.l.b16 %v448
    %v2153 = vunpack.c.l.b16 %v449
    %v2154 = vunpack.c.l.b16 %v450
    %v2155 = vunpack.c.l.b16 %v451
    %v2156 = vunpack.c.l.b16 %v452
    %v2157 = vunpack.c.l.b16 %v453
    %v2158 = vunpack.c.l.b16 %v454
    %v2159 = vunpack.c.l.b16 %v455
    %v2160 = vunpack.c.l.b16 %v456
    %v2161 = vunpack.c.l.b16 %v457
    %v2162 = vunpack.c.l.b16 %v458
    %v2163 = vunpack.c.l.b16 %v459
    %v2164 = vunpack.c.l.b16 %v460
    %v2165 = vunpack.c.l.b16 %v461
    %v2166 = vunpack.c.l.b16 %v462
    %v2167 = vunpack.c.l.b16 %v463
    %v2168 = vunpack.c.l.b16 %v464
    %v2169 = vunpack.c.l.b16 %v465
    %v2170 = vunpack.c.l.b16 %v466
    %v2171 = vunpack.c.l.b16 %v467
    %v2172 = vunpack.c.l.b16 %v468
    %v2173 = vunpack.c.l.b16 %v469
    %v2174 = vunpack.c.l.b16 %v470
    %v2175 = vunpack.c.l.b16 %v471
    %v2176 = vunpack.c.l.b16 %v472
    %v2177 = vunpack.c.l.b16 %v473
    %v2178 = vunpack.c.l.b16 %v474
    %v2179 = vunpack.c.l.b16 %v475
    %v2180 = vunpack.c.l.b16 %v476
    %v2181 = vunpack.c.l.b16 %v477
    %v2182 = vunpack.c.l.b16 %v478
    %v2183 = vunpack.c.l.b16 %v479
    %v2184 = vunpack.c.l.b16 %v480
    %v2185 = vunpack.c.l.b16 %v481
    %v2186 = vunpack.c.l.b16 %v482
    %v2187 = vunpack.c.l.b16 %v483
    %v2188 = vunpack.c.l.b16 %v484
    %v2189 = vunpack.c.l.b16 %v485
    %v2190 = vunpack.c.l.b16 %v486
    %v2191 = vunpack.c.l.b16 %v487
    %v2192 = vunpack.c.l.b16 %v488
    %v2193 = vunpack.c.l.b16 %v489
    %v2194 = vunpack.c.l.b16 %v490
    %v2195 = vunpack.c.l.b16 %v491
    %v2196 = vunpack.c.l.b16 %v492
    %v2197 = vunpack.c.l.b16 %v493
    %v2198 = vunpack.c.l.b16 %v494
    %v2199 = vunpack.c.l.b16 %v495
    %v2200 = vunpack.c.l.b16 %v496
    %v2201 = vunpack.c.l.b16 %v497
    %v2202 = vunpack.c.l.b16 %v498
    %v2203 = vunpack.c.l.b16 %v499
    %v2204 = vunpack.c.l.b16 %v500
    %v2205 = vunpack.c.l.b16 %v501
    %v2206 = vunpack.c.l.b16 %v502
    %v2207 = vunpack.c.l.b16 %v503
    %v2208 = vunpack.c.l.b16 %v504
    %v2209 = vunpack.c.l.b16 %v505
    %v2210 = vunpack.c.l.b16 %v506
    %v2211 = vunpack.c.l.b16 %v507
    %v2212 = vunpack.c.l.b16 %v508
    %v2213 = vunpack.c.l.b16 %v509
    %v2214 = vunpack.c.l.b16 %v510
    %v2215 = vunpack.c.l.b16 %v511
    %v2216 = vunpack.c.l.b16 %v512
    %v2217 = vunpack.c.l.b16 %v513
    %v2218 = vunpack.c.l.b16 %v514
    %v2219 = vunpack.c.l.b16 %v515
    %v2220 = vunpack.c.l.b16 %v516
    %v2221 = vunpack.c.l.b16 %v517
    %v2222 = vunpack.c.l.b16 %v518
    %v2223 = vunpack.c.l.b16 %v519
    %v2224 = vunpack.c.l.b16 %v520
    %v2225 = vunpack.c.l.b16 %v521
    %v2226 = vunpack.c.l.b16 %v522
    %v2227 = vunpack.c.l.b16 %v523
    %v2228 = vunpack.c.l.b16 %v524
    %v2229 = vunpack.c.l.b16 %v525
    %v2230 = vunpack.c.l.b16 %v526
    %v2231 = vunpack.c.l.b16 %v527
    %v2232 = vunpack.c.l.b16 %v528
    %v2233 = vunpack.c.l.b16 %v529
    %v2234 = vunpack.c.l.b16 %v530
    %v2235 = vunpack.c.l.b16 %v531
    %v2236 = vunpack.c.l.b16 %v532
    %v2237 = vunpack.c.l.b16 %v533
    %v2238 = vunpack.c.l.b16 %v534
    %v2239 = vunpack.c.l.b16 %v535
    %v2240 = vunpack.c.l.b16 %v536
    %v2241 = vunpack.c.l.b16 %v537
    %v2242 = vunpack.c.l.b16 %v538
    %v2243 = vunpack.c.l.b16 %v539
    %v2244 = vunpack.c.l.b16 %v540
    %v2245 = vunpack.c.l.b16 %v541
    %v2246 = vunpack.c.l.b16 %v542
    %v2247 = vunpack.c.l.b16 %v543
    %v2248 = vunpack.c.l.b16 %v544
    %v2249 = vunpack.c.l.b16 %v545
    %v2250 = vunpack.c.l.b16 %v546
    %v2251 = vunpack.c.l.b16 %v547
    %v2252 = vunpack.c.l.b16 %v548
    %v2253 = vunpack.c.l.b16 %v549
    %v2254 = vunpack.c.l.b16 %v550
    %v2255 = vunpack.c.l.b16 %v551
    %v2256 = vunpack.c.l.b16 %v552
    %v2257 = vunpack.c.l.b16 %v553
    %v2258 = vunpack.c.l.b16 %v554
    %v2259 = vunpack.c.l.b16 %v555
    %v2260 = vunpack.c.l.b16 %v556
    %v2261 = vunpack.c.l.b16 %v557
    %v2262 = vunpack.c.l.b16 %v558
    %v2263 = vunpack.c.l.b16 %v559
    %v2264 = vunpack.c.l.b16 %v560
    %v2265 = vunpack.c.l.b16 %v561
    %v2266 = vunpack.c.l.b16 %v562
    %v2267 = vunpack.c.l.b16 %v563
    %v2268 = vunpack.c.l.b16 %v564
    %v2269 = vunpack.c.l.b16 %v565
    %v2270 = vunpack.c.l.b16 %v566
    %v2271 = vunpack.c.l.b16 %v567
    %v2272 = vunpack.c.l.b16 %v568
    %v2273 = vunpack.c.l.b16 %v569
    %v2274 = vunpack.c.l.b16 %v570
    %v2275 = vunpack.c.l.b16 %v571
    %v2276 = vunpack.c.l.b16 %v572
    %v2277 = vunpack.c.l.b16 %v573
    %v2278 = vunpack.c.l.b16 %v574
    %v2279 = vunpack.c.l.b16 %v575
    %v2280 = vunpack.c.l.b16 %v576
    %v2281 = vunpack.c.l.b16 %v577
    %v2282 = vunpack.c.l.b16 %v578
    %v2283 = vunpack.c.l.b16 %v579
    %v2284 = vunpack.c.l.b16 %v580
    %v2285 = vunpack.c.l.b16 %v581
    %v2286 = vunpack.c.l.b16 %v582
    %v2287 = vunpack.c.l.b16 %v583
    %v2288 = vunpack.c.l.b16 %v584
    %v2289 = vunpack.c.l.b16 %v585
    %v2290 = vunpack.c.l.b16 %v586
    %v2291 = vunpack.c.l.b16 %v587
    %v2292 = vunpack.c.l.b16 %v588
    %v2293 = vunpack.c.l.b16 %v589
    %v2294 = vunpack.c.l.b16 %v590
    %v2295 = vunpack.c.l.b16 %v591
    %v2296 = vunpack.c.l.b16 %v592
    %v2297 = vunpack.c.l.b16 %v593
    %v2298 = vunpack.c.l.b16 %v594
    %v2299 = vunpack.c.l.b16 %v595
    %v2300 = vunpack.c.l.b16 %v596
    %v2301 = vunpack.c.l.b16 %v597
    %v2302 = vunpack.c.l.b16 %v598
    %v2303 = vunpack.c.l.b16 %v599
    %v2304 = vunpack.c.l.b16 %v600
    %v2305 = vunpack.c.l.b16 %v601
    %v2306 = vunpack.c.l.b16 %v602
    %v2307 = vunpack.c.l.b16 %v603
    %v2308 = vunpack.c.l.b16 %v604
    %v2309 = vunpack.c.l.b16 %v605
    %v2310 = vunpack.c.l.b16 %v606
    %v2311 = vunpack.c.l.b16 %v607
    %v2312 = vunpack.c.l.b16 %v608
    %v2313 = vunpack.c.l.b16 %v609
    %v2314 = vunpack.c.l.b16 %v610
    %v2315 = vunpack.c.l.b16 %v611
    %v2316 = vunpack.c.l.b16 %v612
    %v2317 = vunpack.c.l.b16 %v613
    %v2318 = vunpack.c.l.b16 %v614
    %v2319 = vunpack.c.l.b16 %v615
    %v2320 = vunpack.c.l.b16 %v616
    %v2321 = vunpack.c.l.b16 %v617
    %v2322 = vunpack.c.l.b16 %v618
    %v2323 = vunpack.c.l.b16 %v619
    %v2324 = vunpack.c.l.b16 %v620
    %v2325 = vunpack.c.l.b16 %v621
    %v2326 = vunpack.c.l.b16 %v622
    %v2327 = vunpack.c.l.b16 %v623
    %v2328 = vunpack.c.l.b16 %v624
    %v2329 = vunpack.c.l.b16 %v625
    %v2330 = vunpack.c.l.b16 %v626
    %v2331 = vunpack.c.l.b16 %v627
    %v2332 = vunpack.c.l.b16 %v628
    %v2333 = vunpack.c.l.b16 %v629
    %v2334 = vunpack.c.l.b16 %v630
    %v2335 = vunpack.c.l.b16 %v631
    %v2336 = vunpack.c.l.b16 %v632
    %v2337 = vunpack.c.l.b16 %v633
    %v2338 = vunpack.c.l.b16 %v634
    %v2339 = vunpack.c.l.b16 %v635
    %v2340 = vunpack.c.l.b16 %v636
    %v2341 = vunpack.c.l.b16 %v637
    %v2342 = vunpack.c.l.b16 %v638
    %v2343 = vunpack.c.l.b16 %v639
    %v2344 = vunpack.c.l.b16 %v640
    %v2345 = vunpack.c.l.b16 %v641
    %v2346 = vunpack.c.l.b16 %v642
    %v2347 = vunpack.c.l.b16 %v643
    %v2348 = vunpack.c.l.b16 %v644
    %v2349 = vunpack.c.l.b16 %v645
    %v2350 = vunpack.c.l.b16 %v646
    %v2351 = vunpack.c.l.b16 %v647
    %v2352 = vunpack.c.l.b16 %v648
    %v2353 = vunpack.c.l.b16 %v649
    %v2354 = vunpack.c.l.b16 %v650
    %v2355 = vunpack.c.l.b16 %v651
    %v2356 = vunpack.c.l.b16 %v652
    %v2357 = vunpack.c.l.b16 %v653
    %v2358 = vunpack.c.l.b16 %v654
    %v2359 = vunpack.c.l.b16 %v655
    %v2360 = vunpack.c.l.b16 %v656
    %v2361 = vunpack.c.l.b16 %v657
    %v2362 = vunpack.c.l.b16 %v658
    %v2363 = vunpack.c.l.b16 %v659
    %v2364 = vunpack.c.l.b16 %v660
    %v2365 = vunpack.c.l.b16 %v661
    %v2366 = vunpack.c.l.b16 %v662
    %v2367 = vunpack.c.l.b16 %v663
    %v2368 = vunpack.c.l.b16 %v664
    %v2369 = vunpack.c.l.b16 %v665
    %v2370 = vunpack.c.l.b16 %v666
    %v2371 = vunpack.c.l.b16 %v667
    %v2372 = vunpack.c.l.b16 %v668
    %v2373 = vunpack.c.l.b16 %v669
    %v2374 = vunpack.c.l.b16 %v670
    %v2375 = vunpack.c.l.b16 %v671
    %v2376 = vunpack.c.l.b16 %v672
    %v2377 = vunpack.c.l.b16 %v673
    %v2378 = vunpack.c.l.b16 %v674
    %v2379 = vunpack.c.l.b16 %v675
    %v2380 = vunpack.c.l.b16 %v676
    %v2381 = vunpack.c.l.b16 %v677
    %v2382 = vunpack.c.l.b16 %v678
    %v2383 = vunpack.c.l.b16 %v679
    %v2384 = vunpack.c.l.b16 %v680
    %v2385 = vunpack.c.l.b16 %v681
    %v2386 = vunpack.c.l.b16 %v682
    %v2387 = vunpack.c.l.b16 %v683
    %v2388 = vunpack.c.l.b16 %v684
    %v2389 = vunpack.c.l.b16 %v685
    %v2390 = vunpack.c.l.b16 %v686
    %v2391 = vunpack.c.l.b16 %v687
    %v2392 = vunpack.c.l.b16 %v688
    %v2393 = vunpack.c.l.b16 %v689
    %v2394 = vunpack.c.l.b16 %v690
    %v2395 = vunpack.c.l.b16 %v691
    %v2396 = vunpack.c.l.b16 %v692
    %v2397 = vunpack.c.l.b16 %v693
    %v2398 = vunpack.c.l.b16 %v694
    %v2399 = vunpack.c.l.b16 %v695
    %v2400 = vunpack.c.l.b16 %v696
    %v2401 = vunpack.c.l.b16 %v697
    %v2402 = vunpack.c.l.b16 %v698
    %v2403 = vunpack.c.l.b16 %v699
    %v2404 = vunpack.c.l.b16 %v700
    %v2405 = vunpack.c.l.b16 %v701
    %v2406 = vunpack.c.l.b16 %v702
    %v2407 = vunpack.c.l.b16 %v703
    %v2408 = vunpack.c.l.b16 %v704
    %v2409 = vunpack.c.l.b16 %v705
    %v2410 = vunpack.c.l.b16 %v706
    %v2411 = vunpack.c.l.b16 %v707
    %v2412 = vunpack.c.l.b16 %v708
    %v2413 = vunpack.c.l.b16 %v709
    %v2414 = vunpack.c.l.b16 %v710
    %v2415 = vunpack.c.l.b16 %v711
    %v2416 = vunpack.c.l.b16 %v712
    %v2417 = vunpack.c.l.b16 %v713
    %v2418 = vunpack.c.l.b16 %v714
    %v2419 = vunpack.c.l.b16 %v715
    %v2420 = vunpack.c.l.b16 %v716
    %v2421 = vunpack.c.l.b16 %v717
    %v2422 = vunpack.c.l.b16 %v718
    %v2423 = vunpack.c.l.b16 %v719
    %v2424 = vunpack.c.l.b16 %v720
    %v2425 = vunpack.c.l.b16 %v721
    %v2426 = vunpack.c.l.b16 %v722
    %v2427 = vunpack.c.l.b16 %v723
    %v2428 = vunpack.c.l.b16 %v724
    %v2429 = vunpack.c.l.b16 %v725
    %v2430 = vunpack.c.l.b16 %v726
    %v2431 = vunpack.c.l.b16 %v727
    %v2432 = vunpack.c.l.b16 %v728
    %v2433 = vunpack.c.l.b16 %v729
    %v2434 = vunpack.c.l.b16 %v730
    %v2435 = vunpack.c.l.b16 %v731
    %v2436 = vunpack.c.l.b16 %v732
    %v2437 = vunpack.c.l.b16 %v733
    %v2438 = vunpack.c.l.b16 %v734
    %v2439 = vunpack.c.l.b16 %v735
    %v2440 = vunpack.c.l.b16 %v736
    %v2441 = vunpack.c.l.b16 %v737
    %v2442 = vunpack.c.l.b16 %v738
    %v2443 = vunpack.c.l.b16 %v739
    %v2444 = vunpack.c.l.b16 %v740
    %v2445 = vunpack.c.l.b16 %v741
    %v2446 = vunpack.c.l.b16 %v742
    %v2447 = vunpack.c.l.b16 %v743
    %v2448 = vunpack.c.l.b16 %v744
    %v2449 = vunpack.c.l.b16 %v745
    %v2450 = vunpack.c.l.b16 %v746
    %v2451 = vunpack.c.l.b16 %v747
    %v2452 = vunpack.c.l.b16 %v748
    %v2453 = vunpack.c.l.b16 %v749
    %v2454 = vunpack.c.l.b16 %v750
    %v2455 = vunpack.c.l.b16 %v751
    %v2456 = vunpack.c.l.b16 %v752
    %v2457 = vunpack.c.l.b16 %v753
    %v2458 = vunpack.c.l.b16 %v754
    %v2459 = vunpack.c.l.b16 %v755
    %v2460 = vunpack.c.l.b16 %v756
    %v2461 = vunpack.c.l.b16 %v757
    %v2462 = vunpack.c.l.b16 %v758
    %v2463 = vunpack.c.l.b16 %v759
    %v2464 = vunpack.c.l.b16 %v760
    %v2465 = vunpack.c.l.b16 %v761
    %v2466 = vunpack.c.l.b16 %v762
    %v2467 = vunpack.c.l.b16 %v763
    %v2468 = vunpack.c.l.b16 %v764
    %v2469 = vunpack.c.l.b16 %v765
    %v2470 = vunpack.c.l.b16 %v766
    %v2471 = vunpack.c.l.b16 %v767
    %v2472 = vunpack.c.l.b16 %v768
    %v2473 = vunpack.c.l.b16 %v769
    %v2474 = vunpack.c.l.b16 %v770
    %v2475 = vunpack.c.l.b16 %v771
    %v2476 = vunpack.c.l.b16 %v772
    %v2477 = vunpack.c.l.b16 %v773
    %v2478 = vunpack.c.l.b16 %v774
    %v2479 = vunpack.c.l.b16 %v775
    %v2480 = vunpack.c.l.b16 %v776
    %v2481 = vunpack.c.l.b16 %v777
    %v2482 = vunpack.c.l.b16 %v778
    %v2483 = vunpack.c.l.b16 %v779
    %v2484 = vunpack.c.l.b16 %v780
    %v2485 = vunpack.c.l.b16 %v781
    %v2486 = vunpack.c.l.b16 %v782
    %v2487 = vunpack.c.l.b16 %v783
    %v2488 = vunpack.c.l.b16 %v784
    %v2489 = vunpack.c.l.b16 %v785
    %v2490 = vunpack.c.l.b16 %v786
    %v2491 = vunpack.c.l.b16 %v787
    %v2492 = vunpack.c.l.b16 %v788
    %v2493 = vunpack.c.l.b16 %v789
    %v2494 = vunpack.c.l.b16 %v790
    %v2495 = vunpack.c.l.b16 %v791
    %v2496 = vunpack.c.l.b16 %v792
    %v2497 = vunpack.c.l.b16 %v793
    %v2498 = vunpack.c.l.b16 %v794
    %v2499 = vunpack.c.l.b16 %v795
    %v2500 = vunpack.c.l.b16 %v796
    %v2501 = vunpack.c.l.b16 %v797
    %v2502 = vunpack.c.l.b16 %v798
    %v2503 = vunpack.c.l.b16 %v799
    %v2504 = vunpack.c.l.b16 %v800
    %v2505 = vunpack.c.l.b16 %v801
    %v2506 = vunpack.c.l.b16 %v802
    %v2507 = vunpack.c.l.b16 %v803
    %v2508 = vunpack.c.l.b16 %v804
    %v2509 = vunpack.c.l.b16 %v805
    %v2510 = vunpack.c.l.b16 %v806
    %v2511 = vunpack.c.l.b16 %v807
    %v2512 = vunpack.c.l.b16 %v808
    %v2513 = vunpack.c.l.b16 %v809
    %v2514 = vunpack.c.l.b16 %v810
    %v2515 = vunpack.c.l.b16 %v811
    %v2516 = vunpack.c.l.b16 %v812
    %v2517 = vunpack.c.l.b16 %v813
    %v2518 = vunpack.c.l.b16 %v814
    %v2519 = vunpack.c.l.b16 %v815
    %v2520 = vunpack.c.l.b16 %v816
    %v2521 = vunpack.c.l.b16 %v817
    %v2522 = vunpack.c.l.b16 %v818
    %v2523 = vunpack.c.l.b16 %v819
    %v2524 = vunpack.c.l.b16 %v820
    %v2525 = vunpack.c.l.b16 %v821
    %v2526 = vunpack.c.l.b16 %v822
    %v2527 = vunpack.c.l.b16 %v823
    %v2528 = vunpack.c.l.b16 %v824
    %v2529 = vunpack.c.l.b16 %v825
    %v2530 = vunpack.c.l.b16 %v826
    %v2531 = vunpack.c.l.b16 %v827
    %v2532 = vunpack.c.l.b16 %v828
    %v2533 = vunpack.c.l.b16 %v829
    %v2534 = vunpack.c.l.b16 %v830
    %v2535 = vunpack.c.l.b16 %v831
    %v2536 = vunpack.c.l.b16 %v832
    %v2537 = vunpack.c.l.b16 %v833
    %v2538 = vunpack.c.l.b16 %v834
    %v2539 = vunpack.c.l.b16 %v835
    %v2540 = vunpack.c.l.b16 %v836
    %v2541 = vunpack.c.l.b16 %v837
    %v2542 = vunpack.c.l.b16 %v838
    %v2543 = vunpack.c.l.b16 %v839
    %v2544 = vunpack.c.l.b16 %v840
    %v2545 = vunpack.c.l.b16 %v841
    %v2546 = vunpack.c.l.b16 %v842
    %v2547 = vunpack.c.l.b16 %v843
    %v2548 = vunpack.c.l.b16 %v844
    %v2549 = vunpack.c.l.b16 %v845
    %v2550 = vunpack.c.l.b16 %v846
    %v2551 = vunpack.c.l.b16 %v847
    %v2552 = vunpack.c.l.b16 %v848
    %v2553 = vunpack.c.l.b16 %v849
    %v2554 = vunpack.c.l.b16 %v850
    %v2555 = vunpack.c.l.b16 %v851
    %v2556 = vunpack.c.l.b16 %v852
    %v2557 = vunpack.c.l.b16 %v853
    %v2558 = vunpack.c.l.b16 %v854
    %v2559 = vunpack.c.l.b16 %v855
    %v2560 = vunpack.c.l.b16 %v856
    %v2561 = vunpack.c.l.b16 %v857
    %v2562 = vunpack.c.l.b16 %v858
    %v2563 = vunpack.c.l.b16 %v859
    %v2564 = vunpack.c.l.b16 %v860
    %v2565 = vunpack.c.l.b16 %v861
    %v2566 = vunpack.c.l.b16 %v862
    %v2567 = vunpack.c.l.b16 %v863
    %v2568 = vunpack.c.l.b16 %v864
    %v2569 = vunpack.c.l.b16 %v865
    %v2570 = vunpack.c.l.b16 %v866
    %v2571 = vunpack.c.l.b16 %v867
    %v2572 = vunpack.c.l.b16 %v868
    %v2573 = vunpack.c.l.b16 %v869
    %v2574 = vunpack.c.l.b16 %v870
    %v2575 = vunpack.c.l.b16 %v871
    %v2576 = vunpack.c.l.b16 %v872
    %v2577 = vunpack.c.l.b16 %v873
    %v2578 = vunpack.c.l.b16 %v874
    %v2579 = vunpack.c.l.b16 %v875
    %v2580 = vunpack.c.l.b16 %v876
    %v2581 = vunpack.c.l.b16 %v877
    %v2582 = vunpack.c.l.b16 %v878
    %v2583 = vunpack.c.l.b16 %v879
    %v2584 = vunpack.c.l.b16 %v880
    %v2585 = vunpack.c.l.b16 %v881
    %v2586 = vunpack.c.l.b16 %v882
    %v2587 = vunpack.c.l.b16 %v883
    %v2588 = vunpack.c.l.b16 %v884
    %v2589 = vunpack.c.l.b16 %v885
    %v2590 = vunpack.c.l.b16 %v886
    %v2591 = vunpack.c.l.b16 %v887
    %v2592 = vunpack.c.l.b16 %v888
    %v2593 = vunpack.c.l.b16 %v889
    %v2594 = vunpack.c.l.b16 %v890
    %v2595 = vunpack.c.l.b16 %v891
    %v2596 = vunpack.c.l.b16 %v892
    %v2597 = vunpack.c.l.b16 %v893
    %v2598 = vunpack.c.l.b16 %v894
    %v2599 = vunpack.c.l.b16 %v895
    %v2600 = vunpack.c.l.b16 %v896
    %v2601 = vunpack.c.l.b16 %v897
    %v2602 = vunpack.c.l.b16 %v898
    %v2603 = vunpack.c.l.b16 %v899
    %v2604 = vunpack.c.l.b16 %v900
    %v2605 = vunpack.c.l.b16 %v901
    %v2606 = vunpack.c.l.b16 %v902
    %v2607 = vunpack.c.l.b16 %v903
    %v2608 = vunpack.c.l.b16 %v904
    %v2609 = vunpack.c.l.b16 %v905
    %v2610 = vunpack.c.l.b16 %v906
    %v2611 = vunpack.c.l.b16 %v907
    %v2612 = vunpack.c.l.b16 %v908
    %v2613 = vunpack.c.l.b16 %v909
    %v2614 = vunpack.c.l.b16 %v910
    %v2615 = vunpack.c.l.b16 %v911
    %v2616 = vunpack.c.l.b16 %v912
    %v2617 = vunpack.c.l.b16 %v913
    %v2618 = vunpack.c.l.b16 %v914
    %v2619 = vunpack.c.l.b16 %v915
    %v2620 = vunpack.c.l.b16 %v916
    %v2621 = vunpack.c.l.b16 %v917
    %v2622 = vunpack.c.l.b16 %v918
    %v2623 = vunpack.c.l.b16 %v919
    %v2624 = vunpack.c.l.b16 %v920
    %v2625 = vunpack.c.l.b16 %v921
    %v2626 = vunpack.c.l.b16 %v922
    %v2627 = vunpack.c.l.b16 %v923
    %v2628 = vunpack.c.l.b16 %v924
    %v2629 = vunpack.c.l.b16 %v925
    %v2630 = vunpack.c.l.b16 %v926
    %v2631 = vunpack.c.l.b16 %v927
    %v2632 = vunpack.c.l.b16 %v928
    %v2633 = vunpack.c.l.b16 %v929
    %v2634 = vunpack.c.l.b16 %v930
    %v2635 = vunpack.c.l.b16 %v931
    %v2636 = vunpack.c.l.b16 %v932
    %v2637 = vunpack.c.l.b16 %v933
    %v2638 = vunpack.c.l.b16 %v934
    %v2639 = vunpack.c.l.b16 %v935
    %v2640 = vunpack.c.l.b16 %v936
    %v2641 = vunpack.c.l.b16 %v937
    %v2642 = vunpack.c.l.b16 %v938
    %v2643 = vunpack.c.l.b16 %v939
    %v2644 = vunpack.c.l.b16 %v940
    %v2645 = vunpack.c.l.b16 %v941
    %v2646 = vunpack.c.l.b16 %v942
    %v2647 = vunpack.c.l.b16 %v943
    %v2648 = vunpack.c.l.b16 %v944
    %v2649 = vunpack.c.l.b16 %v945
    %v2650 = vunpack.c.l.b16 %v946
    %v2651 = vunpack.c.l.b16 %v947
    %v2652 = vunpack.c.l.b16 %v948
    %v2653 = vunpack.c.l.b16 %v949
    %v2654 = vunpack.c.l.b16 %v950
    %v2655 = vunpack.c.l.b16 %v951
    %v2656 = vpack.c.b16 %v1889, %v1888
    %v2657 = vpack.c.b16 %v1891, %v1890
    %v2658 = vpack.c.b16 %v1893, %v1892
    %v2659 = vpack.c.b16 %v1895, %v1894
    %v2660 = vpack.c.b16 %v1897, %v1896
    %v2661 = vpack.c.b16 %v1899, %v1898
    %v2662 = vpack.c.b16 %v1901, %v1900
    %v2663 = vpack.c.b16 %v1903, %v1902
    %v2664 = vpack.c.b16 %v1905, %v1904
    %v2665 = vpack.c.b16 %v1907, %v1906
    %v2666 = vpack.c.b16 %v1909, %v1908
    %v2667 = vpack.c.b16 %v1911, %v1910
    %v2668 = vpack.c.b16 %v1913, %v1912
    %v2669 = vpack.c.b16 %v1915, %v1914
    %v2670 = vpack.c.b16 %v1917, %v1916
    %v2671 = vpack.c.b16 %v1919, %v1918
    %v2672 = vpack.c.b16 %v1921, %v1920
    %v2673 = vpack.c.b16 %v1923, %v1922
    %v2674 = vpack.c.b16 %v1925, %v1924
    %v2675 = vpack.c.b16 %v1927, %v1926
    %v2676 = vpack.c.b16 %v1929, %v1928
    %v2677 = vpack.c.b16 %v1931, %v1930
    %v2678 = vpack.c.b16 %v1933, %v1932
    %v2679 = vpack.c.b16 %v1935, %v1934
    %v2680 = vpack.c.b16 %v1937, %v1936
    %v2681 = vpack.c.b16 %v1939, %v1938
    %v2682 = vpack.c.b16 %v1941, %v1940
    %v2683 = vpack.c.b16 %v1943, %v1942
    %v2684 = vpack.c.b16 %v1945, %v1944
    %v2685 = vpack.c.b16 %v1947, %v1946
    %v2686 = vpack.c.b16 %v1949, %v1948
    %v2687 = vpack.c.b16 %v1951, %v1950
    %v2688 = vpack.c.b16 %v1953, %v1952
    %v2689 = vpack.c.b16 %v1955, %v1954
    %v2690 = vpack.c.b16 %v1957, %v1956
    %v2691 = vpack.c.b16 %v1959, %v1958
    %v2692 = vpack.c.b16 %v1961, %v1960
    %v2693 = vpack.c.b16 %v1963, %v1962
    %v2694 = vpack.c.b16 %v1965, %v1964
    %v2695 = vpack.c.b16 %v1967, %v1966
    %v2696 = vpack.c.b16 %v1969, %v1968
    %v2697 = vpack.c.b16 %v1971, %v1970
    %v2698 = vpack.c.b16 %v1973, %v1972
    %v2699 = vpack.c.b16 %v1975, %v1974
    %v2700 = vpack.c.b16 %v1977, %v1976
    %v2701 = vpack.c.b16 %v1979, %v1978
    %v2702 = vpack.c.b16 %v1981, %v1980
    %v2703 = vpack.c.b16 %v1983, %v1982
    %v2704 = vpack.c.b16 %v1985, %v1984
    %v2705 = vpack.c.b16 %v1987, %v1986
    %v2706 = vpack.c.b16 %v1989, %v1988
    %v2707 = vpack.c.b16 %v1991, %v1990
    %v2708 = vpack.c.b16 %v1993, %v1992
    %v2709 = vpack.c.b16 %v1995, %v1994
    %v2710 = vpack.c.b16 %v1997, %v1996
    %v2711 = vpack.c.b16 %v1999, %v1998
    %v2712 = vpack.c.b16 %v2001, %v2000
    %v2713 = vpack.c.b16 %v2003, %v2002
    %v2714 = vpack.c.b16 %v2005, %v2004
    %v2715 = vpack.c.b16 %v2007, %v2006
    %v2716 = vpack.c.b16 %v2009, %v2008
    %v2717 = vpack.c.b16 %v2011, %v2010
    %v2718 = vpack.c.b16 %v2013, %v2012
    %v2719 = vpack.c.b16 %v2015, %v2014
    %v2720 = vpack.c.b16 %v2017, %v2016
    %v2721 = vpack.c.b16 %v2019, %v2018
    %v2722 = vpack.c.b16 %v2021, %v2020
    %v2723 = vpack.c.b16 %v2023, %v2022
    %v2724 = vpack.c.b16 %v2025, %v2024
    %v2725 = vpack.c.b16 %v2027, %v2026
    %v2726 = vpack.c.b16 %v2029, %v2028
    %v2727 = vpack.c.b16 %v2031, %v2030
    %v2728 = vpack.c.b16 %v2033, %v2032
    %v2729 = vpack.c.b16 %v2035, %v2034
    %v2730 = vpack.c.b16 %v2037, %v2036
    %v2731 = vpack.c.b16 %v2039, %v2038
    %v2732 = vpack.c.b16 %v2041, %v2040
    %v2733 = vpack.c.b16 %v2043, %v2042
    %v2734 = vpack.c.b16 %v2045, %v2044
    %v2735 = vpack.c.b16 %v2047, %v2046
    %v2736 = vpack.c.b16 %v2049, %v2048
    %v2737 = vpack.c.b16 %v2051, %v2050
    %v2738 = vpack.c.b16 %v2053, %v2052
    %v2739 = vpack.c.b16 %v2055, %v2054
    %v2740 = vpack.c.b16 %v2057, %v2056
    %v2741 = vpack.c.b16 %v2059, %v2058
    %v2742 = vpack.c.b16 %v2061, %v2060
    %v2743 = vpack.c.b16 %v2063, %v2062
    %v2744 = vpack.c.b16 %v2065, %v2064
    %v2745 = vpack.c.b16 %v2067, %v2066
    %v2746 = vpack.c.b16 %v2069, %v2068
    %v2747 = vpack.c.b16 %v2071, %v2070
    %v2748 = vpack.c.b16 %v2073, %v2072
    %v2749 = vpack.c.b16 %v2075, %v2074
    %v2750 = vpack.c.b16 %v2077, %v2076
    %v2751 = vpack.c.b16 %v2079, %v2078
    %v2752 = vpack.c.b16 %v2081, %v2080
    %v2753 = vpack.c.b16 %v2083, %v2082
    %v2754 = vpack.c.b16 %v2085, %v2084
    %v2755 = vpack.c.b16 %v2087, %v2086
    %v2756 = vpack.c.b16 %v2089, %v2088
    %v2757 = vpack.c.b16 %v2091, %v2090
    %v2758 = vpack.c.b16 %v2093, %v2092
    %v2759 = vpack.c.b16 %v2095, %v2094
    %v2760 = vpack.c.b16 %v2097, %v2096
    %v2761 = vpack.c.b16 %v2099, %v2098
    %v2762 = vpack.c.b16 %v2101, %v2100
    %v2763 = vpack.c.b16 %v2103, %v2102
    %v2764 = vpack.c.b16 %v2105, %v2104
    %v2765 = vpack.c.b16 %v2107, %v2106
    %v2766 = vpack.c.b16 %v2109, %v2108
    %v2767 = vpack.c.b16 %v2111, %v2110
    %v2768 = vpack.c.b16 %v2113, %v2112
    %v2769 = vpack.c.b16 %v2115, %v2114
    %v2770 = vpack.c.b16 %v2117, %v2116
    %v2771 = vpack.c.b16 %v2119, %v2118
    %v2772 = vpack.c.b16 %v2121, %v2120
    %v2773 = vpack.c.b16 %v2123, %v2122
    %v2774 = vpack.c.b16 %v2125, %v2124
    %v2775 = vpack.c.b16 %v2127, %v2126
    %v2776 = vpack.c.b16 %v2129, %v2128
    %v2777 = vpack.c.b16 %v2131, %v2130
    %v2778 = vpack.c.b16 %v2133, %v2132
    %v2779 = vpack.c.b16 %v2135, %v2134
    %v2780 = vpack.c.b16 %v2137, %v2136
    %v2781 = vpack.c.b16 %v2139, %v2138
    %v2782 = vpack.c.b16 %v2141, %v2140
    %v2783 = vpack.c.b16 %v2143, %v2142
    %v2784 = vpack.c.b16 %v2145, %v2144
    %v2785 = vpack.c.b16 %v2147, %v2146
    %v2786 = vpack.c.b16 %v2149, %v2148
    %v2787 = vpack.c.b16 %v2151, %v2150
    %v2788 = vpack.c.b16 %v2153, %v2152
    %v2789 = vpack.c.b16 %v2155, %v2154
    %v2790 = vpack.c.b16 %v2157, %v2156
    %v2791 = vpack.c.b16 %v2159, %v2158
    %v2792 = vpack.c.b16 %v2161, %v2160
    %v2793 = vpack.c.b16 %v2163, %v2162
    %v2794 = vpack.c.b16 %v2165, %v2164
    %v2795 = vpack.c.b16 %v2167, %v2166
    %v2796 = vpack.c.b16 %v2169, %v2168
    %v2797 = vpack.c.b16 %v2171, %v2170
    %v2798 = vpack.c.b16 %v2173, %v2172
    %v2799 = vpack.c.b16 %v2175, %v2174
    %v2800 = vpack.c.b16 %v2177, %v2176
    %v2801 = vpack.c.b16 %v2179, %v2178
    %v2802 = vpack.c.b16 %v2181, %v2180
    %v2803 = vpack.c.b16 %v2183, %v2182
    %v2804 = vpack.c.b16 %v2185, %v2184
    %v2805 = vpack.c.b16 %v2187, %v2186
    %v2806 = vpack.c.b16 %v2189, %v2188
    %v2807 = vpack.c.b16 %v2191, %v2190
    %v2808 = vpack.c.b16 %v2193, %v2192
    %v2809 = vpack.c.b16 %v2195, %v2194
    %v2810 = vpack.c.b16 %v2197, %v2196
    %v2811 = vpack.c.b16 %v2199, %v2198
    %v2812 = vpack.c.b16 %v2201, %v2200
    %v2813 = vpack.c.b16 %v2203, %v2202
    %v2814 = vpack.c.b16 %v2205, %v2204
    %v2815 = vpack.c.b16 %v2207, %v2206
    %v2816 = vpack.c.b16 %v2209, %v2208
    %v2817 = vpack.c.b16 %v2211, %v2210
    %v2818 = vpack.c.b16 %v2213, %v2212
    %v2819 = vpack.c.b16 %v2215, %v2214
    %v2820 = vpack.c.b16 %v2217, %v2216
    %v2821 = vpack.c.b16 %v2219, %v2218
    %v2822 = vpack.c.b16 %v2221, %v2220
    %v2823 = vpack.c.b16 %v2223, %v2222
    %v2824 = vpack.c.b16 %v2225, %v2224
    %v2825 = vpack.c.b16 %v2227, %v2226
    %v2826 = vpack.c.b16 %v2229, %v2228
    %v2827 = vpack.c.b16 %v2231, %v2230
    %v2828 = vpack.c.b16 %v2233, %v2232
    %v2829 = vpack.c.b16 %v2235, %v2234
    %v2830 = vpack.c.b16 %v2237, %v2236
    %v2831 = vpack.c.b16 %v2239, %v2238
    %v2832 = vpack.c.b16 %v2241, %v2240
    %v2833 = vpack.c.b16 %v2243, %v2242
    %v2834 = vpack.c.b16 %v2245, %v2244
    %v2835 = vpack.c.b16 %v2247, %v2246
    %v2836 = vpack.c.b16 %v2249, %v2248
    %v2837 = vpack.c.b16 %v2251, %v2250
    %v2838 = vpack.c.b16 %v2253, %v2252
    %v2839 = vpack.c.b16 %v2255, %v2254
    %v2840 = vpack.c.b16 %v2257, %v2256
    %v2841 = vpack.c.b16 %v2259, %v2258
    %v2842 = vpack.c.b16 %v2261, %v2260
    %v2843 = vpack.c.b16 %v2263, %v2262
    %v2844 = vpack.c.b16 %v2265, %v2264
    %v2845 = vpack.c.b16 %v2267, %v2266
    %v2846 = vpack.c.b16 %v2269, %v2268
    %v2847 = vpack.c.b16 %v2271, %v2270
    %v2848 = vpack.c.b16 %v2273, %v2272
    %v2849 = vpack.c.b16 %v2275, %v2274
    %v2850 = vpack.c.b16 %v2277, %v2276
    %v2851 = vpack.c.b16 %v2279, %v2278
    %v2852 = vpack.c.b16 %v2281, %v2280
    %v2853 = vpack.c.b16 %v2283, %v2282
    %v2854 = vpack.c.b16 %v2285, %v2284
    %v2855 = vpack.c.b16 %v2287, %v2286
    %v2856 = vpack.c.b16 %v2289, %v2288
    %v2857 = vpack.c.b16 %v2291, %v2290
    %v2858 = vpack.c.b16 %v2293, %v2292
    %v2859 = vpack.c.b16 %v2295, %v2294
    %v2860 = vpack.c.b16 %v2297, %v2296
    %v2861 = vpack.c.b16 %v2299, %v2298
    %v2862 = vpack.c.b16 %v2301, %v2300
    %v2863 = vpack.c.b16 %v2303, %v2302
    %v2864 = vpack.c.b16 %v2305, %v2304
    %v2865 = vpack.c.b16 %v2307, %v2306
    %v2866 = vpack.c.b16 %v2309, %v2308
    %v2867 = vpack.c.b16 %v2311, %v2310
    %v2868 = vpack.c.b16 %v2313, %v2312
    %v2869 = vpack.c.b16 %v2315, %v2314
    %v2870 = vpack.c.b16 %v2317, %v2316
    %v2871 = vpack.c.b16 %v2319, %v2318
    %v2872 = vpack.c.b16 %v2321, %v2320
    %v2873 = vpack.c.b16 %v2323, %v2322
    %v2874 = vpack.c.b16 %v2325, %v2324
    %v2875 = vpack.c.b16 %v2327, %v2326
    %v2876 = vpack.c.b16 %v2329, %v2328
    %v2877 = vpack.c.b16 %v2331, %v2330
    %v2878 = vpack.c.b16 %v2333, %v2332
    %v2879 = vpack.c.b16 %v2335, %v2334
    %v2880 = vpack.c.b16 %v2337, %v2336
    %v2881 = vpack.c.b16 %v2339, %v2338
    %v2882 = vpack.c.b16 %v2341, %v2340
    %v2883 = vpack.c.b16 %v2343, %v2342
    %v2884 = vpack.c.b16 %v2345, %v2344
    %v2885 = vpack.c.b16 %v2347, %v2346
    %v2886 = vpack.c.b16 %v2349, %v2348
    %v2887 = vpack.c.b16 %v2351, %v2350
    %v2888 = vpack.c.b16 %v2353, %v2352
    %v2889 = vpack.c.b16 %v2355, %v2354
    %v2890 = vpack.c.b16 %v2357, %v2356
    %v2891 = vpack.c.b16 %v2359, %v2358
    %v2892 = vpack.c.b16 %v2361, %v2360
    %v2893 = vpack.c.b16 %v2363, %v2362
    %v2894 = vpack.c.b16 %v2365, %v2364
    %v2895 = vpack.c.b16 %v2367, %v2366
    %v2896 = vpack.c.b16 %v2369, %v2368
    %v2897 = vpack.c.b16 %v2371, %v2370
    %v2898 = vpack.c.b16 %v2373, %v2372
    %v2899 = vpack.c.b16 %v2375, %v2374
    %v2900 = vpack.c.b16 %v2377, %v2376
    %v2901 = vpack.c.b16 %v2379, %v2378
    %v2902 = vpack.c.b16 %v2381, %v2380
    %v2903 = vpack.c.b16 %v2383, %v2382
    %v2904 = vpack.c.b16 %v2385, %v2384
    %v2905 = vpack.c.b16 %v2387, %v2386
    %v2906 = vpack.c.b16 %v2389, %v2388
    %v2907 = vpack.c.b16 %v2391, %v2390
    %v2908 = vpack.c.b16 %v2393, %v2392
    %v2909 = vpack.c.b16 %v2395, %v2394
    %v2910 = vpack.c.b16 %v2397, %v2396
    %v2911 = vpack.c.b16 %v2399, %v2398
    %v2912 = vpack.c.b16 %v2401, %v2400
    %v2913 = vpack.c.b16 %v2403, %v2402
    %v2914 = vpack.c.b16 %v2405, %v2404
    %v2915 = vpack.c.b16 %v2407, %v2406
    %v2916 = vpack.c.b16 %v2409, %v2408
    %v2917 = vpack.c.b16 %v2411, %v2410
    %v2918 = vpack.c.b16 %v2413, %v2412
    %v2919 = vpack.c.b16 %v2415, %v2414
    %v2920 = vpack.c.b16 %v2417, %v2416
    %v2921 = vpack.c.b16 %v2419, %v2418
    %v2922 = vpack.c.b16 %v2421, %v2420
    %v2923 = vpack.c.b16 %v2423, %v2422
    %v2924 = vpack.c.b16 %v2425, %v2424
    %v2925 = vpack.c.b16 %v2427, %v2426
    %v2926 = vpack.c.b16 %v2429, %v2428
    %v2927 = vpack.c.b16 %v2431, %v2430
    %v2928 = vpack.c.b16 %v2433, %v2432
    %v2929 = vpack.c.b16 %v2435, %v2434
    %v2930 = vpack.c.b16 %v2437, %v2436
    %v2931 = vpack.c.b16 %v2439, %v2438
    %v2932 = vpack.c.b16 %v2441, %v2440
    %v2933 = vpack.c.b16 %v2443, %v2442
    %v2934 = vpack.c.b16 %v2445, %v2444
    %v2935 = vpack.c.b16 %v2447, %v2446
    %v2936 = vpack.c.b16 %v2449, %v2448
    %v2937 = vpack.c.b16 %v2451, %v2450
    %v2938 = vpack.c.b16 %v2453, %v2452
    %v2939 = vpack.c.b16 %v2455, %v2454
    %v2940 = vpack.c.b16 %v2457, %v2456
    %v2941 = vpack.c.b16 %v2459, %v2458
    %v2942 = vpack.c.b16 %v2461, %v2460
    %v2943 = vpack.c.b16 %v2463, %v2462
    %v2944 = vpack.c.b16 %v2465, %v2464
    %v2945 = vpack.c.b16 %v2467, %v2466
    %v2946 = vpack.c.b16 %v2469, %v2468
    %v2947 = vpack.c.b16 %v2471, %v2470
    %v2948 = vpack.c.b16 %v2473, %v2472
    %v2949 = vpack.c.b16 %v2475, %v2474
    %v2950 = vpack.c.b16 %v2477, %v2476
    %v2951 = vpack.c.b16 %v2479, %v2478
    %v2952 = vpack.c.b16 %v2481, %v2480
    %v2953 = vpack.c.b16 %v2483, %v2482
    %v2954 = vpack.c.b16 %v2485, %v2484
    %v2955 = vpack.c.b16 %v2487, %v2486
    %v2956 = vpack.c.b16 %v2489, %v2488
    %v2957 = vpack.c.b16 %v2491, %v2490
    %v2958 = vpack.c.b16 %v2493, %v2492
    %v2959 = vpack.c.b16 %v2495, %v2494
    %v2960 = vpack.c.b16 %v2497, %v2496
    %v2961 = vpack.c.b16 %v2499, %v2498
    %v2962 = vpack.c.b16 %v2501, %v2500
    %v2963 = vpack.c.b16 %v2503, %v2502
    %v2964 = vpack.c.b16 %v2505, %v2504
    %v2965 = vpack.c.b16 %v2507, %v2506
    %v2966 = vpack.c.b16 %v2509, %v2508
    %v2967 = vpack.c.b16 %v2511, %v2510
    %v2968 = vpack.c.b16 %v2513, %v2512
    %v2969 = vpack.c.b16 %v2515, %v2514
    %v2970 = vpack.c.b16 %v2517, %v2516
    %v2971 = vpack.c.b16 %v2519, %v2518
    %v2972 = vpack.c.b16 %v2521, %v2520
    %v2973 = vpack.c.b16 %v2523, %v2522
    %v2974 = vpack.c.b16 %v2525, %v2524
    %v2975 = vpack.c.b16 %v2527, %v2526
    %v2976 = vpack.c.b16 %v2529, %v2528
    %v2977 = vpack.c.b16 %v2531, %v2530
    %v2978 = vpack.c.b16 %v2533, %v2532
    %v2979 = vpack.c.b16 %v2535, %v2534
    %v2980 = vpack.c.b16 %v2537, %v2536
    %v2981 = vpack.c.b16 %v2539, %v2538
    %v2982 = vpack.c.b16 %v2541, %v2540
    %v2983 = vpack.c.b16 %v2543, %v2542
    %v2984 = vpack.c.b16 %v2545, %v2544
    %v2985 = vpack.c.b16 %v2547, %v2546
    %v2986 = vpack.c.b16 %v2549, %v2548
    %v2987 = vpack.c.b16 %v2551, %v2550
    %v2988 = vpack.c.b16 %v2553, %v2552
    %v2989 = vpack.c.b16 %v2555, %v2554
    %v2990 = vpack.c.b16 %v2557, %v2556
    %v2991 = vpack.c.b16 %v2559, %v2558
    %v2992 = vpack.c.b16 %v2561, %v2560
    %v2993 = vpack.c.b16 %v2563, %v2562
    %v2994 = vpack.c.b16 %v2565, %v2564
    %v2995 = vpack.c.b16 %v2567, %v2566
    %v2996 = vpack.c.b16 %v2569, %v2568
    %v2997 = vpack.c.b16 %v2571, %v2570
    %v2998 = vpack.c.b16 %v2573, %v2572
    %v2999 = vpack.c.b16 %v2575, %v2574
    %v3000 = vpack.c.b16 %v2577, %v2576
    %v3001 = vpack.c.b16 %v2579, %v2578
    %v3002 = vpack.c.b16 %v2581, %v2580
    %v3003 = vpack.c.b16 %v2583, %v2582
    %v3004 = vpack.c.b16 %v2585, %v2584
    %v3005 = vpack.c.b16 %v2587, %v2586
    %v3006 = vpack.c.b16 %v2589, %v2588
    %v3007 = vpack.c.b16 %v2591, %v2590
    %v3008 = vpack.c.b16 %v2593, %v2592
    %v3009 = vpack.c.b16 %v2595, %v2594
    %v3010 = vpack.c.b16 %v2597, %v2596
    %v3011 = vpack.c.b16 %v2599, %v2598
    %v3012 = vpack.c.b16 %v2601, %v2600
    %v3013 = vpack.c.b16 %v2603, %v2602
    %v3014 = vpack.c.b16 %v2605, %v2604
    %v3015 = vpack.c.b16 %v2607, %v2606
    %v3016 = vpack.c.b16 %v2609, %v2608
    %v3017 = vpack.c.b16 %v2611, %v2610
    %v3018 = vpack.c.b16 %v2613, %v2612
    %v3019 = vpack.c.b16 %v2615, %v2614
    %v3020 = vpack.c.b16 %v2617, %v2616
    %v3021 = vpack.c.b16 %v2619, %v2618
    %v3022 = vpack.c.b16 %v2621, %v2620
    %v3023 = vpack.c.b16 %v2623, %v2622
    %v3024 = vpack.c.b16 %v2625, %v2624
    %v3025 = vpack.c.b16 %v2627, %v2626
    %v3026 = vpack.c.b16 %v2629, %v2628
    %v3027 = vpack.c.b16 %v2631, %v2630
    %v3028 = vpack.c.b16 %v2633, %v2632
    %v3029 = vpack.c.b16 %v2635, %v2634
    %v3030 = vpack.c.b16 %v2637, %v2636
    %v3031 = vpack.c.b16 %v2639, %v2638
    %v3032 = vpack.c.b16 %v2641, %v2640
    %v3033 = vpack.c.b16 %v2643, %v2642
    %v3034 = vpack.c.b16 %v2645, %v2644
    %v3035 = vpack.c.b16 %v2647, %v2646
    %v3036 = vpack.c.b16 %v2649, %v2648
    %v3037 = vpack.c.b16 %v2651, %v2650
    %v3038 = vpack.c.b16 %v2653, %v2652
    %v3039 = vpack.c.b16 %v2655, %v2654
    %3424 = vmatpush.bf16.msra.mxu0 %v2663
    %3425 = vmatpush.bf16.msra.mxu0 %v2662
    %3426 = vmatpush.bf16.msra.mxu0 %v2661
    %3427 = vmatpush.bf16.msra.mxu0 %v2660
    %3428 = vmatpush.bf16.msra.mxu0 %v2659
    %3429 = vmatpush.bf16.msra.mxu0 %v2658
    %3430 = vmatpush.bf16.msra.mxu0 %v2657
    %3431 = vmatpush.bf16.msra.mxu0 %v2656
    %3432 = vmatmul.bf16.gmra.mxu0 %v1024
    %v3433 = vpop.f32.mrf.mxu0
    %v3434 = vadd.f32 0.0, %v3433
    %v3435 = vpop.f32.mrf.mxu0
    %3436 = vdwg.mxu0
    %3437 = vmatpush.bf16.msra.mxu0 %v2671
    %3438 = vmatpush.bf16.msra.mxu0 %v2670
    %3439 = vmatpush.bf16.msra.mxu0 %v2669
    %3440 = vmatpush.bf16.msra.mxu0 %v2668
    %3441 = vmatpush.bf16.msra.mxu0 %v2667
    %3442 = vmatpush.bf16.msra.mxu0 %v2666
    %3443 = vmatpush.bf16.msra.mxu0 %v2665
    %3444 = vmatpush.bf16.msra.mxu0 %v2664
    %3445 = vmatmul.bf16.gmra.mxu0 %v1025
    %v3446 = vpop.f32.mrf.mxu0
    %v3447 = vadd.f32 %v3434, %v3446
    %v3448 = vpop.f32.mrf.mxu0
    %3449 = vdwg.mxu0
    %3450 = vmatpush.bf16.msra.mxu0 %v2679
    %3451 = vmatpush.bf16.msra.mxu0 %v2678
    %3452 = vmatpush.bf16.msra.mxu0 %v2677
    %3453 = vmatpush.bf16.msra.mxu0 %v2676
    %3454 = vmatpush.bf16.msra.mxu0 %v2675
    %3455 = vmatpush.bf16.msra.mxu0 %v2674
    %3456 = vmatpush.bf16.msra.mxu0 %v2673
    %3457 = vmatpush.bf16.msra.mxu0 %v2672
    %3458 = vmatmul.bf16.gmra.mxu0 %v1026
    %v3459 = vpop.f32.mrf.mxu0
    %v3460 = vadd.f32 %v3447, %v3459
    %v3461 = vpop.f32.mrf.mxu0
    %3462 = vdwg.mxu0
    %3463 = vmatpush.bf16.msra.mxu0 %v2687
    %3464 = vmatpush.bf16.msra.mxu0 %v2686
    %3465 = vmatpush.bf16.msra.mxu0 %v2685
    %3466 = vmatpush.bf16.msra.mxu0 %v2684
    %3467 = vmatpush.bf16.msra.mxu0 %v2683
    %3468 = vmatpush.bf16.msra.mxu0 %v2682
    %3469 = vmatpush.bf16.msra.mxu0 %v2681
    %3470 = vmatpush.bf16.msra.mxu0 %v2680
    %3471 = vmatmul.bf16.gmra.mxu0 %v1027
    %v3472 = vpop.f32.mrf.mxu0
    %v3473 = vadd.f32 %v3460, %v3472
    %v3474 = vpop.f32.mrf.mxu0
    %3475 = vdwg.mxu0
    %3476 = vmatpush.bf16.msra.mxu0 %v2695
    %3477 = vmatpush.bf16.msra.mxu0 %v2694
    %3478 = vmatpush.bf16.msra.mxu0 %v2693
    %3479 = vmatpush.bf16.msra.mxu0 %v2692
    %3480 = vmatpush.bf16.msra.mxu0 %v2691
    %3481 = vmatpush.bf16.msra.mxu0 %v2690
    %3482 = vmatpush.bf16.msra.mxu0 %v2689
    %3483 = vmatpush.bf16.msra.mxu0 %v2688
    %3484 = vmatmul.bf16.gmra.mxu0 %v1028
    %v3485 = vpop.f32.mrf.mxu0
    %v3486 = vadd.f32 %v3473, %v3485
    %v3487 = vpop.f32.mrf.mxu0
    %3488 = vdwg.mxu0
    %3489 = vmatpush.bf16.msra.mxu0 %v2703
    %3490 = vmatpush.bf16.msra.mxu0 %v2702
    %3491 = vmatpush.bf16.msra.mxu0 %v2701
    %3492 = vmatpush.bf16.msra.mxu0 %v2700
    %3493 = vmatpush.bf16.msra.mxu0 %v2699
    %3494 = vmatpush.bf16.msra.mxu0 %v2698
    %3495 = vmatpush.bf16.msra.mxu0 %v2697
    %3496 = vmatpush.bf16.msra.mxu0 %v2696
    %3497 = vmatmul.bf16.gmra.mxu0 %v1029
    %v3498 = vpop.f32.mrf.mxu0
    %v3499 = vadd.f32 %v3486, %v3498
    %v3500 = vpop.f32.mrf.mxu0
    %3501 = vdwg.mxu0
    %3502 = vmatpush.bf16.msra.mxu0 %v2711
    %3503 = vmatpush.bf16.msra.mxu0 %v2710
    %3504 = vmatpush.bf16.msra.mxu0 %v2709
    %3505 = vmatpush.bf16.msra.mxu0 %v2708
    %3506 = vmatpush.bf16.msra.mxu0 %v2707
    %3507 = vmatpush.bf16.msra.mxu0 %v2706
    %3508 = vmatpush.bf16.msra.mxu0 %v2705
    %3509 = vmatpush.bf16.msra.mxu0 %v2704
    %3510 = vmatmul.bf16.gmra.mxu0 %v1030
    %v3511 = vpop.f32.mrf.mxu0
    %v3512 = vadd.f32 %v3499, %v3511
    %v3513 = vpop.f32.mrf.mxu0
    %3514 = vdwg.mxu0
    %3515 = vmatpush.bf16.msra.mxu0 %v2719
    %3516 = vmatpush.bf16.msra.mxu0 %v2718
    %3517 = vmatpush.bf16.msra.mxu0 %v2717
    %3518 = vmatpush.bf16.msra.mxu0 %v2716
    %3519 = vmatpush.bf16.msra.mxu0 %v2715
    %3520 = vmatpush.bf16.msra.mxu0 %v2714
    %3521 = vmatpush.bf16.msra.mxu0 %v2713
    %3522 = vmatpush.bf16.msra.mxu0 %v2712
    %3523 = vmatmul.bf16.gmra.mxu0 %v1031
    %v3524 = vpop.f32.mrf.mxu0
    %v3525 = vadd.f32 %v3512, %v3524
    %v3526 = vpop.f32.mrf.mxu0
    %3527 = vdwg.mxu0
    %3528 = vmatpush.bf16.msra.mxu0 %v2727
    %3529 = vmatpush.bf16.msra.mxu0 %v2726
    %3530 = vmatpush.bf16.msra.mxu0 %v2725
    %3531 = vmatpush.bf16.msra.mxu0 %v2724
    %3532 = vmatpush.bf16.msra.mxu0 %v2723
    %3533 = vmatpush.bf16.msra.mxu0 %v2722
    %3534 = vmatpush.bf16.msra.mxu0 %v2721
    %3535 = vmatpush.bf16.msra.mxu0 %v2720
    %3536 = vmatmul.bf16.gmra.mxu0 %v1032
    %v3537 = vpop.f32.mrf.mxu0
    %v3538 = vadd.f32 %v3525, %v3537
    %v3539 = vpop.f32.mrf.mxu0
    %3540 = vdwg.mxu0
    %3541 = vmatpush.bf16.msra.mxu0 %v2735
    %3542 = vmatpush.bf16.msra.mxu0 %v2734
    %3543 = vmatpush.bf16.msra.mxu0 %v2733
    %3544 = vmatpush.bf16.msra.mxu0 %v2732
    %3545 = vmatpush.bf16.msra.mxu0 %v2731
    %3546 = vmatpush.bf16.msra.mxu0 %v2730
    %3547 = vmatpush.bf16.msra.mxu0 %v2729
    %3548 = vmatpush.bf16.msra.mxu0 %v2728
    %3549 = vmatmul.bf16.gmra.mxu0 %v1033
    %v3550 = vpop.f32.mrf.mxu0
    %v3551 = vadd.f32 %v3538, %v3550
    %v3552 = vpop.f32.mrf.mxu0
    %3553 = vdwg.mxu0
    %3554 = vmatpush.bf16.msra.mxu0 %v2743
    %3555 = vmatpush.bf16.msra.mxu0 %v2742
    %3556 = vmatpush.bf16.msra.mxu0 %v2741
    %3557 = vmatpush.bf16.msra.mxu0 %v2740
    %3558 = vmatpush.bf16.msra.mxu0 %v2739
    %3559 = vmatpush.bf16.msra.mxu0 %v2738
    %3560 = vmatpush.bf16.msra.mxu0 %v2737
    %3561 = vmatpush.bf16.msra.mxu0 %v2736
    %3562 = vmatmul.bf16.gmra.mxu0 %v1034
    %v3563 = vpop.f32.mrf.mxu0
    %v3564 = vadd.f32 %v3551, %v3563
    %v3565 = vpop.f32.mrf.mxu0
    %3566 = vdwg.mxu0
    %3567 = vmatpush.bf16.msra.mxu0 %v2751
    %3568 = vmatpush.bf16.msra.mxu0 %v2750
    %3569 = vmatpush.bf16.msra.mxu0 %v2749
    %3570 = vmatpush.bf16.msra.mxu0 %v2748
    %3571 = vmatpush.bf16.msra.mxu0 %v2747
    %3572 = vmatpush.bf16.msra.mxu0 %v2746
    %3573 = vmatpush.bf16.msra.mxu0 %v2745
    %3574 = vmatpush.bf16.msra.mxu0 %v2744
    %3575 = vmatmul.bf16.gmra.mxu0 %v1035
    %v3576 = vpop.f32.mrf.mxu0
    %v3577 = vadd.f32 %v3564, %v3576
    %v3578 = vpop.f32.mrf.mxu0
    %3579 = vdwg.mxu0
    %3580 = vmatpush.bf16.msra.mxu0 %v2759
    %3581 = vmatpush.bf16.msra.mxu0 %v2758
    %3582 = vmatpush.bf16.msra.mxu0 %v2757
    %3583 = vmatpush.bf16.msra.mxu0 %v2756
    %3584 = vmatpush.bf16.msra.mxu0 %v2755
    %3585 = vmatpush.bf16.msra.mxu0 %v2754
    %3586 = vmatpush.bf16.msra.mxu0 %v2753
    %3587 = vmatpush.bf16.msra.mxu0 %v2752
    %3588 = vmatmul.bf16.gmra.mxu0 %v1036
    %v3589 = vpop.f32.mrf.mxu0
    %v3590 = vadd.f32 %v3577, %v3589
    %v3591 = vpop.f32.mrf.mxu0
    %3592 = vdwg.mxu0
    %3593 = vmatpush.bf16.msra.mxu0 %v2767
    %3594 = vmatpush.bf16.msra.mxu0 %v2766
    %3595 = vmatpush.bf16.msra.mxu0 %v2765
    %3596 = vmatpush.bf16.msra.mxu0 %v2764
    %3597 = vmatpush.bf16.msra.mxu0 %v2763
    %3598 = vmatpush.bf16.msra.mxu0 %v2762
    %3599 = vmatpush.bf16.msra.mxu0 %v2761
    %3600 = vmatpush.bf16.msra.mxu0 %v2760
    %3601 = vmatmul.bf16.gmra.mxu0 %v1037
    %v3602 = vpop.f32.mrf.mxu0
    %v3603 = vadd.f32 %v3590, %v3602
    %v3604 = vpop.f32.mrf.mxu0
    %3605 = vdwg.mxu0
    %3606 = vmatpush.bf16.msra.mxu0 %v2775
    %3607 = vmatpush.bf16.msra.mxu0 %v2774
    %3608 = vmatpush.bf16.msra.mxu0 %v2773
    %3609 = vmatpush.bf16.msra.mxu0 %v2772
    %3610 = vmatpush.bf16.msra.mxu0 %v2771
    %3611 = vmatpush.bf16.msra.mxu0 %v2770
    %3612 = vmatpush.bf16.msra.mxu0 %v2769
    %3613 = vmatpush.bf16.msra.mxu0 %v2768
    %3614 = vmatmul.bf16.gmra.mxu0 %v1038
    %v3615 = vpop.f32.mrf.mxu0
    %v3616 = vadd.f32 %v3603, %v3615
    %v3617 = vpop.f32.mrf.mxu0
    %3618 = vdwg.mxu0
    %3619 = vmatpush.bf16.msra.mxu0 %v2783
    %3620 = vmatpush.bf16.msra.mxu0 %v2782
    %3621 = vmatpush.bf16.msra.mxu0 %v2781
    %3622 = vmatpush.bf16.msra.mxu0 %v2780
    %3623 = vmatpush.bf16.msra.mxu0 %v2779
    %3624 = vmatpush.bf16.msra.mxu0 %v2778
    %3625 = vmatpush.bf16.msra.mxu0 %v2777
    %3626 = vmatpush.bf16.msra.mxu0 %v2776
    %3627 = vmatmul.bf16.gmra.mxu0 %v1039
    %v3628 = vpop.f32.mrf.mxu0
    %v3629 = vadd.f32 %v3616, %v3628
    %v3630 = vpop.f32.mrf.mxu0
    %3631 = vdwg.mxu0
    %3632 = vmatpush.bf16.msra.mxu0 %v2791
    %3633 = vmatpush.bf16.msra.mxu0 %v2790
    %3634 = vmatpush.bf16.msra.mxu0 %v2789
    %3635 = vmatpush.bf16.msra.mxu0 %v2788
    %3636 = vmatpush.bf16.msra.mxu0 %v2787
    %3637 = vmatpush.bf16.msra.mxu0 %v2786
    %3638 = vmatpush.bf16.msra.mxu0 %v2785
    %3639 = vmatpush.bf16.msra.mxu0 %v2784
    %3640 = vmatmul.bf16.gmra.mxu0 %v1040
    %v3641 = vpop.f32.mrf.mxu0
    %v3642 = vadd.f32 %v3629, %v3641
    %v3643 = vpop.f32.mrf.mxu0
    %3644 = vdwg.mxu0
    %3645 = vmatpush.bf16.msra.mxu0 %v2799
    %3646 = vmatpush.bf16.msra.mxu0 %v2798
    %3647 = vmatpush.bf16.msra.mxu0 %v2797
    %3648 = vmatpush.bf16.msra.mxu0 %v2796
    %3649 = vmatpush.bf16.msra.mxu0 %v2795
    %3650 = vmatpush.bf16.msra.mxu0 %v2794
    %3651 = vmatpush.bf16.msra.mxu0 %v2793
    %3652 = vmatpush.bf16.msra.mxu0 %v2792
    %3653 = vmatmul.bf16.gmra.mxu0 %v1041
    %v3654 = vpop.f32.mrf.mxu0
    %v3655 = vadd.f32 %v3642, %v3654
    %v3656 = vpop.f32.mrf.mxu0
    %3657 = vdwg.mxu0
    %3658 = vmatpush.bf16.msra.mxu0 %v2807
    %3659 = vmatpush.bf16.msra.mxu0 %v2806
    %3660 = vmatpush.bf16.msra.mxu0 %v2805
    %3661 = vmatpush.bf16.msra.mxu0 %v2804
    %3662 = vmatpush.bf16.msra.mxu0 %v2803
    %3663 = vmatpush.bf16.msra.mxu0 %v2802
    %3664 = vmatpush.bf16.msra.mxu0 %v2801
    %3665 = vmatpush.bf16.msra.mxu0 %v2800
    %3666 = vmatmul.bf16.gmra.mxu0 %v1042
    %v3667 = vpop.f32.mrf.mxu0
    %v3668 = vadd.f32 %v3655, %v3667
    %v3669 = vpop.f32.mrf.mxu0
    %3670 = vdwg.mxu0
    %3671 = vmatpush.bf16.msra.mxu0 %v2815
    %3672 = vmatpush.bf16.msra.mxu0 %v2814
    %3673 = vmatpush.bf16.msra.mxu0 %v2813
    %3674 = vmatpush.bf16.msra.mxu0 %v2812
    %3675 = vmatpush.bf16.msra.mxu0 %v2811
    %3676 = vmatpush.bf16.msra.mxu0 %v2810
    %3677 = vmatpush.bf16.msra.mxu0 %v2809
    %3678 = vmatpush.bf16.msra.mxu0 %v2808
    %3679 = vmatmul.bf16.gmra.mxu0 %v1043
    %v3680 = vpop.f32.mrf.mxu0
    %v3681 = vadd.f32 %v3668, %v3680
    %v3682 = vpop.f32.mrf.mxu0
    %3683 = vdwg.mxu0
    %3684 = vmatpush.bf16.msra.mxu0 %v2823
    %3685 = vmatpush.bf16.msra.mxu0 %v2822
    %3686 = vmatpush.bf16.msra.mxu0 %v2821
    %3687 = vmatpush.bf16.msra.mxu0 %v2820
    %3688 = vmatpush.bf16.msra.mxu0 %v2819
    %3689 = vmatpush.bf16.msra.mxu0 %v2818
    %3690 = vmatpush.bf16.msra.mxu0 %v2817
    %3691 = vmatpush.bf16.msra.mxu0 %v2816
    %3692 = vmatmul.bf16.gmra.mxu0 %v1044
    %v3693 = vpop.f32.mrf.mxu0
    %v3694 = vadd.f32 %v3681, %v3693
    %v3695 = vpop.f32.mrf.mxu0
    %3696 = vdwg.mxu0
    %3697 = vmatpush.bf16.msra.mxu0 %v2831
    %3698 = vmatpush.bf16.msra.mxu0 %v2830
    %3699 = vmatpush.bf16.msra.mxu0 %v2829
    %3700 = vmatpush.bf16.msra.mxu0 %v2828
    %3701 = vmatpush.bf16.msra.mxu0 %v2827
    %3702 = vmatpush.bf16.msra.mxu0 %v2826
    %3703 = vmatpush.bf16.msra.mxu0 %v2825
    %3704 = vmatpush.bf16.msra.mxu0 %v2824
    %3705 = vmatmul.bf16.gmra.mxu0 %v1045
    %v3706 = vpop.f32.mrf.mxu0
    %v3707 = vadd.f32 %v3694, %v3706
    %v3708 = vpop.f32.mrf.mxu0
    %3709 = vdwg.mxu0
    %3710 = vmatpush.bf16.msra.mxu0 %v2839
    %3711 = vmatpush.bf16.msra.mxu0 %v2838
    %3712 = vmatpush.bf16.msra.mxu0 %v2837
    %3713 = vmatpush.bf16.msra.mxu0 %v2836
    %3714 = vmatpush.bf16.msra.mxu0 %v2835
    %3715 = vmatpush.bf16.msra.mxu0 %v2834
    %3716 = vmatpush.bf16.msra.mxu0 %v2833
    %3717 = vmatpush.bf16.msra.mxu0 %v2832
    %3718 = vmatmul.bf16.gmra.mxu0 %v1046
    %v3719 = vpop.f32.mrf.mxu0
    %v3720 = vadd.f32 %v3707, %v3719
    %v3721 = vpop.f32.mrf.mxu0
    %3722 = vdwg.mxu0
    %3723 = vmatpush.bf16.msra.mxu0 %v2847
    %3724 = vmatpush.bf16.msra.mxu0 %v2846
    %3725 = vmatpush.bf16.msra.mxu0 %v2845
    %3726 = vmatpush.bf16.msra.mxu0 %v2844
    %3727 = vmatpush.bf16.msra.mxu0 %v2843
    %3728 = vmatpush.bf16.msra.mxu0 %v2842
    %3729 = vmatpush.bf16.msra.mxu0 %v2841
    %3730 = vmatpush.bf16.msra.mxu0 %v2840
    %3731 = vmatmul.bf16.gmra.mxu0 %v1047
    %v3732 = vpop.f32.mrf.mxu0
    %v3733 = vadd.f32 %v3720, %v3732
    %v3734 = vpop.f32.mrf.mxu0
    %3735 = vdwg.mxu0
    %3736 = vmatpush.bf16.msra.mxu0 %v2855
    %3737 = vmatpush.bf16.msra.mxu0 %v2854
    %3738 = vmatpush.bf16.msra.mxu0 %v2853
    %3739 = vmatpush.bf16.msra.mxu0 %v2852
    %3740 = vmatpush.bf16.msra.mxu0 %v2851
    %3741 = vmatpush.bf16.msra.mxu0 %v2850
    %3742 = vmatpush.bf16.msra.mxu0 %v2849
    %3743 = vmatpush.bf16.msra.mxu0 %v2848
    %3744 = vmatmul.bf16.gmra.mxu0 %v1048
    %v3745 = vpop.f32.mrf.mxu0
    %v3746 = vadd.f32 %v3733, %v3745
    %v3747 = vpop.f32.mrf.mxu0
    %3748 = vdwg.mxu0
    %3749 = vmatpush.bf16.msra.mxu0 %v2863
    %3750 = vmatpush.bf16.msra.mxu0 %v2862
    %3751 = vmatpush.bf16.msra.mxu0 %v2861
    %3752 = vmatpush.bf16.msra.mxu0 %v2860
    %3753 = vmatpush.bf16.msra.mxu0 %v2859
    %3754 = vmatpush.bf16.msra.mxu0 %v2858
    %3755 = vmatpush.bf16.msra.mxu0 %v2857
    %3756 = vmatpush.bf16.msra.mxu0 %v2856
    %3757 = vmatmul.bf16.gmra.mxu0 %v1049
    %v3758 = vpop.f32.mrf.mxu0
    %v3759 = vadd.f32 %v3746, %v3758
    %v3760 = vpop.f32.mrf.mxu0
    %3761 = vdwg.mxu0
    %3762 = vmatpush.bf16.msra.mxu0 %v2871
    %3763 = vmatpush.bf16.msra.mxu0 %v2870
    %3764 = vmatpush.bf16.msra.mxu0 %v2869
    %3765 = vmatpush.bf16.msra.mxu0 %v2868
    %3766 = vmatpush.bf16.msra.mxu0 %v2867
    %3767 = vmatpush.bf16.msra.mxu0 %v2866
    %3768 = vmatpush.bf16.msra.mxu0 %v2865
    %3769 = vmatpush.bf16.msra.mxu0 %v2864
    %3770 = vmatmul.bf16.gmra.mxu0 %v1050
    %v3771 = vpop.f32.mrf.mxu0
    %v3772 = vadd.f32 %v3759, %v3771
    %v3773 = vpop.f32.mrf.mxu0
    %3774 = vdwg.mxu0
    %3775 = vmatpush.bf16.msra.mxu0 %v2879
    %3776 = vmatpush.bf16.msra.mxu0 %v2878
    %3777 = vmatpush.bf16.msra.mxu0 %v2877
    %3778 = vmatpush.bf16.msra.mxu0 %v2876
    %3779 = vmatpush.bf16.msra.mxu0 %v2875
    %3780 = vmatpush.bf16.msra.mxu0 %v2874
    %3781 = vmatpush.bf16.msra.mxu0 %v2873
    %3782 = vmatpush.bf16.msra.mxu0 %v2872
    %3783 = vmatmul.bf16.gmra.mxu0 %v1051
    %v3784 = vpop.f32.mrf.mxu0
    %v3785 = vadd.f32 %v3772, %v3784
    %v3786 = vpop.f32.mrf.mxu0
    %3787 = vdwg.mxu0
    %3788 = vmatpush.bf16.msra.mxu0 %v2887
    %3789 = vmatpush.bf16.msra.mxu0 %v2886
    %3790 = vmatpush.bf16.msra.mxu0 %v2885
    %3791 = vmatpush.bf16.msra.mxu0 %v2884
    %3792 = vmatpush.bf16.msra.mxu0 %v2883
    %3793 = vmatpush.bf16.msra.mxu0 %v2882
    %3794 = vmatpush.bf16.msra.mxu0 %v2881
    %3795 = vmatpush.bf16.msra.mxu0 %v2880
    %3796 = vmatmul.bf16.gmra.mxu0 %v1052
    %v3797 = vpop.f32.mrf.mxu0
    %v3798 = vadd.f32 %v3785, %v3797
    %v3799 = vpop.f32.mrf.mxu0
    %3800 = vdwg.mxu0
    %3801 = vmatpush.bf16.msra.mxu0 %v2895
    %3802 = vmatpush.bf16.msra.mxu0 %v2894
    %3803 = vmatpush.bf16.msra.mxu0 %v2893
    %3804 = vmatpush.bf16.msra.mxu0 %v2892
    %3805 = vmatpush.bf16.msra.mxu0 %v2891
    %3806 = vmatpush.bf16.msra.mxu0 %v2890
    %3807 = vmatpush.bf16.msra.mxu0 %v2889
    %3808 = vmatpush.bf16.msra.mxu0 %v2888
    %3809 = vmatmul.bf16.gmra.mxu0 %v1053
    %v3810 = vpop.f32.mrf.mxu0
    %v3811 = vadd.f32 %v3798, %v3810
    %v3812 = vpop.f32.mrf.mxu0
    %3813 = vdwg.mxu0
    %3814 = vmatpush.bf16.msra.mxu0 %v2903
    %3815 = vmatpush.bf16.msra.mxu0 %v2902
    %3816 = vmatpush.bf16.msra.mxu0 %v2901
    %3817 = vmatpush.bf16.msra.mxu0 %v2900
    %3818 = vmatpush.bf16.msra.mxu0 %v2899
    %3819 = vmatpush.bf16.msra.mxu0 %v2898
    %3820 = vmatpush.bf16.msra.mxu0 %v2897
    %3821 = vmatpush.bf16.msra.mxu0 %v2896
    %3822 = vmatmul.bf16.gmra.mxu0 %v1054
    %v3823 = vpop.f32.mrf.mxu0
    %v3824 = vadd.f32 %v3811, %v3823
    %v3825 = vpop.f32.mrf.mxu0
    %3826 = vdwg.mxu0
    %3827 = vmatpush.bf16.msra.mxu0 %v2911
    %3828 = vmatpush.bf16.msra.mxu0 %v2910
    %3829 = vmatpush.bf16.msra.mxu0 %v2909
    %3830 = vmatpush.bf16.msra.mxu0 %v2908
    %3831 = vmatpush.bf16.msra.mxu0 %v2907
    %3832 = vmatpush.bf16.msra.mxu0 %v2906
    %3833 = vmatpush.bf16.msra.mxu0 %v2905
    %3834 = vmatpush.bf16.msra.mxu0 %v2904
    %3835 = vmatmul.bf16.gmra.mxu0 %v1055
    %v3836 = vpop.f32.mrf.mxu0
    %v3837 = vadd.f32 %v3824, %v3836
    %v3838 = vpop.f32.mrf.mxu0
    %3839 = vdwg.mxu0
    %3840 = vmatpush.bf16.msra.mxu0 %v2919
    %3841 = vmatpush.bf16.msra.mxu0 %v2918
    %3842 = vmatpush.bf16.msra.mxu0 %v2917
    %3843 = vmatpush.bf16.msra.mxu0 %v2916
    %3844 = vmatpush.bf16.msra.mxu0 %v2915
    %3845 = vmatpush.bf16.msra.mxu0 %v2914
    %3846 = vmatpush.bf16.msra.mxu0 %v2913
    %3847 = vmatpush.bf16.msra.mxu0 %v2912
    %3848 = vmatmul.bf16.gmra.mxu0 %v1056
    %v3849 = vpop.f32.mrf.mxu0
    %v3850 = vadd.f32 %v3837, %v3849
    %v3851 = vpop.f32.mrf.mxu0
    %3852 = vdwg.mxu0
    %3853 = vmatpush.bf16.msra.mxu0 %v2927
    %3854 = vmatpush.bf16.msra.mxu0 %v2926
    %3855 = vmatpush.bf16.msra.mxu0 %v2925
    %3856 = vmatpush.bf16.msra.mxu0 %v2924
    %3857 = vmatpush.bf16.msra.mxu0 %v2923
    %3858 = vmatpush.bf16.msra.mxu0 %v2922
    %3859 = vmatpush.bf16.msra.mxu0 %v2921
    %3860 = vmatpush.bf16.msra.mxu0 %v2920
    %3861 = vmatmul.bf16.gmra.mxu0 %v1057
    %v3862 = vpop.f32.mrf.mxu0
    %v3863 = vadd.f32 %v3850, %v3862
    %v3864 = vpop.f32.mrf.mxu0
    %3865 = vdwg.mxu0
    %3866 = vmatpush.bf16.msra.mxu0 %v2935
    %3867 = vmatpush.bf16.msra.mxu0 %v2934
    %3868 = vmatpush.bf16.msra.mxu0 %v2933
    %3869 = vmatpush.bf16.msra.mxu0 %v2932
    %3870 = vmatpush.bf16.msra.mxu0 %v2931
    %3871 = vmatpush.bf16.msra.mxu0 %v2930
    %3872 = vmatpush.bf16.msra.mxu0 %v2929
    %3873 = vmatpush.bf16.msra.mxu0 %v2928
    %3874 = vmatmul.bf16.gmra.mxu0 %v1058
    %v3875 = vpop.f32.mrf.mxu0
    %v3876 = vadd.f32 %v3863, %v3875
    %v3877 = vpop.f32.mrf.mxu0
    %3878 = vdwg.mxu0
    %3879 = vmatpush.bf16.msra.mxu0 %v2943
    %3880 = vmatpush.bf16.msra.mxu0 %v2942
    %3881 = vmatpush.bf16.msra.mxu0 %v2941
    %3882 = vmatpush.bf16.msra.mxu0 %v2940
    %3883 = vmatpush.bf16.msra.mxu0 %v2939
    %3884 = vmatpush.bf16.msra.mxu0 %v2938
    %3885 = vmatpush.bf16.msra.mxu0 %v2937
    %3886 = vmatpush.bf16.msra.mxu0 %v2936
    %3887 = vmatmul.bf16.gmra.mxu0 %v1059
    %v3888 = vpop.f32.mrf.mxu0
    %v3889 = vadd.f32 %v3876, %v3888
    %v3890 = vpop.f32.mrf.mxu0
    %3891 = vdwg.mxu0
    %3892 = vmatpush.bf16.msra.mxu0 %v2951
    %3893 = vmatpush.bf16.msra.mxu0 %v2950
    %3894 = vmatpush.bf16.msra.mxu0 %v2949
    %3895 = vmatpush.bf16.msra.mxu0 %v2948
    %3896 = vmatpush.bf16.msra.mxu0 %v2947
    %3897 = vmatpush.bf16.msra.mxu0 %v2946
    %3898 = vmatpush.bf16.msra.mxu0 %v2945
    %3899 = vmatpush.bf16.msra.mxu0 %v2944
    %3900 = vmatmul.bf16.gmra.mxu0 %v1060
    %v3901 = vpop.f32.mrf.mxu0
    %v3902 = vadd.f32 %v3889, %v3901
    %v3903 = vpop.f32.mrf.mxu0
    %3904 = vdwg.mxu0
    %3905 = vmatpush.bf16.msra.mxu0 %v2959
    %3906 = vmatpush.bf16.msra.mxu0 %v2958
    %3907 = vmatpush.bf16.msra.mxu0 %v2957
    %3908 = vmatpush.bf16.msra.mxu0 %v2956
    %3909 = vmatpush.bf16.msra.mxu0 %v2955
    %3910 = vmatpush.bf16.msra.mxu0 %v2954
    %3911 = vmatpush.bf16.msra.mxu0 %v2953
    %3912 = vmatpush.bf16.msra.mxu0 %v2952
    %3913 = vmatmul.bf16.gmra.mxu0 %v1061
    %v3914 = vpop.f32.mrf.mxu0
    %v3915 = vadd.f32 %v3902, %v3914
    %v3916 = vpop.f32.mrf.mxu0
    %3917 = vdwg.mxu0
    %3918 = vmatpush.bf16.msra.mxu0 %v2967
    %3919 = vmatpush.bf16.msra.mxu0 %v2966
    %3920 = vmatpush.bf16.msra.mxu0 %v2965
    %3921 = vmatpush.bf16.msra.mxu0 %v2964
    %3922 = vmatpush.bf16.msra.mxu0 %v2963
    %3923 = vmatpush.bf16.msra.mxu0 %v2962
    %3924 = vmatpush.bf16.msra.mxu0 %v2961
    %3925 = vmatpush.bf16.msra.mxu0 %v2960
    %3926 = vmatmul.bf16.gmra.mxu0 %v1062
    %v3927 = vpop.f32.mrf.mxu0
    %v3928 = vadd.f32 %v3915, %v3927
    %v3929 = vpop.f32.mrf.mxu0
    %3930 = vdwg.mxu0
    %3931 = vmatpush.bf16.msra.mxu0 %v2975
    %3932 = vmatpush.bf16.msra.mxu0 %v2974
    %3933 = vmatpush.bf16.msra.mxu0 %v2973
    %3934 = vmatpush.bf16.msra.mxu0 %v2972
    %3935 = vmatpush.bf16.msra.mxu0 %v2971
    %3936 = vmatpush.bf16.msra.mxu0 %v2970
    %3937 = vmatpush.bf16.msra.mxu0 %v2969
    %3938 = vmatpush.bf16.msra.mxu0 %v2968
    %3939 = vmatmul.bf16.gmra.mxu0 %v1063
    %v3940 = vpop.f32.mrf.mxu0
    %v3941 = vadd.f32 %v3928, %v3940
    %v3942 = vpop.f32.mrf.mxu0
    %3943 = vdwg.mxu0
    %3944 = vmatpush.bf16.msra.mxu0 %v2983
    %3945 = vmatpush.bf16.msra.mxu0 %v2982
    %3946 = vmatpush.bf16.msra.mxu0 %v2981
    %3947 = vmatpush.bf16.msra.mxu0 %v2980
    %3948 = vmatpush.bf16.msra.mxu0 %v2979
    %3949 = vmatpush.bf16.msra.mxu0 %v2978
    %3950 = vmatpush.bf16.msra.mxu0 %v2977
    %3951 = vmatpush.bf16.msra.mxu0 %v2976
    %3952 = vmatmul.bf16.gmra.mxu0 %v1064
    %v3953 = vpop.f32.mrf.mxu0
    %v3954 = vadd.f32 %v3941, %v3953
    %v3955 = vpop.f32.mrf.mxu0
    %3956 = vdwg.mxu0
    %3957 = vmatpush.bf16.msra.mxu0 %v2991
    %3958 = vmatpush.bf16.msra.mxu0 %v2990
    %3959 = vmatpush.bf16.msra.mxu0 %v2989
    %3960 = vmatpush.bf16.msra.mxu0 %v2988
    %3961 = vmatpush.bf16.msra.mxu0 %v2987
    %3962 = vmatpush.bf16.msra.mxu0 %v2986
    %3963 = vmatpush.bf16.msra.mxu0 %v2985
    %3964 = vmatpush.bf16.msra.mxu0 %v2984
    %3965 = vmatmul.bf16.gmra.mxu0 %v1065
    %v3966 = vpop.f32.mrf.mxu0
    %v3967 = vadd.f32 %v3954, %v3966
    %v3968 = vpop.f32.mrf.mxu0
    %3969 = vdwg.mxu0
    %3970 = vmatpush.bf16.msra.mxu0 %v2999
    %3971 = vmatpush.bf16.msra.mxu0 %v2998
    %3972 = vmatpush.bf16.msra.mxu0 %v2997
    %3973 = vmatpush.bf16.msra.mxu0 %v2996
    %3974 = vmatpush.bf16.msra.mxu0 %v2995
    %3975 = vmatpush.bf16.msra.mxu0 %v2994
    %3976 = vmatpush.bf16.msra.mxu0 %v2993
    %3977 = vmatpush.bf16.msra.mxu0 %v2992
    %3978 = vmatmul.bf16.gmra.mxu0 %v1066
    %v3979 = vpop.f32.mrf.mxu0
    %v3980 = vadd.f32 %v3967, %v3979
    %v3981 = vpop.f32.mrf.mxu0
    %3982 = vdwg.mxu0
    %3983 = vmatpush.bf16.msra.mxu0 %v3007
    %3984 = vmatpush.bf16.msra.mxu0 %v3006
    %3985 = vmatpush.bf16.msra.mxu0 %v3005
    %3986 = vmatpush.bf16.msra.mxu0 %v3004
    %3987 = vmatpush.bf16.msra.mxu0 %v3003
    %3988 = vmatpush.bf16.msra.mxu0 %v3002
    %3989 = vmatpush.bf16.msra.mxu0 %v3001
    %3990 = vmatpush.bf16.msra.mxu0 %v3000
    %3991 = vmatmul.bf16.gmra.mxu0 %v1067
    %v3992 = vpop.f32.mrf.mxu0
    %v3993 = vadd.f32 %v3980, %v3992
    %v3994 = vpop.f32.mrf.mxu0
    %3995 = vdwg.mxu0
    %3996 = vmatpush.bf16.msra.mxu0 %v3015
    %3997 = vmatpush.bf16.msra.mxu0 %v3014
    %3998 = vmatpush.bf16.msra.mxu0 %v3013
    %3999 = vmatpush.bf16.msra.mxu0 %v3012
    %4000 = vmatpush.bf16.msra.mxu0 %v3011
    %4001 = vmatpush.bf16.msra.mxu0 %v3010
    %4002 = vmatpush.bf16.msra.mxu0 %v3009
    %4003 = vmatpush.bf16.msra.mxu0 %v3008
    %4004 = vmatmul.bf16.gmra.mxu0 %v1068
    %v4005 = vpop.f32.mrf.mxu0
    %v4006 = vadd.f32 %v3993, %v4005
    %v4007 = vpop.f32.mrf.mxu0
    %4008 = vdwg.mxu0
    %4009 = vmatpush.bf16.msra.mxu0 %v3023
    %4010 = vmatpush.bf16.msra.mxu0 %v3022
    %4011 = vmatpush.bf16.msra.mxu0 %v3021
    %4012 = vmatpush.bf16.msra.mxu0 %v3020
    %4013 = vmatpush.bf16.msra.mxu0 %v3019
    %4014 = vmatpush.bf16.msra.mxu0 %v3018
    %4015 = vmatpush.bf16.msra.mxu0 %v3017
    %4016 = vmatpush.bf16.msra.mxu0 %v3016
    %4017 = vmatmul.bf16.gmra.mxu0 %v1069
    %v4018 = vpop.f32.mrf.mxu0
    %v4019 = vadd.f32 %v4006, %v4018
    %v4020 = vpop.f32.mrf.mxu0
    %4021 = vdwg.mxu0
    %4022 = vmatpush.bf16.msra.mxu0 %v3031
    %4023 = vmatpush.bf16.msra.mxu0 %v3030
    %4024 = vmatpush.bf16.msra.mxu0 %v3029
    %4025 = vmatpush.bf16.msra.mxu0 %v3028
    %4026 = vmatpush.bf16.msra.mxu0 %v3027
    %4027 = vmatpush.bf16.msra.mxu0 %v3026
    %4028 = vmatpush.bf16.msra.mxu0 %v3025
    %4029 = vmatpush.bf16.msra.mxu0 %v3024
    %4030 = vmatmul.bf16.gmra.mxu0 %v1070
    %v4031 = vpop.f32.mrf.mxu0
    %v4032 = vadd.f32 %v4019, %v4031
    %v4033 = vpop.f32.mrf.mxu0
    %4034 = vdwg.mxu0
    %4035 = vmatpush.bf16.msra.mxu0 %v3039
    %4036 = vmatpush.bf16.msra.mxu0 %v3038
    %4037 = vmatpush.bf16.msra.mxu0 %v3037
    %4038 = vmatpush.bf16.msra.mxu0 %v3036
    %4039 = vmatpush.bf16.msra.mxu0 %v3035
    %4040 = vmatpush.bf16.msra.mxu0 %v3034
    %4041 = vmatpush.bf16.msra.mxu0 %v3033
    %4042 = vmatpush.bf16.msra.mxu0 %v3032
    %4043 = vmatmul.bf16.gmra.mxu0 %v1071
    %v4044 = vpop.f32.mrf.mxu0
    %v4045 = vadd.f32 %v4032, %v4044
    %v4046 = vpop.f32.mrf.mxu0
    %4047 = vdwg.mxu0
    %v4048 = vmax.f32 %v4045, 0.0
    %v4049 = vld [vmem:[#allocation10] sm:$0xff]
    %v4050 = vld [vmem:[#allocation10 + $0x8] sm:$0xff]
    %v4051 = vld [vmem:[#allocation10 + $0x10] sm:$0xff]
    %v4052 = vld [vmem:[#allocation10 + $0x18] sm:$0xff]
    %v4053 = vld [vmem:[#allocation10 + $0x20] sm:$0xff]
    %v4054 = vld [vmem:[#allocation10 + $0x28] sm:$0xff]
    %v4055 = vld [vmem:[#allocation10 + $0x30] sm:$0xff]
    %v4056 = vld [vmem:[#allocation10 + $0x38] sm:$0xff]
    %v4057 = vld [vmem:[#allocation10 + $0x40] sm:$0xff]
    %v4058 = vld [vmem:[#allocation10 + $0x48] sm:$0xff]
    %v4059 = vld [vmem:[#allocation10 + $0x50] sm:$0xff]
    %v4060 = vld [vmem:[#allocation10 + $0x58] sm:$0xff]
    %v4061 = vld [vmem:[#allocation10 + $0x60] sm:$0xff]
    %v4062 = vld [vmem:[#allocation10 + $0x68] sm:$0xff]
    %v4063 = vld [vmem:[#allocation10 + $0x70] sm:$0xff]
    %v4064 = vld [vmem:[#allocation10 + $0x78] sm:$0xff]
    %4065 = vmatpush.msra.mxu0 %v4064
    %4066 = vmatpush.msra.mxu0 %v4063
    %4067 = vmatpush.msra.mxu0 %v4062
    %4068 = vmatpush.msra.mxu0 %v4061
    %4069 = vmatpush.msra.mxu0 %v4060
    %4070 = vmatpush.msra.mxu0 %v4059
    %4071 = vmatpush.msra.mxu0 %v4058
    %4072 = vmatpush.msra.mxu0 %v4057
    %4073 = vmatpush.msra.mxu0 %v4056
    %4074 = vmatpush.msra.mxu0 %v4055
    %4075 = vmatpush.msra.mxu0 %v4054
    %4076 = vmatpush.msra.mxu0 %v4053
    %4077 = vmatpush.msra.mxu0 %v4052
    %4078 = vmatpush.msra.mxu0 %v4051
    %4079 = vmatpush.msra.mxu0 %v4050
    %4080 = vmatpush.msra.mxu0 %v4049
    %4081 = vmatmul.f32.gmra.mxu0 %v159
    %v4082 = vpop.f32.mrf.mxu0
    %v4083 = vadd.f32 0.0, %v4082
    %4084 = vdwg.mxu0
    %v4085 = vmax.f32 %v4083, 0.0
    %v4086 = vadd.f32 %v4085, %v159
    %v4087 = vld [vmem:[#allocation11] sm:$0xff]
    %v4088 = vld [vmem:[#allocation11 + $0x8] sm:$0xff]
    %v4089 = vld [vmem:[#allocation11 + $0x10] sm:$0xff]
    %v4090 = vld [vmem:[#allocation11 + $0x18] sm:$0xff]
    %v4091 = vld [vmem:[#allocation11 + $0x20] sm:$0xff]
    %v4092 = vld [vmem:[#allocation11 + $0x28] sm:$0xff]
    %v4093 = vld [vmem:[#allocation11 + $0x30] sm:$0xff]
    %v4094 = vld [vmem:[#allocation11 + $0x38] sm:$0xff]
    %v4095 = vld [vmem:[#allocation11 + $0x40] sm:$0xff]
    %v4096 = vld [vmem:[#allocation11 + $0x48] sm:$0xff]
    %v4097 = vld [vmem:[#allocation11 + $0x50] sm:$0xff]
    %v4098 = vld [vmem:[#allocation11 + $0x58] sm:$0xff]
    %v4099 = vld [vmem:[#allocation11 + $0x60] sm:$0xff]
    %v4100 = vld [vmem:[#allocation11 + $0x68] sm:$0xff]
    %v4101 = vld [vmem:[#allocation11 + $0x70] sm:$0xff]
    %v4102 = vld [vmem:[#allocation11 + $0x78] sm:$0xff]
    %v4103 = vld [vmem:[#allocation13] sm:$0xff]
    %v4104 = vld [vmem:[#allocation13 + $0x8] sm:$0xff]
    %v4105 = vld [vmem:[#allocation13 + $0x10] sm:$0xff]
    %v4106 = vld [vmem:[#allocation13 + $0x18] sm:$0xff]
    %v4107 = vld [vmem:[#allocation13 + $0x20] sm:$0xff]
    %v4108 = vld [vmem:[#allocation13 + $0x28] sm:$0xff]
    %v4109 = vld [vmem:[#allocation13 + $0x30] sm:$0xff]
    %v4110 = vld [vmem:[#allocation13 + $0x38] sm:$0xff]
    %v4111 = vld [vmem:[#allocation13 + $0x40] sm:$0xff]
    %v4112 = vld [vmem:[#allocation13 + $0x48] sm:$0xff]
    %v4113 = vld [vmem:[#allocation13 + $0x50] sm:$0xff]
    %v4114 = vld [vmem:[#allocation13 + $0x58] sm:$0xff]
    %v4115 = vld [vmem:[#allocation13 + $0x60] sm:$0xff]
    %v4116 = vld [vmem:[#allocation13 + $0x68] sm:$0xff]
    %v4117 = vld [vmem:[#allocation13 + $0x70] sm:$0xff]
    %v4118 = vld [vmem:[#allocation13 + $0x78] sm:$0xff]
    %4119 = vmatpush.msra.mxu0 %v4118
    %4120 = vmatpush.msra.mxu0 %v4117
    %4121 = vmatpush.msra.mxu0 %v4116
    %4122 = vmatpush.msra.mxu0 %v4115
    %4123 = vmatpush.msra.mxu0 %v4114
    %4124 = vmatpush.msra.mxu0 %v4113
    %4125 = vmatpush.msra.mxu0 %v4112
    %4126 = vmatpush.msra.mxu0 %v4111
    %4127 = vmatpush.msra.mxu0 %v4110
    %4128 = vmatpush.msra.mxu0 %v4109
    %4129 = vmatpush.msra.mxu0 %v4108
    %4130 = vmatpush.msra.mxu0 %v4107
    %4131 = vmatpush.msra.mxu0 %v4106
    %4132 = vmatpush.msra.mxu0 %v4105
    %4133 = vmatpush.msra.mxu0 %v4104
    %4134 = vmatpush.msra.mxu0 %v4103
    %4135 = vmatmul.f32.gmra.mxu0 %v4048
    %v4136 = vpop.f32.mrf.mxu0
    %v4137 = vadd.f32 0.0, %v4136
    %4138 = vdwg.mxu0
    %4139 = vmatpush.msra.mxu0 %v4102
    %4140 = vmatpush.msra.mxu0 %v4101
    %4141 = vmatpush.msra.mxu0 %v4100
    %4142 = vmatpush.msra.mxu0 %v4099
    %4143 = vmatpush.msra.mxu0 %v4098
    %4144 = vmatpush.msra.mxu0 %v4097
    %4145 = vmatpush.msra.mxu0 %v4096
    %4146 = vmatpush.msra.mxu0 %v4095
    %4147 = vmatpush.msra.mxu0 %v4094
    %4148 = vmatpush.msra.mxu0 %v4093
    %4149 = vmatpush.msra.mxu0 %v4092
    %4150 = vmatpush.msra.mxu0 %v4091
    %4151 = vmatpush.msra.mxu0 %v4090
    %4152 = vmatpush.msra.mxu0 %v4089
    %4153 = vmatpush.msra.mxu0 %v4088
    %4154 = vmatpush.msra.mxu0 %v4087
    %4155 = vmatmul.f32.gmra.mxu0 %v4086
    %v4156 = vpop.f32.mrf.mxu0
    %v4157 = vadd.f32 %v4137, %v4156
    %4158 = vdwg.mxu0
    %4159 = vst [vmem:[#allocation14] sm:$0xff] %v4157
    // Predicated region
    $region58: #{tpu_custom_call.1} parent=1 // pred_check
      _
    $region59: #{tpu_custom_call.1} parent=1 // pred_check_branch
      %4161 = sbr.rel (0) target = $region61
    $region60: #{tpu_custom_call.1} parent=1 // pred_region
      %4163 = vsyncadd [#allocation4], 0
      %s4165 = sshll.u32 [#allocation14], 4
      %s4166 = int_to_ptr.vmem [resolvable:$true] %s4165
      %s4167 = sshll.u32 %s7, 4
      %s4168 = int_to_ptr.hbm [resolvable:$true] %s4167
      %4170 = dma.vmem_to_hbm [thread:$0]  %s4166, 128, %s4168, [#allocation4]
    $region61: #{tpu_custom_call.1} parent=1 // pred_fallthru
      _
    // Predicated region
    $region62: #{tpu_custom_call.1} parent=1 // pred_check
      _
    $region63: #{tpu_custom_call.1} parent=1 // pred_check_branch
      %4172 = sbr.rel (0) target = $region65
    $region64: #{tpu_custom_call.1} parent=1 // pred_region
      %4174 = dma.done [#allocation4], 128
    $region65: #{tpu_custom_call.1} parent=1 // pred_fallthru
      _
    %4175 = vsyncpa [#allocation3], 1
    %4176 = vsyncpa [#allocation6], 1
    %4177 = vsyncpa [#allocation9], 1
    %4178 = vsyncpa [#allocation12], 1
    %4179 = vsyncpa [#allocation4], 1

</llo_original>
